<compile_context>
chip_gen: v6e
topology: v6e:2x2x1
jax: 0.10.0
libtpu: 0.0.40
codegen_flags: <defaults>
</compile_context>

<pallas_src>
from functools import partial

import jax
import jax.numpy as jnp
from jax.experimental import pallas as pl
from jax.experimental.pallas import tpu as pltpu


# ----------------------------------------------------------------------------
# Small helpers
# ----------------------------------------------------------------------------
def _round_up(x, m):
    return ((x + m - 1) // m) * m


def _padded_width(W):
    # interior at columns [8, 8+W); >= 8 zero columns on each side; multiple of 8
    return 16 + _round_up(W, 8)


def _pick_nb(N, cap=8):
    """Largest divisor of N that is <= cap (images per grid step)."""
    nb = 1
    for d in range(1, min(N, cap) + 1):
        if N % d == 0:
            nb = d
    return nb


# ----------------------------------------------------------------------------
# In-kernel helpers
# ----------------------------------------------------------------------------
def _zero_halo(ref, Nb, H, W, Wp, Hp, C):
    """Zero only the halo of the pad scratch (interior is overwritten later)."""
    f32 = jnp.float32
    ref[:, 0:1, :, :] = jnp.zeros((Nb, 1, Wp, C), f32)                 # top row
    ref[:, 1 + H:, :, :] = jnp.zeros((Nb, Hp - 1 - H, Wp, C), f32)     # bottom rows
    ref[:, 1:1 + H, 0:8, :] = jnp.zeros((Nb, H, 8, C), f32)            # left strip
    ref[:, 1:1 + H, 8 + W:, :] = jnp.zeros((Nb, H, Wp - 8 - W, C), f32)  # right strip


def _dw_taps_unit(pad_ref, wd, Nb, H, W, C):
    """3x3 depthwise, stride 1.  pad_ref: (Nb, H+2, Wp, C) with interior at
    rows [1:H+1], cols [8:8+W].  Returns (Nb, H, W, C) f32."""
    acc = jnp.zeros((Nb, H, W, C), jnp.float32)
    for ky in range(3):
        slab = pad_ref[:, ky:ky + H, :, :]                 # aligned full-width load
        for kx in range(3):
            win = slab[:, :, 7 + kx:7 + kx + W, :]         # +-1 shift as value slice
            tap = wd[ky * 3 + kx:ky * 3 + kx + 1, :].reshape(1, 1, 1, C)
            acc = acc + win * tap
    return acc


def _dw_taps_strided(pad_ref, wd, Nb, s, Ho, Wo, C):
    """3x3 depthwise, stride s>1, subsampled BEFORE accumulation.
    pad_ref: (Nb, s*Ho+2, Wp, C).  Columns are subsampled with a strided
    sublane read (stride=s), rows with the leading-dim reshape trick.
    Returns (Nb, Ho, Wo, C) f32."""
    acc = jnp.zeros((Nb, Ho, Wo, C), jnp.float32)
    for ky in range(3):
        for kx in range(3):
            win = pad_ref[:, ky:ky + s * Ho, pl.ds(7 + kx, Wo, stride=s), :]
            win = win.reshape(Nb, Ho, s, Wo, C)[:, :, 0]   # keep rows ky, ky+s, ...
            tap = wd[ky * 3 + kx:ky * 3 + kx + 1, :].reshape(1, 1, 1, C)
            acc = acc + win * tap
    return acc


# ----------------------------------------------------------------------------
# Fused kernels (one pallas_call per InvertedResidual unit)
# ----------------------------------------------------------------------------
def _fused_s1_kernel(Nb, H, W, Wp, inp, bf, oup,
                     x_ref, wcomb_ref, b1_ref, wd_ref, w2p_ref, b2p_ref,
                     o_ref, pad_ref):
    """stride == 1 unit: out = shuffle(concat(x1, branch2(x2)))."""
    f32, bf16 = jnp.float32, jnp.bfloat16
    M = Nb * H * W
    Hp = H + 2

    x_flat = x_ref[...].reshape(M, inp).astype(bf16)

    # One MXU pass: columns [0,bf) = branch2 pw1 (zero-extended to inp rows),
    # columns [bf,bf+oup) = identity shuffle placement of x1 (even channels).
    u = jnp.dot(x_flat, wcomb_ref[...], preferred_element_type=f32)    # (M, bf+oup)
    y1 = jnp.maximum(u[:, :bf] + b1_ref[...], 0.0)                     # pw1+BN+ReLU
    z1 = u[:, bf:]                                                     # identity (no ReLU)

    # depthwise 3x3, pad=1 (BN scale folded into taps, BN bias into b2p)
    _zero_halo(pad_ref, Nb, H, W, Wp, Hp, bf)
    pad_ref[:, 1:H + 1, 8:8 + W, :] = y1.reshape(Nb, H, W, bf)
    acc = _dw_taps_unit(pad_ref, wd_ref[...], Nb, H, W, bf)            # (Nb,H,W,bf) f32

    # branch2 pw2 + BN + ReLU, shuffle placement (odd channels) folded in.
    t2 = jnp.dot(acc.reshape(M, bf).astype(bf16), w2p_ref[...],
                 preferred_element_type=f32)                           # (M, oup)
    z2 = jnp.maximum(t2 + b2p_ref[...], 0.0)                           # even cols == 0

    o_ref[...] = (z1 + z2).reshape(Nb, H, W, oup).astype(o_ref.dtype)


def _fused_s2_kernel(Nb, H, W, Wp, inp, bf, oup, s, Ho, Wo,
                     x_ref, wd1_ref, wp1p_ref, w1_ref, b1_ref, wd2_ref,
                     w2p_ref, bcomb_ref, o_ref, pad1_ref, pad2_ref):
    """stride > 1 unit: out = shuffle(concat(branch1(x), branch2(x)))."""
    f32, bf16 = jnp.float32, jnp.bfloat16
    M = Nb * H * W
    Mo = Nb * Ho * Wo
    Hp = s * Ho + 2

    x = x_ref[...].astype(f32)                                         # (Nb,H,W,inp)
    x_flat = x.reshape(M, inp)

    _zero_halo(pad1_ref, Nb, H, W, Wp, Hp, inp)
    _zero_halo(pad2_ref, Nb, H, W, Wp, Hp, bf)

    # ---- branch1: dw(x) -> pw (shuffle placement to even channels folded in)
    pad1_ref[:, 1:1 + H, 8:8 + W, :] = x
    acc1 = _dw_taps_strided(pad1_ref, wd1_ref[...], Nb, s, Ho, Wo, inp)
    t1 = jnp.dot(acc1.reshape(Mo, inp).astype(bf16), wp1p_ref[...],
                 preferred_element_type=f32)                           # (Mo, oup)

    # ---- branch2: pw1 + ReLU -> dw -> pw2 (placement to odd channels)
    y1 = jnp.maximum(
        jnp.dot(x_flat.astype(bf16), w1_ref[...], preferred_element_type=f32)
        + b1_ref[...], 0.0)                                            # (M, bf)
    pad2_ref[:, 1:1 + H, 8:8 + W, :] = y1.reshape(Nb, H, W, bf)
    acc2 = _dw_taps_strided(pad2_ref, wd2_ref[...], Nb, s, Ho, Wo, bf)
    t2 = jnp.dot(acc2.reshape(Mo, bf).astype(bf16), w2p_ref[...],
                 preferred_element_type=f32)                           # (Mo, oup)

    # bias + ReLU for both branches at once (disjoint channel supports).
    z = jnp.maximum(t1 + t2 + bcomb_ref[...], 0.0)
    o_ref[...] = z.reshape(Nb, Ho, Wo, oup).astype(o_ref.dtype)


# ----------------------------------------------------------------------------
# pallas_call wrappers
# ----------------------------------------------------------------------------
def _forward_s1(x_nhwc, kp, Nb, H, W, inp, bf, oup):
    N = x_nhwc.shape[0]
    Wp = _padded_width(W)
    kernel = partial(_fused_s1_kernel, Nb, H, W, Wp, inp, bf, oup)
    return pl.pallas_call(
        kernel,
        out_shape=jax.ShapeDtypeStruct((N, H, W, oup), x_nhwc.dtype),
        grid=(N // Nb,),
        in_specs=[
            pl.BlockSpec((Nb, H, W, inp), lambda n: (n, 0, 0, 0)),
            pl.BlockSpec((inp, bf + oup), lambda n: (0, 0)),  # wcomb = [w1_ext | p1]
            pl.BlockSpec((1, bf), lambda n: (0, 0)),          # b1
            pl.BlockSpec((9, bf), lambda n: (0, 0)),          # dw taps
            pl.BlockSpec((bf, oup), lambda n: (0, 0)),        # w2p (pw2 + shuffle)
            pl.BlockSpec((1, oup), lambda n: (0, 0)),         # b2p
        ],
        out_specs=pl.BlockSpec((Nb, H, W, oup), lambda n: (n, 0, 0, 0)),
        scratch_shapes=[pltpu.VMEM((Nb, H + 2, Wp, bf), jnp.float32)],
        compiler_params=pltpu.CompilerParams(dimension_semantics=("parallel",)),
    )(x_nhwc, kp["wcomb"], kp["b1"], kp["wd"], kp["w2p"], kp["b2p"])


def _forward_s2(x_nhwc, kp, Nb, H, W, inp, bf, oup, s):
    N = x_nhwc.shape[0]
    Ho = (H - 1) // s + 1
    Wo = (W - 1) // s + 1
    Wp = _padded_width(W)
    Hp = s * Ho + 2
    kernel = partial(_fused_s2_kernel, Nb, H, W, Wp, inp, bf, oup, s, Ho, Wo)
    return pl.pallas_call(
        kernel,
        out_shape=jax.ShapeDtypeStruct((N, Ho, Wo, oup), x_nhwc.dtype),
        grid=(N // Nb,),
        in_specs=[
            pl.BlockSpec((Nb, H, W, inp), lambda n: (n, 0, 0, 0)),
            pl.BlockSpec((9, inp), lambda n: (0, 0)),          # wd1
            pl.BlockSpec((inp, oup), lambda n: (0, 0)),        # wp1p (pw + shuffle)
            pl.BlockSpec((inp, bf), lambda n: (0, 0)),         # w1
            pl.BlockSpec((1, bf), lambda n: (0, 0)),           # b1
            pl.BlockSpec((9, bf), lambda n: (0, 0)),           # wd2
            pl.BlockSpec((bf, oup), lambda n: (0, 0)),         # w2p (pw2 + shuffle)
            pl.BlockSpec((1, oup), lambda n: (0, 0)),          # bcomb
        ],
        out_specs=pl.BlockSpec((Nb, Ho, Wo, oup), lambda n: (n, 0, 0, 0)),
        scratch_shapes=[pltpu.VMEM((Nb, Hp, Wp, inp), jnp.float32),
                        pltpu.VMEM((Nb, Hp, Wp, bf), jnp.float32)],
        compiler_params=pltpu.CompilerParams(dimension_semantics=("parallel",)),
    )(x_nhwc, kp["wd1"], kp["wp1p"], kp["w1"], kp["b1"],
      kp["wd2"], kp["w2p"], kp["bcomb"])


# ----------------------------------------------------------------------------
# Host-side parameter preparation (done once per module in a real network)
# ----------------------------------------------------------------------------
def _placement(bf, oup, parity):
    # 0/1 matrix placing branch channel j at shuffled channel 2*j + parity.
    p = jnp.zeros((bf, oup), jnp.float32)
    return p.at[jnp.arange(bf), 2 * jnp.arange(bf) + parity].set(1.0)


def _prepare_branch2(p2, oup):
    bf = p2["pw2_w"].shape[0]
    P2 = _placement(bf, oup, 1)
    w2p = p2["pw2_w"] @ P2                                # (bf, oup)
    b2p = (p2["pw2_b"] + p2["dw_b"] @ p2["pw2_w"]) @ P2   # dw BN bias folded in
    return w2p, b2p


def _prepare_s1(params, inp, oup):
    bf = oup // 2
    c = inp // 2
    assert c == bf, "stride == 1 requires inp == oup (module constraint)"
    p2 = params["branch2"]
    w2p, b2p = _prepare_branch2(p2, oup)
    # zero-extend pw1 so the full-channel input can be fed to one matmul, and
    # concatenate the identity-placement so x is pushed through the MXU once.
    w1_ext = jnp.concatenate([jnp.zeros((c, bf), jnp.float32), p2["pw1_w"]], axis=0)
    p1 = jnp.concatenate([_placement(bf, oup, 0),
                          jnp.zeros((inp - c, oup), jnp.float32)], axis=0)
    wcomb = jnp.concatenate([w1_ext, p1], axis=1).astype(jnp.bfloat16)  # (inp, bf+oup)
    return dict(wcomb=wcomb,
                b1=p2["pw1_b"].reshape(1, bf),
                wd=p2["dw_w"],
                w2p=w2p.astype(jnp.bfloat16),
                b2p=b2p.reshape(1, oup))


def _prepare_s2(params, inp, oup):
    bf = oup // 2
    p1b, p2 = params["branch1"], params["branch2"]
    P1 = _placement(bf, oup, 0)
    w2p, b2p = _prepare_branch2(p2, oup)
    wp1p = p1b["pw_w"] @ P1
    bp1p = (p1b["pw_b"] + p1b["dw_b"] @ p1b["pw_w"]) @ P1
    return dict(wd1=p1b["dw_w"],
                wp1p=wp1p.astype(jnp.bfloat16),
                w1=p2["pw1_w"].astype(jnp.bfloat16),
                b1=p2["pw1_b"].reshape(1, bf),
                wd2=p2["dw_w"],
                w2p=w2p.astype(jnp.bfloat16),
                bcomb=(b2p + bp1p).reshape(1, oup))


# ----------------------------------------------------------------------------
# InvertedResidual forward (NCHW in / NCHW out, matching the PyTorch module)
# ----------------------------------------------------------------------------
def inverted_residual_forward(x_nchw, params, stride):
    N, inp, H, W = x_nchw.shape
    oup = 2 * params["branch2"]["pw2_w"].shape[1]
    bf = oup // 2
    Nb = _pick_nb(N)
    x = jnp.transpose(x_nchw, (0, 2, 3, 1))  # single boundary NCHW -> NHWC
    if stride == 1:
        kp = _prepare_s1(params, inp, oup)
        out = _forward_s1(x, kp, Nb, H, W, inp, bf, oup)
    else:
        kp = _prepare_s2(params, inp, oup)
        out = _forward_s2(x, kp, Nb, H, W, inp, bf, oup, stride)
    return jnp.transpose(out, (0, 3, 1, 2))  # NHWC -> NCHW


# ----------------------------------------------------------------------------
# Deterministic parameter construction (BN folded, eval mode)
# ----------------------------------------------------------------------------
# TODO(synk): training-mode BatchNorm (batch-statistics + running-stat update)
# has no clean single-kernel equivalent here; BN is folded as eval-mode affine.
def _bn_fold(key, cout):
    k1, k2, k3, k4 = jax.random.split(key, 4)
    gamma = jax.random.uniform(k1, (cout,), minval=0.5, maxval=1.5)
    beta = 0.1 * jax.random.normal(k2, (cout,))
    mean = 0.1 * jax.random.normal(k3, (cout,))
    var = jax.random.uniform(k4, (cout,), minval=0.5, maxval=1.5)
    s = gamma / jnp.sqrt(var + 1e-5)
    return s, beta - mean * s


def _make_pw(key, cin, cout):
    kw, kb = jax.random.split(key)
    w = 0.1 * jax.random.normal(kw, (cin, cout))
    s, b = _bn_fold(kb, cout)
    return (w * s[None, :]).astype(jnp.float32), b.astype(jnp.float32)


def _make_dw(key, c):
    kw, kb = jax.random.split(key)
    w = 0.1 * jax.random.normal(kw, (9, c))  # 3x3 taps flattened, per channel
    s, b = _bn_fold(kb, c)
    return (w * s[None, :]).astype(jnp.float32), b.astype(jnp.float32)


def make_params(key, inp, oup, stride):
    bf = oup // 2
    params = {}
    keys = jax.random.split(key, 8)
    if stride > 1:
        dw_w, dw_b = _make_dw(keys[0], inp)
        pw_w, pw_b = _make_pw(keys[1], inp, bf)
        params["branch1"] = {"dw_w": dw_w, "dw_b": dw_b, "pw_w": pw_w, "pw_b": pw_b}
    cin2 = inp if stride > 1 else bf
    pw1_w, pw1_b = _make_pw(keys[2], cin2, bf)
    dw_w, dw_b = _make_dw(keys[3], bf)
    pw2_w, pw2_b = _make_pw(keys[4], bf, bf)
    params["branch2"] = {
        "pw1_w": pw1_w, "pw1_b": pw1_b,
        "dw_w": dw_w, "dw_b": dw_b,
        "pw2_w": pw2_w, "pw2_b": pw2_b,
    }
    return params


# ----------------------------------------------------------------------------
# Pure-jnp reference (NCHW, mirrors the PyTorch module with folded BN)
# ----------------------------------------------------------------------------
def ref_forward(x_nchw, params, stride):
    def pw(x, w, b, relu):
        y = jnp.einsum("nchw,cd->ndhw", x, w) + b[None, :, None, None]
        return jnp.maximum(y, 0.0) if relu else y

    def dw(x, w, b, s):
        N, C, H, W = x.shape
        xp = jnp.pad(x, ((0, 0), (0, 0), (1, 1), (1, 1)))
        Ho = (H - 1) // s + 1
        Wo = (W - 1) // s + 1
        acc = jnp.zeros((N, C, Ho, Wo)) + b[None, :, None, None]
        for ky in range(3):
            for kx in range(3):
                sl = xp[:, :, ky:ky + s * (Ho - 1) + 1:s, kx:kx + s * (Wo - 1) + 1:s]
                acc = acc + sl * w[ky * 3 + kx][None, :, None, None]
        return acc

    def b2(x, p):
        y = pw(x, p["pw1_w"], p["pw1_b"], True)
        y = dw(y, p["dw_w"], p["dw_b"], stride)
        return pw(y, p["pw2_w"], p["pw2_b"], True)

    def b1(x, p):
        y = dw(x, p["dw_w"], p["dw_b"], stride)
        return pw(y, p["pw_w"], p["pw_b"], True)

    if stride == 1:
        c = x_nchw.shape[1] // 2
        out = jnp.concatenate([x_nchw[:, :c], b2(x_nchw[:, c:], params["branch2"])], axis=1)
    else:
        out = jnp.concatenate(
            [b1(x_nchw, params["branch1"]), b2(x_nchw, params["branch2"])], axis=1
        )
    N, C, H, W = out.shape
    out = out.reshape(N, 2, C // 2, H, W).transpose(0, 2, 1, 3, 4).reshape(N, C, H, W)
    return out


# ----------------------------------------------------------------------------
if __name__ == "__main__":
    key = jax.random.PRNGKey(0)

    # (inp, oup, stride) configs: stride=1 unit and stride=2 downsampling unit
    configs = [(32, 32, 1), (32, 64, 2)]
    for i, (inp, oup, stride) in enumerate(configs):
        kp, kx = jax.random.split(jax.random.fold_in(key, i))
        params = make_params(kp, inp, oup, stride)
        x = jax.random.normal(kx, (2, inp, 16, 16), dtype=jnp.float32)

        out = inverted_residual_forward(x, params, stride)
        out = jax.block_until_ready(out)

        ref = ref_forward(x, params, stride)
        Ho = (16 - 1) // stride + 1
        assert out.shape == (2, oup, Ho, Ho), (out.shape, (2, oup, Ho, Ho))
        # bf16 MXU inputs -> loosened tolerance (placement matrices stay exact)
        assert jnp.allclose(out, ref, atol=3e-2, rtol=3e-2), float(
            jnp.max(jnp.abs(out - ref))
        )

    print("KERNEL_OK")
</pallas_src>

<mosaic_0001>
module attributes {stable_mosaic.version = 11 : i64} {
  func.func @_fused_s1_kernel(%arg0: i32, %arg1: memref<2x16x16x32xf32, #tpu.memory_space<vmem>>, %arg2: memref<32x48xbf16, #tpu.memory_space<vmem>>, %arg3: memref<1x16xf32, #tpu.memory_space<vmem>>, %arg4: memref<9x16xf32, #tpu.memory_space<vmem>>, %arg5: memref<16x32xbf16, #tpu.memory_space<vmem>>, %arg6: memref<1x32xf32, #tpu.memory_space<vmem>>, %arg7: memref<2x16x16x32xf32, #tpu.memory_space<vmem>>, %arg8: memref<2x18x32x16xf32, #tpu.memory_space<vmem>>) attributes {dimension_semantics = [#tpu.dimension_semantics<parallel>], iteration_bounds = array<i64: 1>, scalar_prefetch = 0 : i64, scratch_operands = 1 : i64, tpu.core_type = #tpu.core_type<tc>, window_params = [{transform_indices = @transform_0, window_bounds = array<i64: 2, 16, 16, 32>}, {pipeline_mode = #tpu.pipeline_mode<synchronous>, transform_indices = @transform_1, window_bounds = array<i64: 32, 48>}, {pipeline_mode = #tpu.pipeline_mode<synchronous>, transform_indices = @transform_2, window_bounds = array<i64: 1, 16>}, {pipeline_mode = #tpu.pipeline_mode<synchronous>, transform_indices = @transform_3, window_bounds = array<i64: 9, 16>}, {pipeline_mode = #tpu.pipeline_mode<synchronous>, transform_indices = @transform_4, window_bounds = array<i64: 16, 32>}, {pipeline_mode = #tpu.pipeline_mode<synchronous>, transform_indices = @transform_5, window_bounds = array<i64: 1, 32>}, {transform_indices = @transform_6, window_bounds = array<i64: 2, 16, 16, 32>}]} {
    %c0 = arith.constant 0 : index
    %c0_0 = arith.constant 0 : index
    %c0_1 = arith.constant 0 : index
    %c0_2 = arith.constant 0 : index
    %0 = vector.load %arg1[%c0, %c0_0, %c0_1, %c0_2] : memref<2x16x16x32xf32, #tpu.memory_space<vmem>>, vector<2x16x16x32xf32>
    %1 = vector.shape_cast %0 : vector<2x16x16x32xf32> to vector<512x32xf32>
    %2 = arith.truncf %1 : vector<512x32xf32> to vector<512x32xbf16>
    %c0_3 = arith.constant 0 : index
    %c0_4 = arith.constant 0 : index
    %3 = vector.load %arg2[%c0_3, %c0_4] : memref<32x48xbf16, #tpu.memory_space<vmem>>, vector<32x48xbf16>
    %cst = arith.constant dense<0.000000e+00> : vector<512x48xf32>
    %4 = tpu.matmul %2, %3, %cst {dimension_numbers = #tpu.dot_dimension_numbers<[1], [0], [0], [1], [0, 0, 1, 1], [], []>} : vector<512x32xbf16>, vector<32x48xbf16>, vector<512x48xf32> -> vector<512x48xf32>
    %5 = vector.extract_strided_slice %4 {offsets = [0, 0], sizes = [512, 16], strides = [1, 1]} : vector<512x48xf32> to vector<512x16xf32>
    %c0_5 = arith.constant 0 : index
    %c0_6 = arith.constant 0 : index
    %6 = vector.load %arg3[%c0_5, %c0_6] : memref<1x16xf32, #tpu.memory_space<vmem>>, vector<1x16xf32>
    %7 = vector.broadcast %6 : vector<1x16xf32> to vector<512x16xf32>
    %8 = arith.addf %5, %7 : vector<512x16xf32>
    %cst_7 = arith.constant 0.000000e+00 : f32
    %9 = vector.broadcast %cst_7 : f32 to vector<512x16xf32>
    %10 = arith.maximumf %8, %9 : vector<512x16xf32>
    %11 = vector.extract_strided_slice %4 {offsets = [0, 16], sizes = [512, 32], strides = [1, 1]} : vector<512x48xf32> to vector<512x32xf32>
    %cst_8 = arith.constant 0.000000e+00 : f32
    %12 = vector.broadcast %cst_8 : f32 to vector<2x1x32x16xf32>
    %c0_9 = arith.constant 0 : index
    %c0_10 = arith.constant 0 : index
    %c0_11 = arith.constant 0 : index
    %c0_12 = arith.constant 0 : index
    %13 = vector.load %arg8[%c0_9, %c0_10, %c0_11, %c0_12] : memref<2x18x32x16xf32, #tpu.memory_space<vmem>>, vector<2x1x32x16xf32>
    tpu.vector_store %arg8[%c0_9, %c0_10, %c0_11, %c0_12], %12 {strides = array<i32>} : memref<2x18x32x16xf32, #tpu.memory_space<vmem>>, vector<2x1x32x16xf32>,
    %cst_13 = arith.constant 0.000000e+00 : f32
    %14 = vector.broadcast %cst_13 : f32 to vector<2x1x32x16xf32>
    %c0_14 = arith.constant 0 : index
    %c17 = arith.constant 17 : index
    %c0_15 = arith.constant 0 : index
    %c0_16 = arith.constant 0 : index
    %15 = vector.load %arg8[%c0_14, %c17, %c0_15, %c0_16] : memref<2x18x32x16xf32, #tpu.memory_space<vmem>>, vector<2x1x32x16xf32>
    tpu.vector_store %arg8[%c0_14, %c17, %c0_15, %c0_16], %14 {strides = array<i32>} : memref<2x18x32x16xf32, #tpu.memory_space<vmem>>, vector<2x1x32x16xf32>,
    %cst_17 = arith.constant 0.000000e+00 : f32
    %16 = vector.broadcast %cst_17 : f32 to vector<2x16x8x16xf32>
    %c0_18 = arith.constant 0 : index
    %c1 = arith.constant 1 : index
    %c0_19 = arith.constant 0 : index
    %c0_20 = arith.constant 0 : index
    %17 = vector.load %arg8[%c0_18, %c1, %c0_19, %c0_20] : memref<2x18x32x16xf32, #tpu.memory_space<vmem>>, vector<2x16x8x16xf32>
    tpu.vector_store %arg8[%c0_18, %c1, %c0_19, %c0_20], %16 {strides = array<i32>} : memref<2x18x32x16xf32, #tpu.memory_space<vmem>>, vector<2x16x8x16xf32>,
    %cst_21 = arith.constant 0.000000e+00 : f32
    %18 = vector.broadcast %cst_21 : f32 to vector<2x16x8x16xf32>
    %c0_22 = arith.constant 0 : index
    %c1_23 = arith.constant 1 : index
    %c24 = arith.constant 24 : index
    %c0_24 = arith.constant 0 : index
    %19 = vector.load %arg8[%c0_22, %c1_23, %c24, %c0_24] : memref<2x18x32x16xf32, #tpu.memory_space<vmem>>, vector<2x16x8x16xf32>
    tpu.vector_store %arg8[%c0_22, %c1_23, %c24, %c0_24], %18 {strides = array<i32>} : memref<2x18x32x16xf32, #tpu.memory_space<vmem>>, vector<2x16x8x16xf32>,
    %20 = vector.shape_cast %10 : vector<512x16xf32> to vector<2x16x16x16xf32>
    %c0_25 = arith.constant 0 : index
    %c1_26 = arith.constant 1 : index
    %c8 = arith.constant 8 : index
    %c0_27 = arith.constant 0 : index
    %21 = vector.load %arg8[%c0_25, %c1_26, %c8, %c0_27] : memref<2x18x32x16xf32, #tpu.memory_space<vmem>>, vector<2x16x16x16xf32>
    tpu.vector_store %arg8[%c0_25, %c1_26, %c8, %c0_27], %20 {strides = array<i32>} : memref<2x18x32x16xf32, #tpu.memory_space<vmem>>, vector<2x16x16x16xf32>,
    %c0_28 = arith.constant 0 : index
    %c0_29 = arith.constant 0 : index
    %22 = vector.load %arg4[%c0_28, %c0_29] : memref<9x16xf32, #tpu.memory_space<vmem>>, vector<9x16xf32>
    %cst_30 = arith.constant 0.000000e+00 : f32
    %23 = vector.broadcast %cst_30 : f32 to vector<2x16x16x16xf32>
    %c0_31 = arith.constant 0 : index
    %c0_32 = arith.constant 0 : index
    %c0_33 = arith.constant 0 : index
    %c0_34 = arith.constant 0 : index
    %24 = vector.load %arg8[%c0_31, %c0_32, %c0_33, %c0_34] : memref<2x18x32x16xf32, #tpu.memory_space<vmem>>, vector<2x16x32x16xf32>
    %25 = vector.extract_strided_slice %24 {offsets = [0, 0, 7, 0], sizes = [2, 16, 16, 16], strides = [1, 1, 1, 1]} : vector<2x16x32x16xf32> to vector<2x16x16x16xf32>
    %26 = vector.extract_strided_slice %22 {offsets = [0, 0], sizes = [1, 16], strides = [1, 1]} : vector<9x16xf32> to vector<1x16xf32>
    %27 = vector.shape_cast %26 : vector<1x16xf32> to vector<1x1x1x16xf32>
    %28 = vector.broadcast %27 : vector<1x1x1x16xf32> to vector<2x16x16x16xf32>
    %29 = arith.mulf %25, %28 : vector<2x16x16x16xf32>
    %30 = arith.addf %23, %29 : vector<2x16x16x16xf32>
    %31 = vector.extract_strided_slice %24 {offsets = [0, 0, 8, 0], sizes = [2, 16, 16, 16], strides = [1, 1, 1, 1]} : vector<2x16x32x16xf32> to vector<2x16x16x16xf32>
    %32 = vector.extract_strided_slice %22 {offsets = [1, 0], sizes = [1, 16], strides = [1, 1]} : vector<9x16xf32> to vector<1x16xf32>
    %33 = vector.shape_cast %32 : vector<1x16xf32> to vector<1x1x1x16xf32>
    %34 = vector.broadcast %33 : vector<1x1x1x16xf32> to vector<2x16x16x16xf32>
    %35 = arith.mulf %31, %34 : vector<2x16x16x16xf32>
    %36 = arith.addf %30, %35 : vector<2x16x16x16xf32>
    %37 = vector.extract_strided_slice %24 {offsets = [0, 0, 9, 0], sizes = [2, 16, 16, 16], strides = [1, 1, 1, 1]} : vector<2x16x32x16xf32> to vector<2x16x16x16xf32>
    %38 = vector.extract_strided_slice %22 {offsets = [2, 0], sizes = [1, 16], strides = [1, 1]} : vector<9x16xf32> to vector<1x16xf32>
    %39 = vector.shape_cast %38 : vector<1x16xf32> to vector<1x1x1x16xf32>
    %40 = vector.broadcast %39 : vector<1x1x1x16xf32> to vector<2x16x16x16xf32>
    %41 = arith.mulf %37, %40 : vector<2x16x16x16xf32>
    %42 = arith.addf %36, %41 : vector<2x16x16x16xf32>
    %c0_35 = arith.constant 0 : index
    %c1_36 = arith.constant 1 : index
    %c0_37 = arith.constant 0 : index
    %c0_38 = arith.constant 0 : index
    %43 = vector.load %arg8[%c0_35, %c1_36, %c0_37, %c0_38] : memref<2x18x32x16xf32, #tpu.memory_space<vmem>>, vector<2x16x32x16xf32>
    %44 = vector.extract_strided_slice %43 {offsets = [0, 0, 7, 0], sizes = [2, 16, 16, 16], strides = [1, 1, 1, 1]} : vector<2x16x32x16xf32> to vector<2x16x16x16xf32>
    %45 = vector.extract_strided_slice %22 {offsets = [3, 0], sizes = [1, 16], strides = [1, 1]} : vector<9x16xf32> to vector<1x16xf32>
    %46 = vector.shape_cast %45 : vector<1x16xf32> to vector<1x1x1x16xf32>
    %47 = vector.broadcast %46 : vector<1x1x1x16xf32> to vector<2x16x16x16xf32>
    %48 = arith.mulf %44, %47 : vector<2x16x16x16xf32>
    %49 = arith.addf %42, %48 : vector<2x16x16x16xf32>
    %50 = vector.extract_strided_slice %43 {offsets = [0, 0, 8, 0], sizes = [2, 16, 16, 16], strides = [1, 1, 1, 1]} : vector<2x16x32x16xf32> to vector<2x16x16x16xf32>
    %51 = vector.extract_strided_slice %22 {offsets = [4, 0], sizes = [1, 16], strides = [1, 1]} : vector<9x16xf32> to vector<1x16xf32>
    %52 = vector.shape_cast %51 : vector<1x16xf32> to vector<1x1x1x16xf32>
    %53 = vector.broadcast %52 : vector<1x1x1x16xf32> to vector<2x16x16x16xf32>
    %54 = arith.mulf %50, %53 : vector<2x16x16x16xf32>
    %55 = arith.addf %49, %54 : vector<2x16x16x16xf32>
    %56 = vector.extract_strided_slice %43 {offsets = [0, 0, 9, 0], sizes = [2, 16, 16, 16], strides = [1, 1, 1, 1]} : vector<2x16x32x16xf32> to vector<2x16x16x16xf32>
    %57 = vector.extract_strided_slice %22 {offsets = [5, 0], sizes = [1, 16], strides = [1, 1]} : vector<9x16xf32> to vector<1x16xf32>
    %58 = vector.shape_cast %57 : vector<1x16xf32> to vector<1x1x1x16xf32>
    %59 = vector.broadcast %58 : vector<1x1x1x16xf32> to vector<2x16x16x16xf32>
    %60 = arith.mulf %56, %59 : vector<2x16x16x16xf32>
    %61 = arith.addf %55, %60 : vector<2x16x16x16xf32>
    %c0_39 = arith.constant 0 : index
    %c2 = arith.constant 2 : index
    %c0_40 = arith.constant 0 : index
    %c0_41 = arith.constant 0 : index
    %62 = vector.load %arg8[%c0_39, %c2, %c0_40, %c0_41] : memref<2x18x32x16xf32, #tpu.memory_space<vmem>>, vector<2x16x32x16xf32>
    %63 = vector.extract_strided_slice %62 {offsets = [0, 0, 7, 0], sizes = [2, 16, 16, 16], strides = [1, 1, 1, 1]} : vector<2x16x32x16xf32> to vector<2x16x16x16xf32>
    %64 = vector.extract_strided_slice %22 {offsets = [6, 0], sizes = [1, 16], strides = [1, 1]} : vector<9x16xf32> to vector<1x16xf32>
    %65 = vector.shape_cast %64 : vector<1x16xf32> to vector<1x1x1x16xf32>
    %66 = vector.broadcast %65 : vector<1x1x1x16xf32> to vector<2x16x16x16xf32>
    %67 = arith.mulf %63, %66 : vector<2x16x16x16xf32>
    %68 = arith.addf %61, %67 : vector<2x16x16x16xf32>
    %69 = vector.extract_strided_slice %62 {offsets = [0, 0, 8, 0], sizes = [2, 16, 16, 16], strides = [1, 1, 1, 1]} : vector<2x16x32x16xf32> to vector<2x16x16x16xf32>
    %70 = vector.extract_strided_slice %22 {offsets = [7, 0], sizes = [1, 16], strides = [1, 1]} : vector<9x16xf32> to vector<1x16xf32>
    %71 = vector.shape_cast %70 : vector<1x16xf32> to vector<1x1x1x16xf32>
    %72 = vector.broadcast %71 : vector<1x1x1x16xf32> to vector<2x16x16x16xf32>
    %73 = arith.mulf %69, %72 : vector<2x16x16x16xf32>
    %74 = arith.addf %68, %73 : vector<2x16x16x16xf32>
    %75 = vector.extract_strided_slice %62 {offsets = [0, 0, 9, 0], sizes = [2, 16, 16, 16], strides = [1, 1, 1, 1]} : vector<2x16x32x16xf32> to vector<2x16x16x16xf32>
    %76 = vector.extract_strided_slice %22 {offsets = [8, 0], sizes = [1, 16], strides = [1, 1]} : vector<9x16xf32> to vector<1x16xf32>
    %77 = vector.shape_cast %76 : vector<1x16xf32> to vector<1x1x1x16xf32>
    %78 = vector.broadcast %77 : vector<1x1x1x16xf32> to vector<2x16x16x16xf32>
    %79 = arith.mulf %75, %78 : vector<2x16x16x16xf32>
    %80 = arith.addf %74, %79 : vector<2x16x16x16xf32>
    %81 = vector.shape_cast %80 : vector<2x16x16x16xf32> to vector<512x16xf32>
    %82 = arith.truncf %81 : vector<512x16xf32> to vector<512x16xbf16>
    %c0_42 = arith.constant 0 : index
    %c0_43 = arith.constant 0 : index
    %83 = vector.load %arg5[%c0_42, %c0_43] : memref<16x32xbf16, #tpu.memory_space<vmem>>, vector<16x32xbf16>
    %cst_44 = arith.constant dense<0.000000e+00> : vector<512x32xf32>
    %84 = tpu.matmul %82, %83, %cst_44 {dimension_numbers = #tpu.dot_dimension_numbers<[1], [0], [0], [1], [0, 0, 1, 1], [], []>} : vector<512x16xbf16>, vector<16x32xbf16>, vector<512x32xf32> -> vector<512x32xf32>
    %c0_45 = arith.constant 0 : index
    %c0_46 = arith.constant 0 : index
    %85 = vector.load %arg6[%c0_45, %c0_46] : memref<1x32xf32, #tpu.memory_space<vmem>>, vector<1x32xf32>
    %86 = vector.broadcast %85 : vector<1x32xf32> to vector<512x32xf32>
    %87 = arith.addf %84, %86 : vector<512x32xf32>
    %cst_47 = arith.constant 0.000000e+00 : f32
    %88 = vector.broadcast %cst_47 : f32 to vector<512x32xf32>
    %89 = arith.maximumf %87, %88 : vector<512x32xf32>
    %90 = arith.addf %11, %89 : vector<512x32xf32>
    %91 = vector.shape_cast %90 : vector<512x32xf32> to vector<2x16x16x32xf32>
    %c0_48 = arith.constant 0 : index
    %c0_49 = arith.constant 0 : index
    %c0_50 = arith.constant 0 : index
    %c0_51 = arith.constant 0 : index
    %92 = vector.load %arg7[%c0_48, %c0_49, %c0_50, %c0_51] : memref<2x16x16x32xf32, #tpu.memory_space<vmem>>, vector<2x16x16x32xf32>
    tpu.vector_store %arg7[%c0_48, %c0_49, %c0_50, %c0_51], %91 {strides = array<i32>} : memref<2x16x16x32xf32, #tpu.memory_space<vmem>>, vector<2x16x16x32xf32>,
    return
  }
  func.func @transform_0(%arg0: i32) -> (i32, i32, i32, i32) {
    %c0_i32 = arith.constant 0 : i32
    %c0_i32_0 = arith.constant 0 : i32
    %c0_i32_1 = arith.constant 0 : i32
    %c0_i32_2 = arith.constant 0 : i32
    return %arg0, %c0_i32, %c0_i32_0, %c0_i32_1 : i32, i32, i32, i32
  }
  func.func @transform_1(%arg0: i32) -> (i32, i32) {
    %c0_i32 = arith.constant 0 : i32
    %c0_i32_0 = arith.constant 0 : i32
    %c0_i32_1 = arith.constant 0 : i32
    return %c0_i32, %c0_i32_0 : i32, i32
  }
  func.func @transform_2(%arg0: i32) -> (i32, i32) {
    %c0_i32 = arith.constant 0 : i32
    %c0_i32_0 = arith.constant 0 : i32
    %c0_i32_1 = arith.constant 0 : i32
    return %c0_i32, %c0_i32_0 : i32, i32
  }
  func.func @transform_3(%arg0: i32) -> (i32, i32) {
    %c0_i32 = arith.constant 0 : i32
    %c0_i32_0 = arith.constant 0 : i32
    %c0_i32_1 = arith.constant 0 : i32
    return %c0_i32, %c0_i32_0 : i32, i32
  }
  func.func @transform_4(%arg0: i32) -> (i32, i32) {
    %c0_i32 = arith.constant 0 : i32
    %c0_i32_0 = arith.constant 0 : i32
    %c0_i32_1 = arith.constant 0 : i32
    return %c0_i32, %c0_i32_0 : i32, i32
  }
  func.func @transform_5(%arg0: i32) -> (i32, i32) {
    %c0_i32 = arith.constant 0 : i32
    %c0_i32_0 = arith.constant 0 : i32
    %c0_i32_1 = arith.constant 0 : i32
    return %c0_i32, %c0_i32_0 : i32, i32
  }
  func.func @transform_6(%arg0: i32) -> (i32, i32, i32, i32) {
    %c0_i32 = arith.constant 0 : i32
    %c0_i32_0 = arith.constant 0 : i32
    %c0_i32_1 = arith.constant 0 : i32
    %c0_i32_2 = arith.constant 0 : i32
    return %arg0, %c0_i32, %c0_i32_0, %c0_i32_1 : i32, i32, i32, i32
  }
}

</mosaic_0001>

<llo_original>
// kernel: tpu_custom_call.1
$region0: #{tpu_custom_call.1}
  #allocation0 [shape = 'u32[]', space=smem, size = 0x4, offset = 0x4, fixed_abs, tag = 'smem constant byte address 0x4 - core index']
  #allocation1 [shape = 'u32[144,128]{1,0:T(1,128)}', space=vmem, size = 0x12000, scoped, tag = 'internal scratch']
  #allocation2 [shape = 'f32[2,18,32,16]{3,2,1,0:T(8,128)}', space=vmem, size = 0x90000, scoped, tag = 'scratch operand']
  %s0 = inlined_call_operand.hbm [shape: f32[2,16,16,32], index: 0, kind: input, shape index: {}]
  %s1 = inlined_call_operand.hbm [shape: bf16[32,48], index: 1, kind: input, shape index: {}]
  %s2 = inlined_call_operand.vmem [shape: f32[1,16], index: 2, kind: input, shape index: {}]
  %s3 = inlined_call_operand.hbm [shape: f32[9,16], index: 3, kind: input, shape index: {}]
  %s4 = inlined_call_operand.hbm [shape: bf16[16,32], index: 4, kind: input, shape index: {}]
  %s5 = inlined_call_operand.vmem [shape: f32[1,32], index: 5, kind: input, shape index: {}]
  %s6 = inlined_call_operand.hbm [shape: f32[2,16,16,32], index: 6, kind: output, shape index: {}]
  %s7 = sld [smem:[#allocation0]]
  $region50: #{tpu_custom_call.1} parent=0
    _
  %s9 = ssub.s32 1, %s7
  %s10 = scalar_select 0, %s9, %s7
  $region1: #{tpu_custom_call.1} parent=0
    #allocation3 [shape = 'u8[262144]{0}', space=vmem, size = 0x40000, scoped, tag = 'input window, operand 0, single buffered']
    #allocation4 [shape = 's32[1]{0}', space=sflag, size = 0x4, scoped, tag = 'scoped memory for tpu_custom_call.1']
    #allocation5 [shape = 's32[1]{0}', space=sflag, size = 0x4, scoped, tag = 'scoped memory for tpu_custom_call.1']
    #allocation6 [shape = 'u8[8192]{0}', space=vmem, size = 0x2000, scoped, tag = 'input window, operand 1, single buffered']
    #allocation7 [shape = 's32[1]{0}', space=sflag, size = 0x4, scoped, tag = 'scoped memory for tpu_custom_call.1']
    #allocation8 [shape = 'u8[8192]{0}', space=vmem, size = 0x2000, scoped, tag = 'input window, operand 3, single buffered']
    #allocation9 [shape = 'u8[4096]{0}', space=vmem, size = 0x1000, scoped, tag = 'input window, operand 4, single buffered']
    #allocation10 [shape = 's32[1]{0}', space=sflag, size = 0x4, scoped, tag = 'scoped memory for tpu_custom_call.1']
    #allocation11 [shape = 'u8[262144]{0}', space=vmem, size = 0x40000, scoped, tag = 'output window, operand 0, single buffered']
    %11 = vsyncpa [#allocation4], 0
    %12 = vsyncpa [#allocation7], 0
    %13 = vsyncpa [#allocation10], 0
    %14 = vsyncpa [#allocation5], 0
    // Predicated region
    $region2: #{tpu_custom_call.1} parent=1 // pred_check
      _
    $region3: #{tpu_custom_call.1} parent=1 // pred_check_branch
      %16 = sbr.rel (0) target = $region5
    $region4: #{tpu_custom_call.1} parent=1 // pred_region
      %s18 = ssub.s32 8192, 8192
      %19 = vsyncadd [#allocation4], %s18
      %s20 = sshll.u32 [#allocation3], 4
      %s21 = int_to_ptr.vmem [resolvable:$true] %s20
      %26 = dma.hbm_to_vmem [thread:$0]  %s0, 8192, %s21, [#allocation4], 128, 128, 8
    $region5: #{tpu_custom_call.1} parent=1 // pred_fallthru
      _
    // Predicated region
    $region6: #{tpu_custom_call.1} parent=1 // pred_check
      _
    $region7: #{tpu_custom_call.1} parent=1 // pred_check_branch
      %28 = sbr.rel (0) target = $region9
    $region8: #{tpu_custom_call.1} parent=1 // pred_region
      %s30 = ssub.s32 256, 256
      %31 = vsyncadd [#allocation7], %s30
      %s32 = sshll.u32 [#allocation6], 4
      %s33 = int_to_ptr.vmem [resolvable:$true] %s32
      %38 = dma.hbm_to_vmem [thread:$0]  %s1, 256, %s33, [#allocation7], 64, 64, 4
    $region9: #{tpu_custom_call.1} parent=1 // pred_fallthru
      _
    // Predicated region
    $region10: #{tpu_custom_call.1} parent=1 // pred_check
      _
    $region11: #{tpu_custom_call.1} parent=1 // pred_check_branch
      %40 = sbr.rel (0) target = $region13
    $region12: #{tpu_custom_call.1} parent=1 // pred_region
      _
    $region13: #{tpu_custom_call.1} parent=1 // pred_fallthru
      _
    // Predicated region
    $region14: #{tpu_custom_call.1} parent=1 // pred_check
      _
    $region15: #{tpu_custom_call.1} parent=1 // pred_check_branch
      %42 = sbr.rel (0) target = $region17
    $region16: #{tpu_custom_call.1} parent=1 // pred_region
      %s44 = ssub.s32 256, 256
      %45 = vsyncadd [#allocation7], %s44
      %s46 = sshll.u32 [#allocation8], 4
      %s47 = int_to_ptr.vmem [resolvable:$true] %s46
      %52 = dma.hbm_to_vmem [thread:$0]  %s3, 256, %s47, [#allocation7], 128, 128, 8
    $region17: #{tpu_custom_call.1} parent=1 // pred_fallthru
      _
    // Predicated region
    $region18: #{tpu_custom_call.1} parent=1 // pred_check
      _
    $region19: #{tpu_custom_call.1} parent=1 // pred_check_branch
      %54 = sbr.rel (0) target = $region21
    $region20: #{tpu_custom_call.1} parent=1 // pred_region
      %s56 = ssub.s32 128, 128
      %57 = vsyncadd [#allocation10], %s56
      %s58 = sshll.u32 [#allocation9], 4
      %s59 = int_to_ptr.vmem [resolvable:$true] %s58
      %64 = dma.hbm_to_vmem [thread:$0]  %s4, 128, %s59, [#allocation10], 64, 64, 4
    $region21: #{tpu_custom_call.1} parent=1 // pred_fallthru
      _
    // Predicated region
    $region22: #{tpu_custom_call.1} parent=1 // pred_check
      _
    $region23: #{tpu_custom_call.1} parent=1 // pred_check_branch
      %66 = sbr.rel (0) target = $region25
    $region24: #{tpu_custom_call.1} parent=1 // pred_region
      _
    $region25: #{tpu_custom_call.1} parent=1 // pred_fallthru
      _
    // Predicated region
    $region26: #{tpu_custom_call.1} parent=1 // pred_check
      _
    $region27: #{tpu_custom_call.1} parent=1 // pred_check_branch
      %68 = sbr.rel (0) target = $region29
    $region28: #{tpu_custom_call.1} parent=1 // pred_region
      %69 = dma.done [#allocation4], 8192
    $region29: #{tpu_custom_call.1} parent=1 // pred_fallthru
      _
    // Predicated region
    $region30: #{tpu_custom_call.1} parent=1 // pred_check
      _
    $region31: #{tpu_custom_call.1} parent=1 // pred_check_branch
      %71 = sbr.rel (0) target = $region33
    $region32: #{tpu_custom_call.1} parent=1 // pred_region
      %72 = dma.done [#allocation7], 256
    $region33: #{tpu_custom_call.1} parent=1 // pred_fallthru
      _
    // Predicated region
    $region34: #{tpu_custom_call.1} parent=1 // pred_check
      _
    $region35: #{tpu_custom_call.1} parent=1 // pred_check_branch
      %74 = sbr.rel (0) target = $region37
    $region36: #{tpu_custom_call.1} parent=1 // pred_region
      %75 = dma.done [#allocation7], 256
    $region37: #{tpu_custom_call.1} parent=1 // pred_fallthru
      _
    // Predicated region
    $region38: #{tpu_custom_call.1} parent=1 // pred_check
      _
    $region39: #{tpu_custom_call.1} parent=1 // pred_check_branch
      %77 = sbr.rel (0) target = $region41
    $region40: #{tpu_custom_call.1} parent=1 // pred_region
      %78 = dma.done [#allocation10], 128
    $region41: #{tpu_custom_call.1} parent=1 // pred_fallthru
      _
    %v80 = vld [vmem:[#allocation3] sm:$0xff]
    %v81 = vld [vmem:[#allocation3 + $0x8] sm:$0xff]
    %v82 = vld [vmem:[#allocation3 + $0x10] sm:$0xff]
    %v83 = vld [vmem:[#allocation3 + $0x18] sm:$0xff]
    %v84 = vld [vmem:[#allocation3 + $0x20] sm:$0xff]
    %v85 = vld [vmem:[#allocation3 + $0x28] sm:$0xff]
    %v86 = vld [vmem:[#allocation3 + $0x30] sm:$0xff]
    %v87 = vld [vmem:[#allocation3 + $0x38] sm:$0xff]
    %v88 = vld [vmem:[#allocation3 + $0x40] sm:$0xff]
    %v89 = vld [vmem:[#allocation3 + $0x48] sm:$0xff]
    %v90 = vld [vmem:[#allocation3 + $0x50] sm:$0xff]
    %v91 = vld [vmem:[#allocation3 + $0x58] sm:$0xff]
    %v92 = vld [vmem:[#allocation3 + $0x60] sm:$0xff]
    %v93 = vld [vmem:[#allocation3 + $0x68] sm:$0xff]
    %v94 = vld [vmem:[#allocation3 + $0x70] sm:$0xff]
    %v95 = vld [vmem:[#allocation3 + $0x78] sm:$0xff]
    %v96 = vld [vmem:[#allocation3 + $0x80] sm:$0xff]
    %v97 = vld [vmem:[#allocation3 + $0x88] sm:$0xff]
    %v98 = vld [vmem:[#allocation3 + $0x90] sm:$0xff]
    %v99 = vld [vmem:[#allocation3 + $0x98] sm:$0xff]
    %v100 = vld [vmem:[#allocation3 + $0xa0] sm:$0xff]
    %v101 = vld [vmem:[#allocation3 + $0xa8] sm:$0xff]
    %v102 = vld [vmem:[#allocation3 + $0xb0] sm:$0xff]
    %v103 = vld [vmem:[#allocation3 + $0xb8] sm:$0xff]
    %v104 = vld [vmem:[#allocation3 + $0xc0] sm:$0xff]
    %v105 = vld [vmem:[#allocation3 + $0xc8] sm:$0xff]
    %v106 = vld [vmem:[#allocation3 + $0xd0] sm:$0xff]
    %v107 = vld [vmem:[#allocation3 + $0xd8] sm:$0xff]
    %v108 = vld [vmem:[#allocation3 + $0xe0] sm:$0xff]
    %v109 = vld [vmem:[#allocation3 + $0xe8] sm:$0xff]
    %v110 = vld [vmem:[#allocation3 + $0xf0] sm:$0xff]
    %v111 = vld [vmem:[#allocation3 + $0xf8] sm:$0xff]
    %v112 = vld [vmem:[#allocation3 + $0x100] sm:$0xff]
    %v113 = vld [vmem:[#allocation3 + $0x108] sm:$0xff]
    %v114 = vld [vmem:[#allocation3 + $0x110] sm:$0xff]
    %v115 = vld [vmem:[#allocation3 + $0x118] sm:$0xff]
    %v116 = vld [vmem:[#allocation3 + $0x120] sm:$0xff]
    %v117 = vld [vmem:[#allocation3 + $0x128] sm:$0xff]
    %v118 = vld [vmem:[#allocation3 + $0x130] sm:$0xff]
    %v119 = vld [vmem:[#allocation3 + $0x138] sm:$0xff]
    %v120 = vld [vmem:[#allocation3 + $0x140] sm:$0xff]
    %v121 = vld [vmem:[#allocation3 + $0x148] sm:$0xff]
    %v122 = vld [vmem:[#allocation3 + $0x150] sm:$0xff]
    %v123 = vld [vmem:[#allocation3 + $0x158] sm:$0xff]
    %v124 = vld [vmem:[#allocation3 + $0x160] sm:$0xff]
    %v125 = vld [vmem:[#allocation3 + $0x168] sm:$0xff]
    %v126 = vld [vmem:[#allocation3 + $0x170] sm:$0xff]
    %v127 = vld [vmem:[#allocation3 + $0x178] sm:$0xff]
    %v128 = vld [vmem:[#allocation3 + $0x180] sm:$0xff]
    %v129 = vld [vmem:[#allocation3 + $0x188] sm:$0xff]
    %v130 = vld [vmem:[#allocation3 + $0x190] sm:$0xff]
    %v131 = vld [vmem:[#allocation3 + $0x198] sm:$0xff]
    %v132 = vld [vmem:[#allocation3 + $0x1a0] sm:$0xff]
    %v133 = vld [vmem:[#allocation3 + $0x1a8] sm:$0xff]
    %v134 = vld [vmem:[#allocation3 + $0x1b0] sm:$0xff]
    %v135 = vld [vmem:[#allocation3 + $0x1b8] sm:$0xff]
    %v136 = vld [vmem:[#allocation3 + $0x1c0] sm:$0xff]
    %v137 = vld [vmem:[#allocation3 + $0x1c8] sm:$0xff]
    %v138 = vld [vmem:[#allocation3 + $0x1d0] sm:$0xff]
    %v139 = vld [vmem:[#allocation3 + $0x1d8] sm:$0xff]
    %v140 = vld [vmem:[#allocation3 + $0x1e0] sm:$0xff]
    %v141 = vld [vmem:[#allocation3 + $0x1e8] sm:$0xff]
    %v142 = vld [vmem:[#allocation3 + $0x1f0] sm:$0xff]
    %v143 = vld [vmem:[#allocation3 + $0x1f8] sm:$0xff]
    %v144 = vpack.c.bf16 %v81, %v80
    %v145 = vpack.c.bf16 %v83, %v82
    %v146 = vpack.c.bf16 %v85, %v84
    %v147 = vpack.c.bf16 %v87, %v86
    %v148 = vpack.c.bf16 %v89, %v88
    %v149 = vpack.c.bf16 %v91, %v90
    %v150 = vpack.c.bf16 %v93, %v92
    %v151 = vpack.c.bf16 %v95, %v94
    %v152 = vpack.c.bf16 %v97, %v96
    %v153 = vpack.c.bf16 %v99, %v98
    %v154 = vpack.c.bf16 %v101, %v100
    %v155 = vpack.c.bf16 %v103, %v102
    %v156 = vpack.c.bf16 %v105, %v104
    %v157 = vpack.c.bf16 %v107, %v106
    %v158 = vpack.c.bf16 %v109, %v108
    %v159 = vpack.c.bf16 %v111, %v110
    %v160 = vpack.c.bf16 %v113, %v112
    %v161 = vpack.c.bf16 %v115, %v114
    %v162 = vpack.c.bf16 %v117, %v116
    %v163 = vpack.c.bf16 %v119, %v118
    %v164 = vpack.c.bf16 %v121, %v120
    %v165 = vpack.c.bf16 %v123, %v122
    %v166 = vpack.c.bf16 %v125, %v124
    %v167 = vpack.c.bf16 %v127, %v126
    %v168 = vpack.c.bf16 %v129, %v128
    %v169 = vpack.c.bf16 %v131, %v130
    %v170 = vpack.c.bf16 %v133, %v132
    %v171 = vpack.c.bf16 %v135, %v134
    %v172 = vpack.c.bf16 %v137, %v136
    %v173 = vpack.c.bf16 %v139, %v138
    %v174 = vpack.c.bf16 %v141, %v140
    %v175 = vpack.c.bf16 %v143, %v142
    %v176 = vld [vmem:[#allocation6] sm:$0xf]
    %v177 = vld [vmem:[#allocation6 + $0x4] sm:$0xf]
    %v178 = vld [vmem:[#allocation6 + $0x8] sm:$0xf]
    %v179 = vld [vmem:[#allocation6 + $0xc] sm:$0xf]
    %v184 = vunpack.c.l.b16 %v176
    %v185 = vunpack.c.l.b16 %v177
    %v186 = vunpack.c.l.b16 %v178
    %v187 = vunpack.c.l.b16 %v179
    %v188 = vpack.c.b16 %v185, %v184
    %v189 = vpack.c.b16 %v187, %v186
    %vm192 = vcmask 261120
    %v194 = vsel %vm192, %v144, 0
    %v197 = vsel %vm192, %v145, 0
    %v200 = vsel %vm192, %v146, 0
    %v203 = vsel %vm192, %v147, 0
    %v206 = vsel %vm192, %v148, 0
    %v209 = vsel %vm192, %v149, 0
    %v212 = vsel %vm192, %v150, 0
    %v215 = vsel %vm192, %v151, 0
    %v218 = vsel %vm192, %v152, 0
    %v221 = vsel %vm192, %v153, 0
    %v224 = vsel %vm192, %v154, 0
    %v227 = vsel %vm192, %v155, 0
    %v230 = vsel %vm192, %v156, 0
    %v233 = vsel %vm192, %v157, 0
    %v236 = vsel %vm192, %v158, 0
    %v239 = vsel %vm192, %v159, 0
    %v242 = vsel %vm192, %v160, 0
    %v245 = vsel %vm192, %v161, 0
    %v248 = vsel %vm192, %v162, 0
    %v251 = vsel %vm192, %v163, 0
    %v254 = vsel %vm192, %v164, 0
    %v257 = vsel %vm192, %v165, 0
    %v260 = vsel %vm192, %v166, 0
    %v263 = vsel %vm192, %v167, 0
    %v266 = vsel %vm192, %v168, 0
    %v269 = vsel %vm192, %v169, 0
    %v272 = vsel %vm192, %v170, 0
    %v275 = vsel %vm192, %v171, 0
    %v278 = vsel %vm192, %v172, 0
    %v281 = vsel %vm192, %v173, 0
    %v284 = vsel %vm192, %v174, 0
    %v287 = vsel %vm192, %v175, 0
    %289 = vmatprep.subr.bf16.mxu0 0
    %290 = vmatpush1.bf16.msra.mxu0 0
    %291 = vmatprep.subr.bf16.mxu0 0
    %292 = vmatpush1.bf16.msra.mxu0 0
    %293 = vmatprep.subr.bf16.mxu0 0
    %294 = vmatpush1.bf16.msra.mxu0 0
    %295 = vmatprep.subr.bf16.mxu0 0
    %296 = vmatpush1.bf16.msra.mxu0 0
    %297 = vmatprep.subr.bf16.mxu0 0
    %298 = vmatpush1.bf16.msra.mxu0 0
    %299 = vmatprep.subr.bf16.mxu0 0
    %300 = vmatpush1.bf16.msra.mxu0 0
    %301 = vmatprep.subr.bf16.mxu0 0
    %302 = vmatpush1.bf16.msra.mxu0 %v189
    %303 = vmatprep.subr.bf16.mxu0 0
    %304 = vmatpush1.bf16.msra.mxu0 %v188
    %305 = vmatprep.subr.bf16.mxu0 0
    %306 = vmatpush2.bf16.msra.mxu0 0
    %307 = vmatprep.subr.bf16.mxu0 0
    %308 = vmatpush2.bf16.msra.mxu0 0
    %309 = vmatprep.subr.bf16.mxu0 0
    %310 = vmatpush2.bf16.msra.mxu0 0
    %311 = vmatprep.subr.bf16.mxu0 0
    %312 = vmatpush2.bf16.msra.mxu0 0
    %313 = vmatprep.subr.bf16.mxu0 0
    %314 = vmatpush2.bf16.msra.mxu0 0
    %315 = vmatprep.subr.bf16.mxu0 0
    %316 = vmatpush2.bf16.msra.mxu0 0
    %317 = vmatprep.subr.bf16.mxu0 0
    %318 = vmatpush2.bf16.msra.mxu0 0
    %319 = vmatprep.subr.bf16.mxu0 0
    %320 = vmatpush2.bf16.msra.mxu0 0
    %321 = vmatprep.mubr.bf16.mxu0 0
    %322 = vmatmul.mubr.bf16.gmra.mxu0 %v194
    %v323 = vpop.f32.mrf.mxu0
    %v324 = vadd.f32 0.0, %v323
    %v325 = vpop.f32.mrf.mxu0
    %v326 = vpop.f32.mrf.mxu0
    %v327 = vadd.f32 0.0, %v326
    %v328 = vpop.f32.mrf.mxu0
    %329 = vmatprep.mubr.bf16.mxu0 0
    %330 = vmatmul.mubr.bf16.gmra.mxu0 %v197
    %v331 = vpop.f32.mrf.mxu0
    %v332 = vadd.f32 0.0, %v331
    %v333 = vpop.f32.mrf.mxu0
    %v334 = vpop.f32.mrf.mxu0
    %v335 = vadd.f32 0.0, %v334
    %v336 = vpop.f32.mrf.mxu0
    %337 = vmatprep.mubr.bf16.mxu0 0
    %338 = vmatmul.mubr.bf16.gmra.mxu0 %v200
    %v339 = vpop.f32.mrf.mxu0
    %v340 = vadd.f32 0.0, %v339
    %v341 = vpop.f32.mrf.mxu0
    %v342 = vpop.f32.mrf.mxu0
    %v343 = vadd.f32 0.0, %v342
    %v344 = vpop.f32.mrf.mxu0
    %345 = vmatprep.mubr.bf16.mxu0 0
    %346 = vmatmul.mubr.bf16.gmra.mxu0 %v203
    %v347 = vpop.f32.mrf.mxu0
    %v348 = vadd.f32 0.0, %v347
    %v349 = vpop.f32.mrf.mxu0
    %v350 = vpop.f32.mrf.mxu0
    %v351 = vadd.f32 0.0, %v350
    %v352 = vpop.f32.mrf.mxu0
    %353 = vmatprep.mubr.bf16.mxu0 0
    %354 = vmatmul.mubr.bf16.gmra.mxu0 %v206
    %v355 = vpop.f32.mrf.mxu0
    %v356 = vadd.f32 0.0, %v355
    %v357 = vpop.f32.mrf.mxu0
    %v358 = vpop.f32.mrf.mxu0
    %v359 = vadd.f32 0.0, %v358
    %v360 = vpop.f32.mrf.mxu0
    %361 = vmatprep.mubr.bf16.mxu0 0
    %362 = vmatmul.mubr.bf16.gmra.mxu0 %v209
    %v363 = vpop.f32.mrf.mxu0
    %v364 = vadd.f32 0.0, %v363
    %v365 = vpop.f32.mrf.mxu0
    %v366 = vpop.f32.mrf.mxu0
    %v367 = vadd.f32 0.0, %v366
    %v368 = vpop.f32.mrf.mxu0
    %369 = vmatprep.mubr.bf16.mxu0 0
    %370 = vmatmul.mubr.bf16.gmra.mxu0 %v212
    %v371 = vpop.f32.mrf.mxu0
    %v372 = vadd.f32 0.0, %v371
    %v373 = vpop.f32.mrf.mxu0
    %v374 = vpop.f32.mrf.mxu0
    %v375 = vadd.f32 0.0, %v374
    %v376 = vpop.f32.mrf.mxu0
    %377 = vmatprep.mubr.bf16.mxu0 0
    %378 = vmatmul.mubr.bf16.gmra.mxu0 %v215
    %v379 = vpop.f32.mrf.mxu0
    %v380 = vadd.f32 0.0, %v379
    %v381 = vpop.f32.mrf.mxu0
    %v382 = vpop.f32.mrf.mxu0
    %v383 = vadd.f32 0.0, %v382
    %v384 = vpop.f32.mrf.mxu0
    %385 = vmatprep.mubr.bf16.mxu0 0
    %386 = vmatmul.mubr.bf16.gmra.mxu0 %v218
    %v387 = vpop.f32.mrf.mxu0
    %v388 = vadd.f32 0.0, %v387
    %v389 = vpop.f32.mrf.mxu0
    %v390 = vpop.f32.mrf.mxu0
    %v391 = vadd.f32 0.0, %v390
    %v392 = vpop.f32.mrf.mxu0
    %393 = vmatprep.mubr.bf16.mxu0 0
    %394 = vmatmul.mubr.bf16.gmra.mxu0 %v221
    %v395 = vpop.f32.mrf.mxu0
    %v396 = vadd.f32 0.0, %v395
    %v397 = vpop.f32.mrf.mxu0
    %v398 = vpop.f32.mrf.mxu0
    %v399 = vadd.f32 0.0, %v398
    %v400 = vpop.f32.mrf.mxu0
    %401 = vmatprep.mubr.bf16.mxu0 0
    %402 = vmatmul.mubr.bf16.gmra.mxu0 %v224
    %v403 = vpop.f32.mrf.mxu0
    %v404 = vadd.f32 0.0, %v403
    %v405 = vpop.f32.mrf.mxu0
    %v406 = vpop.f32.mrf.mxu0
    %v407 = vadd.f32 0.0, %v406
    %v408 = vpop.f32.mrf.mxu0
    %409 = vmatprep.mubr.bf16.mxu0 0
    %410 = vmatmul.mubr.bf16.gmra.mxu0 %v227
    %v411 = vpop.f32.mrf.mxu0
    %v412 = vadd.f32 0.0, %v411
    %v413 = vpop.f32.mrf.mxu0
    %v414 = vpop.f32.mrf.mxu0
    %v415 = vadd.f32 0.0, %v414
    %v416 = vpop.f32.mrf.mxu0
    %417 = vmatprep.mubr.bf16.mxu0 0
    %418 = vmatmul.mubr.bf16.gmra.mxu0 %v230
    %v419 = vpop.f32.mrf.mxu0
    %v420 = vadd.f32 0.0, %v419
    %v421 = vpop.f32.mrf.mxu0
    %v422 = vpop.f32.mrf.mxu0
    %v423 = vadd.f32 0.0, %v422
    %v424 = vpop.f32.mrf.mxu0
    %425 = vmatprep.mubr.bf16.mxu0 0
    %426 = vmatmul.mubr.bf16.gmra.mxu0 %v233
    %v427 = vpop.f32.mrf.mxu0
    %v428 = vadd.f32 0.0, %v427
    %v429 = vpop.f32.mrf.mxu0
    %v430 = vpop.f32.mrf.mxu0
    %v431 = vadd.f32 0.0, %v430
    %v432 = vpop.f32.mrf.mxu0
    %433 = vmatprep.mubr.bf16.mxu0 0
    %434 = vmatmul.mubr.bf16.gmra.mxu0 %v236
    %v435 = vpop.f32.mrf.mxu0
    %v436 = vadd.f32 0.0, %v435
    %v437 = vpop.f32.mrf.mxu0
    %v438 = vpop.f32.mrf.mxu0
    %v439 = vadd.f32 0.0, %v438
    %v440 = vpop.f32.mrf.mxu0
    %441 = vmatprep.mubr.bf16.mxu0 0
    %442 = vmatmul.mubr.bf16.gmra.mxu0 %v239
    %v443 = vpop.f32.mrf.mxu0
    %v444 = vadd.f32 0.0, %v443
    %v445 = vpop.f32.mrf.mxu0
    %v446 = vpop.f32.mrf.mxu0
    %v447 = vadd.f32 0.0, %v446
    %v448 = vpop.f32.mrf.mxu0
    %449 = vmatprep.mubr.bf16.mxu0 0
    %450 = vmatmul.mubr.bf16.gmra.mxu0 %v242
    %v451 = vpop.f32.mrf.mxu0
    %v452 = vadd.f32 0.0, %v451
    %v453 = vpop.f32.mrf.mxu0
    %v454 = vpop.f32.mrf.mxu0
    %v455 = vadd.f32 0.0, %v454
    %v456 = vpop.f32.mrf.mxu0
    %457 = vmatprep.mubr.bf16.mxu0 0
    %458 = vmatmul.mubr.bf16.gmra.mxu0 %v245
    %v459 = vpop.f32.mrf.mxu0
    %v460 = vadd.f32 0.0, %v459
    %v461 = vpop.f32.mrf.mxu0
    %v462 = vpop.f32.mrf.mxu0
    %v463 = vadd.f32 0.0, %v462
    %v464 = vpop.f32.mrf.mxu0
    %465 = vmatprep.mubr.bf16.mxu0 0
    %466 = vmatmul.mubr.bf16.gmra.mxu0 %v248
    %v467 = vpop.f32.mrf.mxu0
    %v468 = vadd.f32 0.0, %v467
    %v469 = vpop.f32.mrf.mxu0
    %v470 = vpop.f32.mrf.mxu0
    %v471 = vadd.f32 0.0, %v470
    %v472 = vpop.f32.mrf.mxu0
    %473 = vmatprep.mubr.bf16.mxu0 0
    %474 = vmatmul.mubr.bf16.gmra.mxu0 %v251
    %v475 = vpop.f32.mrf.mxu0
    %v476 = vadd.f32 0.0, %v475
    %v477 = vpop.f32.mrf.mxu0
    %v478 = vpop.f32.mrf.mxu0
    %v479 = vadd.f32 0.0, %v478
    %v480 = vpop.f32.mrf.mxu0
    %481 = vmatprep.mubr.bf16.mxu0 0
    %482 = vmatmul.mubr.bf16.gmra.mxu0 %v254
    %v483 = vpop.f32.mrf.mxu0
    %v484 = vadd.f32 0.0, %v483
    %v485 = vpop.f32.mrf.mxu0
    %v486 = vpop.f32.mrf.mxu0
    %v487 = vadd.f32 0.0, %v486
    %v488 = vpop.f32.mrf.mxu0
    %489 = vmatprep.mubr.bf16.mxu0 0
    %490 = vmatmul.mubr.bf16.gmra.mxu0 %v257
    %v491 = vpop.f32.mrf.mxu0
    %v492 = vadd.f32 0.0, %v491
    %v493 = vpop.f32.mrf.mxu0
    %v494 = vpop.f32.mrf.mxu0
    %v495 = vadd.f32 0.0, %v494
    %v496 = vpop.f32.mrf.mxu0
    %497 = vmatprep.mubr.bf16.mxu0 0
    %498 = vmatmul.mubr.bf16.gmra.mxu0 %v260
    %v499 = vpop.f32.mrf.mxu0
    %v500 = vadd.f32 0.0, %v499
    %v501 = vpop.f32.mrf.mxu0
    %v502 = vpop.f32.mrf.mxu0
    %v503 = vadd.f32 0.0, %v502
    %v504 = vpop.f32.mrf.mxu0
    %505 = vmatprep.mubr.bf16.mxu0 0
    %506 = vmatmul.mubr.bf16.gmra.mxu0 %v263
    %v507 = vpop.f32.mrf.mxu0
    %v508 = vadd.f32 0.0, %v507
    %v509 = vpop.f32.mrf.mxu0
    %v510 = vpop.f32.mrf.mxu0
    %v511 = vadd.f32 0.0, %v510
    %v512 = vpop.f32.mrf.mxu0
    %513 = vmatprep.mubr.bf16.mxu0 0
    %514 = vmatmul.mubr.bf16.gmra.mxu0 %v266
    %v515 = vpop.f32.mrf.mxu0
    %v516 = vadd.f32 0.0, %v515
    %v517 = vpop.f32.mrf.mxu0
    %v518 = vpop.f32.mrf.mxu0
    %v519 = vadd.f32 0.0, %v518
    %v520 = vpop.f32.mrf.mxu0
    %521 = vmatprep.mubr.bf16.mxu0 0
    %522 = vmatmul.mubr.bf16.gmra.mxu0 %v269
    %v523 = vpop.f32.mrf.mxu0
    %v524 = vadd.f32 0.0, %v523
    %v525 = vpop.f32.mrf.mxu0
    %v526 = vpop.f32.mrf.mxu0
    %v527 = vadd.f32 0.0, %v526
    %v528 = vpop.f32.mrf.mxu0
    %529 = vmatprep.mubr.bf16.mxu0 0
    %530 = vmatmul.mubr.bf16.gmra.mxu0 %v272
    %v531 = vpop.f32.mrf.mxu0
    %v532 = vadd.f32 0.0, %v531
    %v533 = vpop.f32.mrf.mxu0
    %v534 = vpop.f32.mrf.mxu0
    %v535 = vadd.f32 0.0, %v534
    %v536 = vpop.f32.mrf.mxu0
    %537 = vmatprep.mubr.bf16.mxu0 0
    %538 = vmatmul.mubr.bf16.gmra.mxu0 %v275
    %v539 = vpop.f32.mrf.mxu0
    %v540 = vadd.f32 0.0, %v539
    %v541 = vpop.f32.mrf.mxu0
    %v542 = vpop.f32.mrf.mxu0
    %v543 = vadd.f32 0.0, %v542
    %v544 = vpop.f32.mrf.mxu0
    %545 = vmatprep.mubr.bf16.mxu0 0
    %546 = vmatmul.mubr.bf16.gmra.mxu0 %v278
    %v547 = vpop.f32.mrf.mxu0
    %v548 = vadd.f32 0.0, %v547
    %v549 = vpop.f32.mrf.mxu0
    %v550 = vpop.f32.mrf.mxu0
    %v551 = vadd.f32 0.0, %v550
    %v552 = vpop.f32.mrf.mxu0
    %553 = vmatprep.mubr.bf16.mxu0 0
    %554 = vmatmul.mubr.bf16.gmra.mxu0 %v281
    %v555 = vpop.f32.mrf.mxu0
    %v556 = vadd.f32 0.0, %v555
    %v557 = vpop.f32.mrf.mxu0
    %v558 = vpop.f32.mrf.mxu0
    %v559 = vadd.f32 0.0, %v558
    %v560 = vpop.f32.mrf.mxu0
    %561 = vmatprep.mubr.bf16.mxu0 0
    %562 = vmatmul.mubr.bf16.gmra.mxu0 %v284
    %v563 = vpop.f32.mrf.mxu0
    %v564 = vadd.f32 0.0, %v563
    %v565 = vpop.f32.mrf.mxu0
    %v566 = vpop.f32.mrf.mxu0
    %v567 = vadd.f32 0.0, %v566
    %v568 = vpop.f32.mrf.mxu0
    %569 = vmatprep.mubr.bf16.mxu0 0
    %570 = vmatmul.mubr.bf16.gmra.mxu0 %v287
    %v571 = vpop.f32.mrf.mxu0
    %v572 = vadd.f32 0.0, %v571
    %v573 = vpop.f32.mrf.mxu0
    %v574 = vpop.f32.mrf.mxu0
    %v575 = vadd.f32 0.0, %v574
    %v576 = vpop.f32.mrf.mxu0
    %577 = vdwg.mxu0
    %v578 = vld [vmem:[%s2] sm:$0x1]
    %v580 = vlaneseq
    %v581 = vshrl.u32 %v580, 7
    %v582 = vsub.s32 0, %v581
    %v583 = vrot.slane %v578, %v582
    %v585 = vadd.f32 %v324, %v583
    %v586 = vadd.f32 %v327, %v583
    %v587 = vadd.f32 %v332, %v583
    %v588 = vadd.f32 %v335, %v583
    %v589 = vadd.f32 %v340, %v583
    %v590 = vadd.f32 %v343, %v583
    %v591 = vadd.f32 %v348, %v583
    %v592 = vadd.f32 %v351, %v583
    %v593 = vadd.f32 %v356, %v583
    %v594 = vadd.f32 %v359, %v583
    %v595 = vadd.f32 %v364, %v583
    %v596 = vadd.f32 %v367, %v583
    %v597 = vadd.f32 %v372, %v583
    %v598 = vadd.f32 %v375, %v583
    %v599 = vadd.f32 %v380, %v583
    %v600 = vadd.f32 %v383, %v583
    %v601 = vadd.f32 %v388, %v583
    %v602 = vadd.f32 %v391, %v583
    %v603 = vadd.f32 %v396, %v583
    %v604 = vadd.f32 %v399, %v583
    %v605 = vadd.f32 %v404, %v583
    %v606 = vadd.f32 %v407, %v583
    %v607 = vadd.f32 %v412, %v583
    %v608 = vadd.f32 %v415, %v583
    %v609 = vadd.f32 %v420, %v583
    %v610 = vadd.f32 %v423, %v583
    %v611 = vadd.f32 %v428, %v583
    %v612 = vadd.f32 %v431, %v583
    %v613 = vadd.f32 %v436, %v583
    %v614 = vadd.f32 %v439, %v583
    %v615 = vadd.f32 %v444, %v583
    %v616 = vadd.f32 %v447, %v583
    %v617 = vadd.f32 %v452, %v583
    %v618 = vadd.f32 %v455, %v583
    %v619 = vadd.f32 %v460, %v583
    %v620 = vadd.f32 %v463, %v583
    %v621 = vadd.f32 %v468, %v583
    %v622 = vadd.f32 %v471, %v583
    %v623 = vadd.f32 %v476, %v583
    %v624 = vadd.f32 %v479, %v583
    %v625 = vadd.f32 %v484, %v583
    %v626 = vadd.f32 %v487, %v583
    %v627 = vadd.f32 %v492, %v583
    %v628 = vadd.f32 %v495, %v583
    %v629 = vadd.f32 %v500, %v583
    %v630 = vadd.f32 %v503, %v583
    %v631 = vadd.f32 %v508, %v583
    %v632 = vadd.f32 %v511, %v583
    %v633 = vadd.f32 %v516, %v583
    %v634 = vadd.f32 %v519, %v583
    %v635 = vadd.f32 %v524, %v583
    %v636 = vadd.f32 %v527, %v583
    %v637 = vadd.f32 %v532, %v583
    %v638 = vadd.f32 %v535, %v583
    %v639 = vadd.f32 %v540, %v583
    %v640 = vadd.f32 %v543, %v583
    %v641 = vadd.f32 %v548, %v583
    %v642 = vadd.f32 %v551, %v583
    %v643 = vadd.f32 %v556, %v583
    %v644 = vadd.f32 %v559, %v583
    %v645 = vadd.f32 %v564, %v583
    %v646 = vadd.f32 %v567, %v583
    %v647 = vadd.f32 %v572, %v583
    %v648 = vadd.f32 %v575, %v583
    %v649 = vmax.f32 %v585, 0.0
    %v650 = vmax.f32 %v586, 0.0
    %v651 = vmax.f32 %v587, 0.0
    %v652 = vmax.f32 %v588, 0.0
    %v653 = vmax.f32 %v589, 0.0
    %v654 = vmax.f32 %v590, 0.0
    %v655 = vmax.f32 %v591, 0.0
    %v656 = vmax.f32 %v592, 0.0
    %v657 = vmax.f32 %v593, 0.0
    %v658 = vmax.f32 %v594, 0.0
    %v659 = vmax.f32 %v595, 0.0
    %v660 = vmax.f32 %v596, 0.0
    %v661 = vmax.f32 %v597, 0.0
    %v662 = vmax.f32 %v598, 0.0
    %v663 = vmax.f32 %v599, 0.0
    %v664 = vmax.f32 %v600, 0.0
    %v665 = vmax.f32 %v601, 0.0
    %v666 = vmax.f32 %v602, 0.0
    %v667 = vmax.f32 %v603, 0.0
    %v668 = vmax.f32 %v604, 0.0
    %v669 = vmax.f32 %v605, 0.0
    %v670 = vmax.f32 %v606, 0.0
    %v671 = vmax.f32 %v607, 0.0
    %v672 = vmax.f32 %v608, 0.0
    %v673 = vmax.f32 %v609, 0.0
    %v674 = vmax.f32 %v610, 0.0
    %v675 = vmax.f32 %v611, 0.0
    %v676 = vmax.f32 %v612, 0.0
    %v677 = vmax.f32 %v613, 0.0
    %v678 = vmax.f32 %v614, 0.0
    %v679 = vmax.f32 %v615, 0.0
    %v680 = vmax.f32 %v616, 0.0
    %v681 = vmax.f32 %v617, 0.0
    %v682 = vmax.f32 %v618, 0.0
    %v683 = vmax.f32 %v619, 0.0
    %v684 = vmax.f32 %v620, 0.0
    %v685 = vmax.f32 %v621, 0.0
    %v686 = vmax.f32 %v622, 0.0
    %v687 = vmax.f32 %v623, 0.0
    %v688 = vmax.f32 %v624, 0.0
    %v689 = vmax.f32 %v625, 0.0
    %v690 = vmax.f32 %v626, 0.0
    %v691 = vmax.f32 %v627, 0.0
    %v692 = vmax.f32 %v628, 0.0
    %v693 = vmax.f32 %v629, 0.0
    %v694 = vmax.f32 %v630, 0.0
    %v695 = vmax.f32 %v631, 0.0
    %v696 = vmax.f32 %v632, 0.0
    %v697 = vmax.f32 %v633, 0.0
    %v698 = vmax.f32 %v634, 0.0
    %v699 = vmax.f32 %v635, 0.0
    %v700 = vmax.f32 %v636, 0.0
    %v701 = vmax.f32 %v637, 0.0
    %v702 = vmax.f32 %v638, 0.0
    %v703 = vmax.f32 %v639, 0.0
    %v704 = vmax.f32 %v640, 0.0
    %v705 = vmax.f32 %v641, 0.0
    %v706 = vmax.f32 %v642, 0.0
    %v707 = vmax.f32 %v643, 0.0
    %v708 = vmax.f32 %v644, 0.0
    %v709 = vmax.f32 %v645, 0.0
    %v710 = vmax.f32 %v646, 0.0
    %v711 = vmax.f32 %v647, 0.0
    %v712 = vmax.f32 %v648, 0.0
    %vm713 = vcmask 130048
    %714 = vst.msk [vmem:[#allocation2] sm:$0xff] %vm713, 0.0
    %715 = vst.msk [vmem:[#allocation2 + $0x8] sm:$0xff] %vm713, 0.0
    %716 = vst.msk [vmem:[#allocation2 + $0x10] sm:$0xff] %vm713, 0.0
    %717 = vst.msk [vmem:[#allocation2 + $0x18] sm:$0xff] %vm713, 0.0
    %718 = vst.msk [vmem:[#allocation2 + $0x240] sm:$0xff] %vm713, 0.0
    %719 = vst.msk [vmem:[#allocation2 + $0x248] sm:$0xff] %vm713, 0.0
    %720 = vst.msk [vmem:[#allocation2 + $0x250] sm:$0xff] %vm713, 0.0
    %721 = vst.msk [vmem:[#allocation2 + $0x258] sm:$0xff] %vm713, 0.0
    %s722 = scalar_lea.vmem [#allocation2], 544
    %723 = vst.msk [vmem:[%s722] sm:$0xff] %vm713, 0.0
    %724 = vst.msk [vmem:[%s722 + $0x8] sm:$0xff] %vm713, 0.0
    %725 = vst.msk [vmem:[%s722 + $0x10] sm:$0xff] %vm713, 0.0
    %726 = vst.msk [vmem:[%s722 + $0x18] sm:$0xff] %vm713, 0.0
    %727 = vst.msk [vmem:[%s722 + $0x240] sm:$0xff] %vm713, 0.0
    %728 = vst.msk [vmem:[%s722 + $0x248] sm:$0xff] %vm713, 0.0
    %729 = vst.msk [vmem:[%s722 + $0x250] sm:$0xff] %vm713, 0.0
    %730 = vst.msk [vmem:[%s722 + $0x258] sm:$0xff] %vm713, 0.0
    %s731 = scalar_lea.vmem [#allocation2], 32
    %732 = vst.msk [vmem:[%s731] sm:$0xff] %vm713, 0.0
    %733 = vst.msk [vmem:[%s731 + $0x20] sm:$0xff] %vm713, 0.0
    %734 = vst.msk [vmem:[%s731 + $0x40] sm:$0xff] %vm713, 0.0
    %735 = vst.msk [vmem:[%s731 + $0x60] sm:$0xff] %vm713, 0.0
    %736 = vst.msk [vmem:[%s731 + $0x80] sm:$0xff] %vm713, 0.0
    %737 = vst.msk [vmem:[%s731 + $0xa0] sm:$0xff] %vm713, 0.0
    %738 = vst.msk [vmem:[%s731 + $0xc0] sm:$0xff] %vm713, 0.0
    %739 = vst.msk [vmem:[%s731 + $0xe0] sm:$0xff] %vm713, 0.0
    %740 = vst.msk [vmem:[%s731 + $0x100] sm:$0xff] %vm713, 0.0
    %741 = vst.msk [vmem:[%s731 + $0x120] sm:$0xff] %vm713, 0.0
    %742 = vst.msk [vmem:[%s731 + $0x140] sm:$0xff] %vm713, 0.0
    %743 = vst.msk [vmem:[%s731 + $0x160] sm:$0xff] %vm713, 0.0
    %744 = vst.msk [vmem:[%s731 + $0x180] sm:$0xff] %vm713, 0.0
    %745 = vst.msk [vmem:[%s731 + $0x1a0] sm:$0xff] %vm713, 0.0
    %746 = vst.msk [vmem:[%s731 + $0x1c0] sm:$0xff] %vm713, 0.0
    %747 = vst.msk [vmem:[%s731 + $0x1e0] sm:$0xff] %vm713, 0.0
    %748 = vst.msk [vmem:[%s731 + $0x240] sm:$0xff] %vm713, 0.0
    %749 = vst.msk [vmem:[%s731 + $0x260] sm:$0xff] %vm713, 0.0
    %750 = vst.msk [vmem:[%s731 + $0x280] sm:$0xff] %vm713, 0.0
    %751 = vst.msk [vmem:[%s731 + $0x2a0] sm:$0xff] %vm713, 0.0
    %752 = vst.msk [vmem:[%s731 + $0x2c0] sm:$0xff] %vm713, 0.0
    %753 = vst.msk [vmem:[%s731 + $0x2e0] sm:$0xff] %vm713, 0.0
    %754 = vst.msk [vmem:[%s731 + $0x300] sm:$0xff] %vm713, 0.0
    %755 = vst.msk [vmem:[%s731 + $0x320] sm:$0xff] %vm713, 0.0
    %756 = vst.msk [vmem:[%s731 + $0x340] sm:$0xff] %vm713, 0.0
    %757 = vst.msk [vmem:[%s731 + $0x360] sm:$0xff] %vm713, 0.0
    %758 = vst.msk [vmem:[%s731 + $0x380] sm:$0xff] %vm713, 0.0
    %759 = vst.msk [vmem:[%s731 + $0x3a0] sm:$0xff] %vm713, 0.0
    %760 = vst.msk [vmem:[%s731 + $0x3c0] sm:$0xff] %vm713, 0.0
    %761 = vst.msk [vmem:[%s731 + $0x3e0] sm:$0xff] %vm713, 0.0
    %762 = vst.msk [vmem:[%s731 + $0x400] sm:$0xff] %vm713, 0.0
    %763 = vst.msk [vmem:[%s731 + $0x420] sm:$0xff] %vm713, 0.0
    %764 = vst.msk [vmem:[%s731 + $0x18] sm:$0xff] %vm713, 0.0
    %765 = vst.msk [vmem:[%s731 + $0x38] sm:$0xff] %vm713, 0.0
    %766 = vst.msk [vmem:[%s731 + $0x58] sm:$0xff] %vm713, 0.0
    %767 = vst.msk [vmem:[%s731 + $0x78] sm:$0xff] %vm713, 0.0
    %768 = vst.msk [vmem:[%s731 + $0x98] sm:$0xff] %vm713, 0.0
    %769 = vst.msk [vmem:[%s731 + $0xb8] sm:$0xff] %vm713, 0.0
    %770 = vst.msk [vmem:[%s731 + $0xd8] sm:$0xff] %vm713, 0.0
    %771 = vst.msk [vmem:[%s731 + $0xf8] sm:$0xff] %vm713, 0.0
    %772 = vst.msk [vmem:[%s731 + $0x118] sm:$0xff] %vm713, 0.0
    %773 = vst.msk [vmem:[%s731 + $0x138] sm:$0xff] %vm713, 0.0
    %774 = vst.msk [vmem:[%s731 + $0x158] sm:$0xff] %vm713, 0.0
    %775 = vst.msk [vmem:[%s731 + $0x178] sm:$0xff] %vm713, 0.0
    %776 = vst.msk [vmem:[%s731 + $0x198] sm:$0xff] %vm713, 0.0
    %777 = vst.msk [vmem:[%s731 + $0x1b8] sm:$0xff] %vm713, 0.0
    %778 = vst.msk [vmem:[%s731 + $0x1d8] sm:$0xff] %vm713, 0.0
    %779 = vst.msk [vmem:[%s731 + $0x1f8] sm:$0xff] %vm713, 0.0
    %780 = vst.msk [vmem:[%s731 + $0x258] sm:$0xff] %vm713, 0.0
    %781 = vst.msk [vmem:[%s731 + $0x278] sm:$0xff] %vm713, 0.0
    %782 = vst.msk [vmem:[%s731 + $0x298] sm:$0xff] %vm713, 0.0
    %783 = vst.msk [vmem:[%s731 + $0x2b8] sm:$0xff] %vm713, 0.0
    %784 = vst.msk [vmem:[%s731 + $0x2d8] sm:$0xff] %vm713, 0.0
    %785 = vst.msk [vmem:[%s731 + $0x2f8] sm:$0xff] %vm713, 0.0
    %786 = vst.msk [vmem:[%s731 + $0x318] sm:$0xff] %vm713, 0.0
    %787 = vst.msk [vmem:[%s731 + $0x338] sm:$0xff] %vm713, 0.0
    %788 = vst.msk [vmem:[%s731 + $0x358] sm:$0xff] %vm713, 0.0
    %789 = vst.msk [vmem:[%s731 + $0x378] sm:$0xff] %vm713, 0.0
    %790 = vst.msk [vmem:[%s731 + $0x398] sm:$0xff] %vm713, 0.0
    %791 = vst.msk [vmem:[%s731 + $0x3b8] sm:$0xff] %vm713, 0.0
    %792 = vst.msk [vmem:[%s731 + $0x3d8] sm:$0xff] %vm713, 0.0
    %793 = vst.msk [vmem:[%s731 + $0x3f8] sm:$0xff] %vm713, 0.0
    %794 = vst.msk [vmem:[%s731 + $0x418] sm:$0xff] %vm713, 0.0
    %795 = vst.msk [vmem:[%s731 + $0x438] sm:$0xff] %vm713, 0.0
    %796 = vst.msk [vmem:[%s731 + $0x8] sm:$0xff] %vm713, %v649
    %797 = vst.msk [vmem:[%s731 + $0x10] sm:$0xff] %vm713, %v650
    %798 = vst.msk [vmem:[%s731 + $0x28] sm:$0xff] %vm713, %v651
    %799 = vst.msk [vmem:[%s731 + $0x30] sm:$0xff] %vm713, %v652
    %800 = vst.msk [vmem:[%s731 + $0x48] sm:$0xff] %vm713, %v653
    %801 = vst.msk [vmem:[%s731 + $0x50] sm:$0xff] %vm713, %v654
    %802 = vst.msk [vmem:[%s731 + $0x68] sm:$0xff] %vm713, %v655
    %803 = vst.msk [vmem:[%s731 + $0x70] sm:$0xff] %vm713, %v656
    %804 = vst.msk [vmem:[%s731 + $0x88] sm:$0xff] %vm713, %v657
    %805 = vst.msk [vmem:[%s731 + $0x90] sm:$0xff] %vm713, %v658
    %806 = vst.msk [vmem:[%s731 + $0xa8] sm:$0xff] %vm713, %v659
    %807 = vst.msk [vmem:[%s731 + $0xb0] sm:$0xff] %vm713, %v660
    %808 = vst.msk [vmem:[%s731 + $0xc8] sm:$0xff] %vm713, %v661
    %809 = vst.msk [vmem:[%s731 + $0xd0] sm:$0xff] %vm713, %v662
    %810 = vst.msk [vmem:[%s731 + $0xe8] sm:$0xff] %vm713, %v663
    %811 = vst.msk [vmem:[%s731 + $0xf0] sm:$0xff] %vm713, %v664
    %812 = vst.msk [vmem:[%s731 + $0x108] sm:$0xff] %vm713, %v665
    %813 = vst.msk [vmem:[%s731 + $0x110] sm:$0xff] %vm713, %v666
    %814 = vst.msk [vmem:[%s731 + $0x128] sm:$0xff] %vm713, %v667
    %815 = vst.msk [vmem:[%s731 + $0x130] sm:$0xff] %vm713, %v668
    %816 = vst.msk [vmem:[%s731 + $0x148] sm:$0xff] %vm713, %v669
    %817 = vst.msk [vmem:[%s731 + $0x150] sm:$0xff] %vm713, %v670
    %818 = vst.msk [vmem:[%s731 + $0x168] sm:$0xff] %vm713, %v671
    %819 = vst.msk [vmem:[%s731 + $0x170] sm:$0xff] %vm713, %v672
    %820 = vst.msk [vmem:[%s731 + $0x188] sm:$0xff] %vm713, %v673
    %821 = vst.msk [vmem:[%s731 + $0x190] sm:$0xff] %vm713, %v674
    %822 = vst.msk [vmem:[%s731 + $0x1a8] sm:$0xff] %vm713, %v675
    %823 = vst.msk [vmem:[%s731 + $0x1b0] sm:$0xff] %vm713, %v676
    %824 = vst.msk [vmem:[%s731 + $0x1c8] sm:$0xff] %vm713, %v677
    %825 = vst.msk [vmem:[%s731 + $0x1d0] sm:$0xff] %vm713, %v678
    %826 = vst.msk [vmem:[%s731 + $0x1e8] sm:$0xff] %vm713, %v679
    %827 = vst.msk [vmem:[%s731 + $0x1f0] sm:$0xff] %vm713, %v680
    %828 = vst.msk [vmem:[%s731 + $0x248] sm:$0xff] %vm713, %v681
    %829 = vst.msk [vmem:[%s731 + $0x250] sm:$0xff] %vm713, %v682
    %830 = vst.msk [vmem:[%s731 + $0x268] sm:$0xff] %vm713, %v683
    %831 = vst.msk [vmem:[%s731 + $0x270] sm:$0xff] %vm713, %v684
    %832 = vst.msk [vmem:[%s731 + $0x288] sm:$0xff] %vm713, %v685
    %833 = vst.msk [vmem:[%s731 + $0x290] sm:$0xff] %vm713, %v686
    %834 = vst.msk [vmem:[%s731 + $0x2a8] sm:$0xff] %vm713, %v687
    %835 = vst.msk [vmem:[%s731 + $0x2b0] sm:$0xff] %vm713, %v688
    %836 = vst.msk [vmem:[%s731 + $0x2c8] sm:$0xff] %vm713, %v689
    %837 = vst.msk [vmem:[%s731 + $0x2d0] sm:$0xff] %vm713, %v690
    %838 = vst.msk [vmem:[%s731 + $0x2e8] sm:$0xff] %vm713, %v691
    %839 = vst.msk [vmem:[%s731 + $0x2f0] sm:$0xff] %vm713, %v692
    %840 = vst.msk [vmem:[%s731 + $0x308] sm:$0xff] %vm713, %v693
    %841 = vst.msk [vmem:[%s731 + $0x310] sm:$0xff] %vm713, %v694
    %842 = vst.msk [vmem:[%s731 + $0x328] sm:$0xff] %vm713, %v695
    %843 = vst.msk [vmem:[%s731 + $0x330] sm:$0xff] %vm713, %v696
    %844 = vst.msk [vmem:[%s731 + $0x348] sm:$0xff] %vm713, %v697
    %845 = vst.msk [vmem:[%s731 + $0x350] sm:$0xff] %vm713, %v698
    %846 = vst.msk [vmem:[%s731 + $0x368] sm:$0xff] %vm713, %v699
    %847 = vst.msk [vmem:[%s731 + $0x370] sm:$0xff] %vm713, %v700
    %848 = vst.msk [vmem:[%s731 + $0x388] sm:$0xff] %vm713, %v701
    %849 = vst.msk [vmem:[%s731 + $0x390] sm:$0xff] %vm713, %v702
    %850 = vst.msk [vmem:[%s731 + $0x3a8] sm:$0xff] %vm713, %v703
    %851 = vst.msk [vmem:[%s731 + $0x3b0] sm:$0xff] %vm713, %v704
    %852 = vst.msk [vmem:[%s731 + $0x3c8] sm:$0xff] %vm713, %v705
    %853 = vst.msk [vmem:[%s731 + $0x3d0] sm:$0xff] %vm713, %v706
    %854 = vst.msk [vmem:[%s731 + $0x3e8] sm:$0xff] %vm713, %v707
    %855 = vst.msk [vmem:[%s731 + $0x3f0] sm:$0xff] %vm713, %v708
    %856 = vst.msk [vmem:[%s731 + $0x408] sm:$0xff] %vm713, %v709
    %857 = vst.msk [vmem:[%s731 + $0x410] sm:$0xff] %vm713, %v710
    %858 = vst.msk [vmem:[%s731 + $0x428] sm:$0xff] %vm713, %v711
    %859 = vst.msk [vmem:[%s731 + $0x430] sm:$0xff] %vm713, %v712
    %v860 = vld [vmem:[#allocation8] sm:$0xff]
    %v861 = vld [vmem:[#allocation8 + $0x8] sm:$0x1]
    %v862 = vld [vmem:[#allocation2] sm:$0xff]
    %v863 = vld [vmem:[#allocation2 + $0x8] sm:$0xff]
    %v864 = vld [vmem:[#allocation2 + $0x10] sm:$0xff]
    %v865 = vld [vmem:[#allocation2 + $0x18] sm:$0xff]
    %v866 = vld [vmem:[#allocation2 + $0x20] sm:$0xff]
    %v867 = vld [vmem:[#allocation2 + $0x28] sm:$0xff]
    %v868 = vld [vmem:[#allocation2 + $0x30] sm:$0xff]
    %v869 = vld [vmem:[#allocation2 + $0x38] sm:$0xff]
    %v870 = vld [vmem:[#allocation2 + $0x40] sm:$0xff]
    %v871 = vld [vmem:[#allocation2 + $0x48] sm:$0xff]
    %v872 = vld [vmem:[#allocation2 + $0x50] sm:$0xff]
    %v873 = vld [vmem:[#allocation2 + $0x58] sm:$0xff]
    %v874 = vld [vmem:[#allocation2 + $0x60] sm:$0xff]
    %v875 = vld [vmem:[#allocation2 + $0x68] sm:$0xff]
    %v876 = vld [vmem:[#allocation2 + $0x70] sm:$0xff]
    %v877 = vld [vmem:[#allocation2 + $0x78] sm:$0xff]
    %v878 = vld [vmem:[#allocation2 + $0x80] sm:$0xff]
    %v879 = vld [vmem:[#allocation2 + $0x88] sm:$0xff]
    %v880 = vld [vmem:[#allocation2 + $0x90] sm:$0xff]
    %v881 = vld [vmem:[#allocation2 + $0x98] sm:$0xff]
    %v882 = vld [vmem:[#allocation2 + $0xa0] sm:$0xff]
    %v883 = vld [vmem:[#allocation2 + $0xa8] sm:$0xff]
    %v884 = vld [vmem:[#allocation2 + $0xb0] sm:$0xff]
    %v885 = vld [vmem:[#allocation2 + $0xb8] sm:$0xff]
    %v886 = vld [vmem:[#allocation2 + $0xc0] sm:$0xff]
    %v887 = vld [vmem:[#allocation2 + $0xc8] sm:$0xff]
    %v888 = vld [vmem:[#allocation2 + $0xd0] sm:$0xff]
    %v889 = vld [vmem:[#allocation2 + $0xd8] sm:$0xff]
    %v890 = vld [vmem:[#allocation2 + $0xe0] sm:$0xff]
    %v891 = vld [vmem:[#allocation2 + $0xe8] sm:$0xff]
    %v892 = vld [vmem:[#allocation2 + $0xf0] sm:$0xff]
    %v893 = vld [vmem:[#allocation2 + $0xf8] sm:$0xff]
    %v894 = vld [vmem:[#allocation2 + $0x100] sm:$0xff]
    %v895 = vld [vmem:[#allocation2 + $0x108] sm:$0xff]
    %v896 = vld [vmem:[#allocation2 + $0x110] sm:$0xff]
    %v897 = vld [vmem:[#allocation2 + $0x118] sm:$0xff]
    %v898 = vld [vmem:[#allocation2 + $0x120] sm:$0xff]
    %v899 = vld [vmem:[#allocation2 + $0x128] sm:$0xff]
    %v900 = vld [vmem:[#allocation2 + $0x130] sm:$0xff]
    %v901 = vld [vmem:[#allocation2 + $0x138] sm:$0xff]
    %v902 = vld [vmem:[#allocation2 + $0x140] sm:$0xff]
    %v903 = vld [vmem:[#allocation2 + $0x148] sm:$0xff]
    %v904 = vld [vmem:[#allocation2 + $0x150] sm:$0xff]
    %v905 = vld [vmem:[#allocation2 + $0x158] sm:$0xff]
    %v906 = vld [vmem:[#allocation2 + $0x160] sm:$0xff]
    %v907 = vld [vmem:[#allocation2 + $0x168] sm:$0xff]
    %v908 = vld [vmem:[#allocation2 + $0x170] sm:$0xff]
    %v909 = vld [vmem:[#allocation2 + $0x178] sm:$0xff]
    %v910 = vld [vmem:[#allocation2 + $0x180] sm:$0xff]
    %v911 = vld [vmem:[#allocation2 + $0x188] sm:$0xff]
    %v912 = vld [vmem:[#allocation2 + $0x190] sm:$0xff]
    %v913 = vld [vmem:[#allocation2 + $0x198] sm:$0xff]
    %v914 = vld [vmem:[#allocation2 + $0x1a0] sm:$0xff]
    %v915 = vld [vmem:[#allocation2 + $0x1a8] sm:$0xff]
    %v916 = vld [vmem:[#allocation2 + $0x1b0] sm:$0xff]
    %v917 = vld [vmem:[#allocation2 + $0x1b8] sm:$0xff]
    %v918 = vld [vmem:[#allocation2 + $0x1c0] sm:$0xff]
    %v919 = vld [vmem:[#allocation2 + $0x1c8] sm:$0xff]
    %v920 = vld [vmem:[#allocation2 + $0x1d0] sm:$0xff]
    %v921 = vld [vmem:[#allocation2 + $0x1d8] sm:$0xff]
    %v922 = vld [vmem:[#allocation2 + $0x1e0] sm:$0xff]
    %v923 = vld [vmem:[#allocation2 + $0x1e8] sm:$0xff]
    %v924 = vld [vmem:[#allocation2 + $0x1f0] sm:$0xff]
    %v925 = vld [vmem:[#allocation2 + $0x1f8] sm:$0xff]
    %v926 = vld [vmem:[#allocation2 + $0x240] sm:$0xff]
    %v927 = vld [vmem:[#allocation2 + $0x248] sm:$0xff]
    %v928 = vld [vmem:[#allocation2 + $0x250] sm:$0xff]
    %v929 = vld [vmem:[#allocation2 + $0x258] sm:$0xff]
    %v930 = vld [vmem:[#allocation2 + $0x260] sm:$0xff]
    %v931 = vld [vmem:[#allocation2 + $0x268] sm:$0xff]
    %v932 = vld [vmem:[#allocation2 + $0x270] sm:$0xff]
    %v933 = vld [vmem:[#allocation2 + $0x278] sm:$0xff]
    %v934 = vld [vmem:[#allocation2 + $0x280] sm:$0xff]
    %v935 = vld [vmem:[#allocation2 + $0x288] sm:$0xff]
    %v936 = vld [vmem:[#allocation2 + $0x290] sm:$0xff]
    %v937 = vld [vmem:[#allocation2 + $0x298] sm:$0xff]
    %v938 = vld [vmem:[#allocation2 + $0x2a0] sm:$0xff]
    %v939 = vld [vmem:[#allocation2 + $0x2a8] sm:$0xff]
    %v940 = vld [vmem:[#allocation2 + $0x2b0] sm:$0xff]
    %v941 = vld [vmem:[#allocation2 + $0x2b8] sm:$0xff]
    %v942 = vld [vmem:[#allocation2 + $0x2c0] sm:$0xff]
    %v943 = vld [vmem:[#allocation2 + $0x2c8] sm:$0xff]
    %v944 = vld [vmem:[#allocation2 + $0x2d0] sm:$0xff]
    %v945 = vld [vmem:[#allocation2 + $0x2d8] sm:$0xff]
    %v946 = vld [vmem:[#allocation2 + $0x2e0] sm:$0xff]
    %v947 = vld [vmem:[#allocation2 + $0x2e8] sm:$0xff]
    %v948 = vld [vmem:[#allocation2 + $0x2f0] sm:$0xff]
    %v949 = vld [vmem:[#allocation2 + $0x2f8] sm:$0xff]
    %v950 = vld [vmem:[#allocation2 + $0x300] sm:$0xff]
    %v951 = vld [vmem:[#allocation2 + $0x308] sm:$0xff]
    %v952 = vld [vmem:[#allocation2 + $0x310] sm:$0xff]
    %v953 = vld [vmem:[#allocation2 + $0x318] sm:$0xff]
    %v954 = vld [vmem:[#allocation2 + $0x320] sm:$0xff]
    %v955 = vld [vmem:[#allocation2 + $0x328] sm:$0xff]
    %v956 = vld [vmem:[#allocation2 + $0x330] sm:$0xff]
    %v957 = vld [vmem:[#allocation2 + $0x338] sm:$0xff]
    %v958 = vld [vmem:[#allocation2 + $0x340] sm:$0xff]
    %v959 = vld [vmem:[#allocation2 + $0x348] sm:$0xff]
    %v960 = vld [vmem:[#allocation2 + $0x350] sm:$0xff]
    %v961 = vld [vmem:[#allocation2 + $0x358] sm:$0xff]
    %v962 = vld [vmem:[#allocation2 + $0x360] sm:$0xff]
    %v963 = vld [vmem:[#allocation2 + $0x368] sm:$0xff]
    %v964 = vld [vmem:[#allocation2 + $0x370] sm:$0xff]
    %v965 = vld [vmem:[#allocation2 + $0x378] sm:$0xff]
    %v966 = vld [vmem:[#allocation2 + $0x380] sm:$0xff]
    %v967 = vld [vmem:[#allocation2 + $0x388] sm:$0xff]
    %v968 = vld [vmem:[#allocation2 + $0x390] sm:$0xff]
    %v969 = vld [vmem:[#allocation2 + $0x398] sm:$0xff]
    %v970 = vld [vmem:[#allocation2 + $0x3a0] sm:$0xff]
    %v971 = vld [vmem:[#allocation2 + $0x3a8] sm:$0xff]
    %v972 = vld [vmem:[#allocation2 + $0x3b0] sm:$0xff]
    %v973 = vld [vmem:[#allocation2 + $0x3b8] sm:$0xff]
    %v974 = vld [vmem:[#allocation2 + $0x3c0] sm:$0xff]
    %v975 = vld [vmem:[#allocation2 + $0x3c8] sm:$0xff]
    %v976 = vld [vmem:[#allocation2 + $0x3d0] sm:$0xff]
    %v977 = vld [vmem:[#allocation2 + $0x3d8] sm:$0xff]
    %v978 = vld [vmem:[#allocation2 + $0x3e0] sm:$0xff]
    %v979 = vld [vmem:[#allocation2 + $0x3e8] sm:$0xff]
    %v980 = vld [vmem:[#allocation2 + $0x3f0] sm:$0xff]
    %v981 = vld [vmem:[#allocation2 + $0x3f8] sm:$0xff]
    %v982 = vld [vmem:[#allocation2 + $0x400] sm:$0xff]
    %v983 = vld [vmem:[#allocation2 + $0x408] sm:$0xff]
    %v984 = vld [vmem:[#allocation2 + $0x410] sm:$0xff]
    %v985 = vld [vmem:[#allocation2 + $0x418] sm:$0xff]
    %v986 = vld [vmem:[#allocation2 + $0x420] sm:$0xff]
    %v987 = vld [vmem:[#allocation2 + $0x428] sm:$0xff]
    %v988 = vld [vmem:[#allocation2 + $0x430] sm:$0xff]
    %v989 = vld [vmem:[#allocation2 + $0x438] sm:$0xff]
    %v990 = vlaneseq
    %v991 = vshrl.u32 %v990, 7
    %v992 = vsub.s32 0, %v991
    %v993 = vrot.slane %v860, %v992
    %v994 = vmul.f32 %v862, %v993
    %v995 = vmul.f32 %v863, %v993
    %v996 = vmul.f32 %v864, %v993
    %v997 = vmul.f32 %v866, %v993
    %v998 = vmul.f32 %v867, %v993
    %v999 = vmul.f32 %v868, %v993
    %v1000 = vmul.f32 %v870, %v993
    %v1001 = vmul.f32 %v871, %v993
    %v1002 = vmul.f32 %v872, %v993
    %v1003 = vmul.f32 %v874, %v993
    %v1004 = vmul.f32 %v875, %v993
    %v1005 = vmul.f32 %v876, %v993
    %v1006 = vmul.f32 %v878, %v993
    %v1007 = vmul.f32 %v879, %v993
    %v1008 = vmul.f32 %v880, %v993
    %v1009 = vmul.f32 %v882, %v993
    %v1010 = vmul.f32 %v883, %v993
    %v1011 = vmul.f32 %v884, %v993
    %v1012 = vmul.f32 %v886, %v993
    %v1013 = vmul.f32 %v887, %v993
    %v1014 = vmul.f32 %v888, %v993
    %v1015 = vmul.f32 %v890, %v993
    %v1016 = vmul.f32 %v891, %v993
    %v1017 = vmul.f32 %v892, %v993
    %v1018 = vmul.f32 %v894, %v993
    %v1019 = vmul.f32 %v895, %v993
    %v1020 = vmul.f32 %v896, %v993
    %v1021 = vmul.f32 %v898, %v993
    %v1022 = vmul.f32 %v899, %v993
    %v1023 = vmul.f32 %v900, %v993
    %v1024 = vmul.f32 %v902, %v993
    %v1025 = vmul.f32 %v903, %v993
    %v1026 = vmul.f32 %v904, %v993
    %v1027 = vmul.f32 %v906, %v993
    %v1028 = vmul.f32 %v907, %v993
    %v1029 = vmul.f32 %v908, %v993
    %v1030 = vmul.f32 %v910, %v993
    %v1031 = vmul.f32 %v911, %v993
    %v1032 = vmul.f32 %v912, %v993
    %v1033 = vmul.f32 %v914, %v993
    %v1034 = vmul.f32 %v915, %v993
    %v1035 = vmul.f32 %v916, %v993
    %v1036 = vmul.f32 %v918, %v993
    %v1037 = vmul.f32 %v919, %v993
    %v1038 = vmul.f32 %v920, %v993
    %v1039 = vmul.f32 %v922, %v993
    %v1040 = vmul.f32 %v923, %v993
    %v1041 = vmul.f32 %v924, %v993
    %v1042 = vmul.f32 %v926, %v993
    %v1043 = vmul.f32 %v927, %v993
    %v1044 = vmul.f32 %v928, %v993
    %v1045 = vmul.f32 %v930, %v993
    %v1046 = vmul.f32 %v931, %v993
    %v1047 = vmul.f32 %v932, %v993
    %v1048 = vmul.f32 %v934, %v993
    %v1049 = vmul.f32 %v935, %v993
    %v1050 = vmul.f32 %v936, %v993
    %v1051 = vmul.f32 %v938, %v993
    %v1052 = vmul.f32 %v939, %v993
    %v1053 = vmul.f32 %v940, %v993
    %v1054 = vmul.f32 %v942, %v993
    %v1055 = vmul.f32 %v943, %v993
    %v1056 = vmul.f32 %v944, %v993
    %v1057 = vmul.f32 %v946, %v993
    %v1058 = vmul.f32 %v947, %v993
    %v1059 = vmul.f32 %v948, %v993
    %v1060 = vmul.f32 %v950, %v993
    %v1061 = vmul.f32 %v951, %v993
    %v1062 = vmul.f32 %v952, %v993
    %v1063 = vmul.f32 %v954, %v993
    %v1064 = vmul.f32 %v955, %v993
    %v1065 = vmul.f32 %v956, %v993
    %v1066 = vmul.f32 %v958, %v993
    %v1067 = vmul.f32 %v959, %v993
    %v1068 = vmul.f32 %v960, %v993
    %v1069 = vmul.f32 %v962, %v993
    %v1070 = vmul.f32 %v963, %v993
    %v1071 = vmul.f32 %v964, %v993
    %v1072 = vmul.f32 %v966, %v993
    %v1073 = vmul.f32 %v967, %v993
    %v1074 = vmul.f32 %v968, %v993
    %v1075 = vmul.f32 %v970, %v993
    %v1076 = vmul.f32 %v971, %v993
    %v1077 = vmul.f32 %v972, %v993
    %v1078 = vmul.f32 %v974, %v993
    %v1079 = vmul.f32 %v975, %v993
    %v1080 = vmul.f32 %v976, %v993
    %v1081 = vmul.f32 %v978, %v993
    %v1082 = vmul.f32 %v979, %v993
    %v1083 = vmul.f32 %v980, %v993
    %v1084 = vmul.f32 %v982, %v993
    %v1085 = vmul.f32 %v983, %v993
    %v1086 = vmul.f32 %v984, %v993
    %v1087 = vmul.f32 %v986, %v993
    %v1088 = vmul.f32 %v987, %v993
    %v1089 = vmul.f32 %v988, %v993
    %v1090 = vadd.f32 %v994, 0.0
    %v1091 = vadd.f32 %v995, 0.0
    %v1092 = vadd.f32 %v996, 0.0
    %v1093 = vadd.f32 %v997, 0.0
    %v1094 = vadd.f32 %v998, 0.0
    %v1095 = vadd.f32 %v999, 0.0
    %v1096 = vadd.f32 %v1000, 0.0
    %v1097 = vadd.f32 %v1001, 0.0
    %v1098 = vadd.f32 %v1002, 0.0
    %v1099 = vadd.f32 %v1003, 0.0
    %v1100 = vadd.f32 %v1004, 0.0
    %v1101 = vadd.f32 %v1005, 0.0
    %v1102 = vadd.f32 %v1006, 0.0
    %v1103 = vadd.f32 %v1007, 0.0
    %v1104 = vadd.f32 %v1008, 0.0
    %v1105 = vadd.f32 %v1009, 0.0
    %v1106 = vadd.f32 %v1010, 0.0
    %v1107 = vadd.f32 %v1011, 0.0
    %v1108 = vadd.f32 %v1012, 0.0
    %v1109 = vadd.f32 %v1013, 0.0
    %v1110 = vadd.f32 %v1014, 0.0
    %v1111 = vadd.f32 %v1015, 0.0
    %v1112 = vadd.f32 %v1016, 0.0
    %v1113 = vadd.f32 %v1017, 0.0
    %v1114 = vadd.f32 %v1018, 0.0
    %v1115 = vadd.f32 %v1019, 0.0
    %v1116 = vadd.f32 %v1020, 0.0
    %v1117 = vadd.f32 %v1021, 0.0
    %v1118 = vadd.f32 %v1022, 0.0
    %v1119 = vadd.f32 %v1023, 0.0
    %v1120 = vadd.f32 %v1024, 0.0
    %v1121 = vadd.f32 %v1025, 0.0
    %v1122 = vadd.f32 %v1026, 0.0
    %v1123 = vadd.f32 %v1027, 0.0
    %v1124 = vadd.f32 %v1028, 0.0
    %v1125 = vadd.f32 %v1029, 0.0
    %v1126 = vadd.f32 %v1030, 0.0
    %v1127 = vadd.f32 %v1031, 0.0
    %v1128 = vadd.f32 %v1032, 0.0
    %v1129 = vadd.f32 %v1033, 0.0
    %v1130 = vadd.f32 %v1034, 0.0
    %v1131 = vadd.f32 %v1035, 0.0
    %v1132 = vadd.f32 %v1036, 0.0
    %v1133 = vadd.f32 %v1037, 0.0
    %v1134 = vadd.f32 %v1038, 0.0
    %v1135 = vadd.f32 %v1039, 0.0
    %v1136 = vadd.f32 %v1040, 0.0
    %v1137 = vadd.f32 %v1041, 0.0
    %v1138 = vadd.f32 %v1042, 0.0
    %v1139 = vadd.f32 %v1043, 0.0
    %v1140 = vadd.f32 %v1044, 0.0
    %v1141 = vadd.f32 %v1045, 0.0
    %v1142 = vadd.f32 %v1046, 0.0
    %v1143 = vadd.f32 %v1047, 0.0
    %v1144 = vadd.f32 %v1048, 0.0
    %v1145 = vadd.f32 %v1049, 0.0
    %v1146 = vadd.f32 %v1050, 0.0
    %v1147 = vadd.f32 %v1051, 0.0
    %v1148 = vadd.f32 %v1052, 0.0
    %v1149 = vadd.f32 %v1053, 0.0
    %v1150 = vadd.f32 %v1054, 0.0
    %v1151 = vadd.f32 %v1055, 0.0
    %v1152 = vadd.f32 %v1056, 0.0
    %v1153 = vadd.f32 %v1057, 0.0
    %v1154 = vadd.f32 %v1058, 0.0
    %v1155 = vadd.f32 %v1059, 0.0
    %v1156 = vadd.f32 %v1060, 0.0
    %v1157 = vadd.f32 %v1061, 0.0
    %v1158 = vadd.f32 %v1062, 0.0
    %v1159 = vadd.f32 %v1063, 0.0
    %v1160 = vadd.f32 %v1064, 0.0
    %v1161 = vadd.f32 %v1065, 0.0
    %v1162 = vadd.f32 %v1066, 0.0
    %v1163 = vadd.f32 %v1067, 0.0
    %v1164 = vadd.f32 %v1068, 0.0
    %v1165 = vadd.f32 %v1069, 0.0
    %v1166 = vadd.f32 %v1070, 0.0
    %v1167 = vadd.f32 %v1071, 0.0
    %v1168 = vadd.f32 %v1072, 0.0
    %v1169 = vadd.f32 %v1073, 0.0
    %v1170 = vadd.f32 %v1074, 0.0
    %v1171 = vadd.f32 %v1075, 0.0
    %v1172 = vadd.f32 %v1076, 0.0
    %v1173 = vadd.f32 %v1077, 0.0
    %v1174 = vadd.f32 %v1078, 0.0
    %v1175 = vadd.f32 %v1079, 0.0
    %v1176 = vadd.f32 %v1080, 0.0
    %v1177 = vadd.f32 %v1081, 0.0
    %v1178 = vadd.f32 %v1082, 0.0
    %v1179 = vadd.f32 %v1083, 0.0
    %v1180 = vadd.f32 %v1084, 0.0
    %v1181 = vadd.f32 %v1085, 0.0
    %v1182 = vadd.f32 %v1086, 0.0
    %v1183 = vadd.f32 %v1087, 0.0
    %v1184 = vadd.f32 %v1088, 0.0
    %v1185 = vadd.f32 %v1089, 0.0
    %v1186 = vlaneseq
    %v1187 = vshrl.u32 %v1186, 7
    %v1188 = vsub.s32 1, %v1187
    %v1189 = vrot.slane %v860, %v1188
    %v1190 = vmul.f32 %v863, %v1189
    %v1191 = vmul.f32 %v864, %v1189
    %v1192 = vmul.f32 %v867, %v1189
    %v1193 = vmul.f32 %v868, %v1189
    %v1194 = vmul.f32 %v871, %v1189
    %v1195 = vmul.f32 %v872, %v1189
    %v1196 = vmul.f32 %v875, %v1189
    %v1197 = vmul.f32 %v876, %v1189
    %v1198 = vmul.f32 %v879, %v1189
    %v1199 = vmul.f32 %v880, %v1189
    %v1200 = vmul.f32 %v883, %v1189
    %v1201 = vmul.f32 %v884, %v1189
    %v1202 = vmul.f32 %v887, %v1189
    %v1203 = vmul.f32 %v888, %v1189
    %v1204 = vmul.f32 %v891, %v1189
    %v1205 = vmul.f32 %v892, %v1189
    %v1206 = vmul.f32 %v895, %v1189
    %v1207 = vmul.f32 %v896, %v1189
    %v1208 = vmul.f32 %v899, %v1189
    %v1209 = vmul.f32 %v900, %v1189
    %v1210 = vmul.f32 %v903, %v1189
    %v1211 = vmul.f32 %v904, %v1189
    %v1212 = vmul.f32 %v907, %v1189
    %v1213 = vmul.f32 %v908, %v1189
    %v1214 = vmul.f32 %v911, %v1189
    %v1215 = vmul.f32 %v912, %v1189
    %v1216 = vmul.f32 %v915, %v1189
    %v1217 = vmul.f32 %v916, %v1189
    %v1218 = vmul.f32 %v919, %v1189
    %v1219 = vmul.f32 %v920, %v1189
    %v1220 = vmul.f32 %v923, %v1189
    %v1221 = vmul.f32 %v924, %v1189
    %v1222 = vmul.f32 %v927, %v1189
    %v1223 = vmul.f32 %v928, %v1189
    %v1224 = vmul.f32 %v931, %v1189
    %v1225 = vmul.f32 %v932, %v1189
    %v1226 = vmul.f32 %v935, %v1189
    %v1227 = vmul.f32 %v936, %v1189
    %v1228 = vmul.f32 %v939, %v1189
    %v1229 = vmul.f32 %v940, %v1189
    %v1230 = vmul.f32 %v943, %v1189
    %v1231 = vmul.f32 %v944, %v1189
    %v1232 = vmul.f32 %v947, %v1189
    %v1233 = vmul.f32 %v948, %v1189
    %v1234 = vmul.f32 %v951, %v1189
    %v1235 = vmul.f32 %v952, %v1189
    %v1236 = vmul.f32 %v955, %v1189
    %v1237 = vmul.f32 %v956, %v1189
    %v1238 = vmul.f32 %v959, %v1189
    %v1239 = vmul.f32 %v960, %v1189
    %v1240 = vmul.f32 %v963, %v1189
    %v1241 = vmul.f32 %v964, %v1189
    %v1242 = vmul.f32 %v967, %v1189
    %v1243 = vmul.f32 %v968, %v1189
    %v1244 = vmul.f32 %v971, %v1189
    %v1245 = vmul.f32 %v972, %v1189
    %v1246 = vmul.f32 %v975, %v1189
    %v1247 = vmul.f32 %v976, %v1189
    %v1248 = vmul.f32 %v979, %v1189
    %v1249 = vmul.f32 %v980, %v1189
    %v1250 = vmul.f32 %v983, %v1189
    %v1251 = vmul.f32 %v984, %v1189
    %v1252 = vmul.f32 %v987, %v1189
    %v1253 = vmul.f32 %v988, %v1189
    %vm1318 = vcmask 1046528
    %v1319 = vrot.slane %v1190, 1
    %v1320 = vrot.slane %v1191, 1
    %v1321 = vsel %vm1318, %v1319, %v1320
    %v1322 = vrot.slane %v1192, 1
    %v1323 = vrot.slane %v1193, 1
    %v1324 = vsel %vm1318, %v1322, %v1323
    %v1325 = vrot.slane %v1194, 1
    %v1326 = vrot.slane %v1195, 1
    %v1327 = vsel %vm1318, %v1325, %v1326
    %v1328 = vrot.slane %v1196, 1
    %v1329 = vrot.slane %v1197, 1
    %v1330 = vsel %vm1318, %v1328, %v1329
    %v1331 = vrot.slane %v1198, 1
    %v1332 = vrot.slane %v1199, 1
    %v1333 = vsel %vm1318, %v1331, %v1332
    %v1334 = vrot.slane %v1200, 1
    %v1335 = vrot.slane %v1201, 1
    %v1336 = vsel %vm1318, %v1334, %v1335
    %v1337 = vrot.slane %v1202, 1
    %v1338 = vrot.slane %v1203, 1
    %v1339 = vsel %vm1318, %v1337, %v1338
    %v1340 = vrot.slane %v1204, 1
    %v1341 = vrot.slane %v1205, 1
    %v1342 = vsel %vm1318, %v1340, %v1341
    %v1343 = vrot.slane %v1206, 1
    %v1344 = vrot.slane %v1207, 1
    %v1345 = vsel %vm1318, %v1343, %v1344
    %v1346 = vrot.slane %v1208, 1
    %v1347 = vrot.slane %v1209, 1
    %v1348 = vsel %vm1318, %v1346, %v1347
    %v1349 = vrot.slane %v1210, 1
    %v1350 = vrot.slane %v1211, 1
    %v1351 = vsel %vm1318, %v1349, %v1350
    %v1352 = vrot.slane %v1212, 1
    %v1353 = vrot.slane %v1213, 1
    %v1354 = vsel %vm1318, %v1352, %v1353
    %v1355 = vrot.slane %v1214, 1
    %v1356 = vrot.slane %v1215, 1
    %v1357 = vsel %vm1318, %v1355, %v1356
    %v1358 = vrot.slane %v1216, 1
    %v1359 = vrot.slane %v1217, 1
    %v1360 = vsel %vm1318, %v1358, %v1359
    %v1361 = vrot.slane %v1218, 1
    %v1362 = vrot.slane %v1219, 1
    %v1363 = vsel %vm1318, %v1361, %v1362
    %v1364 = vrot.slane %v1220, 1
    %v1365 = vrot.slane %v1221, 1
    %v1366 = vsel %vm1318, %v1364, %v1365
    %v1367 = vrot.slane %v1222, 1
    %v1368 = vrot.slane %v1223, 1
    %v1369 = vsel %vm1318, %v1367, %v1368
    %v1370 = vrot.slane %v1224, 1
    %v1371 = vrot.slane %v1225, 1
    %v1372 = vsel %vm1318, %v1370, %v1371
    %v1373 = vrot.slane %v1226, 1
    %v1374 = vrot.slane %v1227, 1
    %v1375 = vsel %vm1318, %v1373, %v1374
    %v1376 = vrot.slane %v1228, 1
    %v1377 = vrot.slane %v1229, 1
    %v1378 = vsel %vm1318, %v1376, %v1377
    %v1379 = vrot.slane %v1230, 1
    %v1380 = vrot.slane %v1231, 1
    %v1381 = vsel %vm1318, %v1379, %v1380
    %v1382 = vrot.slane %v1232, 1
    %v1383 = vrot.slane %v1233, 1
    %v1384 = vsel %vm1318, %v1382, %v1383
    %v1385 = vrot.slane %v1234, 1
    %v1386 = vrot.slane %v1235, 1
    %v1387 = vsel %vm1318, %v1385, %v1386
    %v1388 = vrot.slane %v1236, 1
    %v1389 = vrot.slane %v1237, 1
    %v1390 = vsel %vm1318, %v1388, %v1389
    %v1391 = vrot.slane %v1238, 1
    %v1392 = vrot.slane %v1239, 1
    %v1393 = vsel %vm1318, %v1391, %v1392
    %v1394 = vrot.slane %v1240, 1
    %v1395 = vrot.slane %v1241, 1
    %v1396 = vsel %vm1318, %v1394, %v1395
    %v1397 = vrot.slane %v1242, 1
    %v1398 = vrot.slane %v1243, 1
    %v1399 = vsel %vm1318, %v1397, %v1398
    %v1400 = vrot.slane %v1244, 1
    %v1401 = vrot.slane %v1245, 1
    %v1402 = vsel %vm1318, %v1400, %v1401
    %v1403 = vrot.slane %v1246, 1
    %v1404 = vrot.slane %v1247, 1
    %v1405 = vsel %vm1318, %v1403, %v1404
    %v1406 = vrot.slane %v1248, 1
    %v1407 = vrot.slane %v1249, 1
    %v1408 = vsel %vm1318, %v1406, %v1407
    %v1409 = vrot.slane %v1250, 1
    %v1410 = vrot.slane %v1251, 1
    %v1411 = vsel %vm1318, %v1409, %v1410
    %v1412 = vrot.slane %v1252, 1
    %v1413 = vrot.slane %v1253, 1
    %v1414 = vsel %vm1318, %v1412, %v1413
    %v1511 = vadd.f32 %v1090, %v1319
    %v1512 = vadd.f32 %v1091, %v1321
    %v1513 = vadd.f32 %v1092, %v1320
    %v1514 = vadd.f32 %v1093, %v1322
    %v1515 = vadd.f32 %v1094, %v1324
    %v1516 = vadd.f32 %v1095, %v1323
    %v1517 = vadd.f32 %v1096, %v1325
    %v1518 = vadd.f32 %v1097, %v1327
    %v1519 = vadd.f32 %v1098, %v1326
    %v1520 = vadd.f32 %v1099, %v1328
    %v1521 = vadd.f32 %v1100, %v1330
    %v1522 = vadd.f32 %v1101, %v1329
    %v1523 = vadd.f32 %v1102, %v1331
    %v1524 = vadd.f32 %v1103, %v1333
    %v1525 = vadd.f32 %v1104, %v1332
    %v1526 = vadd.f32 %v1105, %v1334
    %v1527 = vadd.f32 %v1106, %v1336
    %v1528 = vadd.f32 %v1107, %v1335
    %v1529 = vadd.f32 %v1108, %v1337
    %v1530 = vadd.f32 %v1109, %v1339
    %v1531 = vadd.f32 %v1110, %v1338
    %v1532 = vadd.f32 %v1111, %v1340
    %v1533 = vadd.f32 %v1112, %v1342
    %v1534 = vadd.f32 %v1113, %v1341
    %v1535 = vadd.f32 %v1114, %v1343
    %v1536 = vadd.f32 %v1115, %v1345
    %v1537 = vadd.f32 %v1116, %v1344
    %v1538 = vadd.f32 %v1117, %v1346
    %v1539 = vadd.f32 %v1118, %v1348
    %v1540 = vadd.f32 %v1119, %v1347
    %v1541 = vadd.f32 %v1120, %v1349
    %v1542 = vadd.f32 %v1121, %v1351
    %v1543 = vadd.f32 %v1122, %v1350
    %v1544 = vadd.f32 %v1123, %v1352
    %v1545 = vadd.f32 %v1124, %v1354
    %v1546 = vadd.f32 %v1125, %v1353
    %v1547 = vadd.f32 %v1126, %v1355
    %v1548 = vadd.f32 %v1127, %v1357
    %v1549 = vadd.f32 %v1128, %v1356
    %v1550 = vadd.f32 %v1129, %v1358
    %v1551 = vadd.f32 %v1130, %v1360
    %v1552 = vadd.f32 %v1131, %v1359
    %v1553 = vadd.f32 %v1132, %v1361
    %v1554 = vadd.f32 %v1133, %v1363
    %v1555 = vadd.f32 %v1134, %v1362
    %v1556 = vadd.f32 %v1135, %v1364
    %v1557 = vadd.f32 %v1136, %v1366
    %v1558 = vadd.f32 %v1137, %v1365
    %v1559 = vadd.f32 %v1138, %v1367
    %v1560 = vadd.f32 %v1139, %v1369
    %v1561 = vadd.f32 %v1140, %v1368
    %v1562 = vadd.f32 %v1141, %v1370
    %v1563 = vadd.f32 %v1142, %v1372
    %v1564 = vadd.f32 %v1143, %v1371
    %v1565 = vadd.f32 %v1144, %v1373
    %v1566 = vadd.f32 %v1145, %v1375
    %v1567 = vadd.f32 %v1146, %v1374
    %v1568 = vadd.f32 %v1147, %v1376
    %v1569 = vadd.f32 %v1148, %v1378
    %v1570 = vadd.f32 %v1149, %v1377
    %v1571 = vadd.f32 %v1150, %v1379
    %v1572 = vadd.f32 %v1151, %v1381
    %v1573 = vadd.f32 %v1152, %v1380
    %v1574 = vadd.f32 %v1153, %v1382
    %v1575 = vadd.f32 %v1154, %v1384
    %v1576 = vadd.f32 %v1155, %v1383
    %v1577 = vadd.f32 %v1156, %v1385
    %v1578 = vadd.f32 %v1157, %v1387
    %v1579 = vadd.f32 %v1158, %v1386
    %v1580 = vadd.f32 %v1159, %v1388
    %v1581 = vadd.f32 %v1160, %v1390
    %v1582 = vadd.f32 %v1161, %v1389
    %v1583 = vadd.f32 %v1162, %v1391
    %v1584 = vadd.f32 %v1163, %v1393
    %v1585 = vadd.f32 %v1164, %v1392
    %v1586 = vadd.f32 %v1165, %v1394
    %v1587 = vadd.f32 %v1166, %v1396
    %v1588 = vadd.f32 %v1167, %v1395
    %v1589 = vadd.f32 %v1168, %v1397
    %v1590 = vadd.f32 %v1169, %v1399
    %v1591 = vadd.f32 %v1170, %v1398
    %v1592 = vadd.f32 %v1171, %v1400
    %v1593 = vadd.f32 %v1172, %v1402
    %v1594 = vadd.f32 %v1173, %v1401
    %v1595 = vadd.f32 %v1174, %v1403
    %v1596 = vadd.f32 %v1175, %v1405
    %v1597 = vadd.f32 %v1176, %v1404
    %v1598 = vadd.f32 %v1177, %v1406
    %v1599 = vadd.f32 %v1178, %v1408
    %v1600 = vadd.f32 %v1179, %v1407
    %v1601 = vadd.f32 %v1180, %v1409
    %v1602 = vadd.f32 %v1181, %v1411
    %v1603 = vadd.f32 %v1182, %v1410
    %v1604 = vadd.f32 %v1183, %v1412
    %v1605 = vadd.f32 %v1184, %v1414
    %v1606 = vadd.f32 %v1185, %v1413
    %v1607 = vlaneseq
    %v1608 = vshrl.u32 %v1607, 7
    %v1609 = vsub.s32 2, %v1608
    %v1610 = vrot.slane %v860, %v1609
    %v1611 = vmul.f32 %v863, %v1610
    %v1612 = vmul.f32 %v864, %v1610
    %v1613 = vmul.f32 %v865, %v1610
    %v1614 = vmul.f32 %v867, %v1610
    %v1615 = vmul.f32 %v868, %v1610
    %v1616 = vmul.f32 %v869, %v1610
    %v1617 = vmul.f32 %v871, %v1610
    %v1618 = vmul.f32 %v872, %v1610
    %v1619 = vmul.f32 %v873, %v1610
    %v1620 = vmul.f32 %v875, %v1610
    %v1621 = vmul.f32 %v876, %v1610
    %v1622 = vmul.f32 %v877, %v1610
    %v1623 = vmul.f32 %v879, %v1610
    %v1624 = vmul.f32 %v880, %v1610
    %v1625 = vmul.f32 %v881, %v1610
    %v1626 = vmul.f32 %v883, %v1610
    %v1627 = vmul.f32 %v884, %v1610
    %v1628 = vmul.f32 %v885, %v1610
    %v1629 = vmul.f32 %v887, %v1610
    %v1630 = vmul.f32 %v888, %v1610
    %v1631 = vmul.f32 %v889, %v1610
    %v1632 = vmul.f32 %v891, %v1610
    %v1633 = vmul.f32 %v892, %v1610
    %v1634 = vmul.f32 %v893, %v1610
    %v1635 = vmul.f32 %v895, %v1610
    %v1636 = vmul.f32 %v896, %v1610
    %v1637 = vmul.f32 %v897, %v1610
    %v1638 = vmul.f32 %v899, %v1610
    %v1639 = vmul.f32 %v900, %v1610
    %v1640 = vmul.f32 %v901, %v1610
    %v1641 = vmul.f32 %v903, %v1610
    %v1642 = vmul.f32 %v904, %v1610
    %v1643 = vmul.f32 %v905, %v1610
    %v1644 = vmul.f32 %v907, %v1610
    %v1645 = vmul.f32 %v908, %v1610
    %v1646 = vmul.f32 %v909, %v1610
    %v1647 = vmul.f32 %v911, %v1610
    %v1648 = vmul.f32 %v912, %v1610
    %v1649 = vmul.f32 %v913, %v1610
    %v1650 = vmul.f32 %v915, %v1610
    %v1651 = vmul.f32 %v916, %v1610
    %v1652 = vmul.f32 %v917, %v1610
    %v1653 = vmul.f32 %v919, %v1610
    %v1654 = vmul.f32 %v920, %v1610
    %v1655 = vmul.f32 %v921, %v1610
    %v1656 = vmul.f32 %v923, %v1610
    %v1657 = vmul.f32 %v924, %v1610
    %v1658 = vmul.f32 %v925, %v1610
    %v1659 = vmul.f32 %v927, %v1610
    %v1660 = vmul.f32 %v928, %v1610
    %v1661 = vmul.f32 %v929, %v1610
    %v1662 = vmul.f32 %v931, %v1610
    %v1663 = vmul.f32 %v932, %v1610
    %v1664 = vmul.f32 %v933, %v1610
    %v1665 = vmul.f32 %v935, %v1610
    %v1666 = vmul.f32 %v936, %v1610
    %v1667 = vmul.f32 %v937, %v1610
    %v1668 = vmul.f32 %v939, %v1610
    %v1669 = vmul.f32 %v940, %v1610
    %v1670 = vmul.f32 %v941, %v1610
    %v1671 = vmul.f32 %v943, %v1610
    %v1672 = vmul.f32 %v944, %v1610
    %v1673 = vmul.f32 %v945, %v1610
    %v1674 = vmul.f32 %v947, %v1610
    %v1675 = vmul.f32 %v948, %v1610
    %v1676 = vmul.f32 %v949, %v1610
    %v1677 = vmul.f32 %v951, %v1610
    %v1678 = vmul.f32 %v952, %v1610
    %v1679 = vmul.f32 %v953, %v1610
    %v1680 = vmul.f32 %v955, %v1610
    %v1681 = vmul.f32 %v956, %v1610
    %v1682 = vmul.f32 %v957, %v1610
    %v1683 = vmul.f32 %v959, %v1610
    %v1684 = vmul.f32 %v960, %v1610
    %v1685 = vmul.f32 %v961, %v1610
    %v1686 = vmul.f32 %v963, %v1610
    %v1687 = vmul.f32 %v964, %v1610
    %v1688 = vmul.f32 %v965, %v1610
    %v1689 = vmul.f32 %v967, %v1610
    %v1690 = vmul.f32 %v968, %v1610
    %v1691 = vmul.f32 %v969, %v1610
    %v1692 = vmul.f32 %v971, %v1610
    %v1693 = vmul.f32 %v972, %v1610
    %v1694 = vmul.f32 %v973, %v1610
    %v1695 = vmul.f32 %v975, %v1610
    %v1696 = vmul.f32 %v976, %v1610
    %v1697 = vmul.f32 %v977, %v1610
    %v1698 = vmul.f32 %v979, %v1610
    %v1699 = vmul.f32 %v980, %v1610
    %v1700 = vmul.f32 %v981, %v1610
    %v1701 = vmul.f32 %v983, %v1610
    %v1702 = vmul.f32 %v984, %v1610
    %v1703 = vmul.f32 %v985, %v1610
    %v1704 = vmul.f32 %v987, %v1610
    %v1705 = vmul.f32 %v988, %v1610
    %v1706 = vmul.f32 %v989, %v1610
    %vm1803 = vcmask 1045504
    %v1804 = vrot.slane %v1611, 2
    %v1805 = vrot.slane %v1612, 2
    %v1806 = vsel %vm1803, %v1804, %v1805
    %v1807 = vrot.slane %v1613, 2
    %v1808 = vsel %vm1803, %v1805, %v1807
    %v1809 = vrot.slane %v1614, 2
    %v1810 = vrot.slane %v1615, 2
    %v1811 = vsel %vm1803, %v1809, %v1810
    %v1812 = vrot.slane %v1616, 2
    %v1813 = vsel %vm1803, %v1810, %v1812
    %v1814 = vrot.slane %v1617, 2
    %v1815 = vrot.slane %v1618, 2
    %v1816 = vsel %vm1803, %v1814, %v1815
    %v1817 = vrot.slane %v1619, 2
    %v1818 = vsel %vm1803, %v1815, %v1817
    %v1819 = vrot.slane %v1620, 2
    %v1820 = vrot.slane %v1621, 2
    %v1821 = vsel %vm1803, %v1819, %v1820
    %v1822 = vrot.slane %v1622, 2
    %v1823 = vsel %vm1803, %v1820, %v1822
    %v1824 = vrot.slane %v1623, 2
    %v1825 = vrot.slane %v1624, 2
    %v1826 = vsel %vm1803, %v1824, %v1825
    %v1827 = vrot.slane %v1625, 2
    %v1828 = vsel %vm1803, %v1825, %v1827
    %v1829 = vrot.slane %v1626, 2
    %v1830 = vrot.slane %v1627, 2
    %v1831 = vsel %vm1803, %v1829, %v1830
    %v1832 = vrot.slane %v1628, 2
    %v1833 = vsel %vm1803, %v1830, %v1832
    %v1834 = vrot.slane %v1629, 2
    %v1835 = vrot.slane %v1630, 2
    %v1836 = vsel %vm1803, %v1834, %v1835
    %v1837 = vrot.slane %v1631, 2
    %v1838 = vsel %vm1803, %v1835, %v1837
    %v1839 = vrot.slane %v1632, 2
    %v1840 = vrot.slane %v1633, 2
    %v1841 = vsel %vm1803, %v1839, %v1840
    %v1842 = vrot.slane %v1634, 2
    %v1843 = vsel %vm1803, %v1840, %v1842
    %v1844 = vrot.slane %v1635, 2
    %v1845 = vrot.slane %v1636, 2
    %v1846 = vsel %vm1803, %v1844, %v1845
    %v1847 = vrot.slane %v1637, 2
    %v1848 = vsel %vm1803, %v1845, %v1847
    %v1849 = vrot.slane %v1638, 2
    %v1850 = vrot.slane %v1639, 2
    %v1851 = vsel %vm1803, %v1849, %v1850
    %v1852 = vrot.slane %v1640, 2
    %v1853 = vsel %vm1803, %v1850, %v1852
    %v1854 = vrot.slane %v1641, 2
    %v1855 = vrot.slane %v1642, 2
    %v1856 = vsel %vm1803, %v1854, %v1855
    %v1857 = vrot.slane %v1643, 2
    %v1858 = vsel %vm1803, %v1855, %v1857
    %v1859 = vrot.slane %v1644, 2
    %v1860 = vrot.slane %v1645, 2
    %v1861 = vsel %vm1803, %v1859, %v1860
    %v1862 = vrot.slane %v1646, 2
    %v1863 = vsel %vm1803, %v1860, %v1862
    %v1864 = vrot.slane %v1647, 2
    %v1865 = vrot.slane %v1648, 2
    %v1866 = vsel %vm1803, %v1864, %v1865
    %v1867 = vrot.slane %v1649, 2
    %v1868 = vsel %vm1803, %v1865, %v1867
    %v1869 = vrot.slane %v1650, 2
    %v1870 = vrot.slane %v1651, 2
    %v1871 = vsel %vm1803, %v1869, %v1870
    %v1872 = vrot.slane %v1652, 2
    %v1873 = vsel %vm1803, %v1870, %v1872
    %v1874 = vrot.slane %v1653, 2
    %v1875 = vrot.slane %v1654, 2
    %v1876 = vsel %vm1803, %v1874, %v1875
    %v1877 = vrot.slane %v1655, 2
    %v1878 = vsel %vm1803, %v1875, %v1877
    %v1879 = vrot.slane %v1656, 2
    %v1880 = vrot.slane %v1657, 2
    %v1881 = vsel %vm1803, %v1879, %v1880
    %v1882 = vrot.slane %v1658, 2
    %v1883 = vsel %vm1803, %v1880, %v1882
    %v1884 = vrot.slane %v1659, 2
    %v1885 = vrot.slane %v1660, 2
    %v1886 = vsel %vm1803, %v1884, %v1885
    %v1887 = vrot.slane %v1661, 2
    %v1888 = vsel %vm1803, %v1885, %v1887
    %v1889 = vrot.slane %v1662, 2
    %v1890 = vrot.slane %v1663, 2
    %v1891 = vsel %vm1803, %v1889, %v1890
    %v1892 = vrot.slane %v1664, 2
    %v1893 = vsel %vm1803, %v1890, %v1892
    %v1894 = vrot.slane %v1665, 2
    %v1895 = vrot.slane %v1666, 2
    %v1896 = vsel %vm1803, %v1894, %v1895
    %v1897 = vrot.slane %v1667, 2
    %v1898 = vsel %vm1803, %v1895, %v1897
    %v1899 = vrot.slane %v1668, 2
    %v1900 = vrot.slane %v1669, 2
    %v1901 = vsel %vm1803, %v1899, %v1900
    %v1902 = vrot.slane %v1670, 2
    %v1903 = vsel %vm1803, %v1900, %v1902
    %v1904 = vrot.slane %v1671, 2
    %v1905 = vrot.slane %v1672, 2
    %v1906 = vsel %vm1803, %v1904, %v1905
    %v1907 = vrot.slane %v1673, 2
    %v1908 = vsel %vm1803, %v1905, %v1907
    %v1909 = vrot.slane %v1674, 2
    %v1910 = vrot.slane %v1675, 2
    %v1911 = vsel %vm1803, %v1909, %v1910
    %v1912 = vrot.slane %v1676, 2
    %v1913 = vsel %vm1803, %v1910, %v1912
    %v1914 = vrot.slane %v1677, 2
    %v1915 = vrot.slane %v1678, 2
    %v1916 = vsel %vm1803, %v1914, %v1915
    %v1917 = vrot.slane %v1679, 2
    %v1918 = vsel %vm1803, %v1915, %v1917
    %v1919 = vrot.slane %v1680, 2
    %v1920 = vrot.slane %v1681, 2
    %v1921 = vsel %vm1803, %v1919, %v1920
    %v1922 = vrot.slane %v1682, 2
    %v1923 = vsel %vm1803, %v1920, %v1922
    %v1924 = vrot.slane %v1683, 2
    %v1925 = vrot.slane %v1684, 2
    %v1926 = vsel %vm1803, %v1924, %v1925
    %v1927 = vrot.slane %v1685, 2
    %v1928 = vsel %vm1803, %v1925, %v1927
    %v1929 = vrot.slane %v1686, 2
    %v1930 = vrot.slane %v1687, 2
    %v1931 = vsel %vm1803, %v1929, %v1930
    %v1932 = vrot.slane %v1688, 2
    %v1933 = vsel %vm1803, %v1930, %v1932
    %v1934 = vrot.slane %v1689, 2
    %v1935 = vrot.slane %v1690, 2
    %v1936 = vsel %vm1803, %v1934, %v1935
    %v1937 = vrot.slane %v1691, 2
    %v1938 = vsel %vm1803, %v1935, %v1937
    %v1939 = vrot.slane %v1692, 2
    %v1940 = vrot.slane %v1693, 2
    %v1941 = vsel %vm1803, %v1939, %v1940
    %v1942 = vrot.slane %v1694, 2
    %v1943 = vsel %vm1803, %v1940, %v1942
    %v1944 = vrot.slane %v1695, 2
    %v1945 = vrot.slane %v1696, 2
    %v1946 = vsel %vm1803, %v1944, %v1945
    %v1947 = vrot.slane %v1697, 2
    %v1948 = vsel %vm1803, %v1945, %v1947
    %v1949 = vrot.slane %v1698, 2
    %v1950 = vrot.slane %v1699, 2
    %v1951 = vsel %vm1803, %v1949, %v1950
    %v1952 = vrot.slane %v1700, 2
    %v1953 = vsel %vm1803, %v1950, %v1952
    %v1954 = vrot.slane %v1701, 2
    %v1955 = vrot.slane %v1702, 2
    %v1956 = vsel %vm1803, %v1954, %v1955
    %v1957 = vrot.slane %v1703, 2
    %v1958 = vsel %vm1803, %v1955, %v1957
    %v1959 = vrot.slane %v1704, 2
    %v1960 = vrot.slane %v1705, 2
    %v1961 = vsel %vm1803, %v1959, %v1960
    %v1962 = vrot.slane %v1706, 2
    %v1963 = vsel %vm1803, %v1960, %v1962
    %v2060 = vadd.f32 %v1511, %v1804
    %v2061 = vadd.f32 %v1512, %v1806
    %v2062 = vadd.f32 %v1513, %v1808
    %v2063 = vadd.f32 %v1514, %v1809
    %v2064 = vadd.f32 %v1515, %v1811
    %v2065 = vadd.f32 %v1516, %v1813
    %v2066 = vadd.f32 %v1517, %v1814
    %v2067 = vadd.f32 %v1518, %v1816
    %v2068 = vadd.f32 %v1519, %v1818
    %v2069 = vadd.f32 %v1520, %v1819
    %v2070 = vadd.f32 %v1521, %v1821
    %v2071 = vadd.f32 %v1522, %v1823
    %v2072 = vadd.f32 %v1523, %v1824
    %v2073 = vadd.f32 %v1524, %v1826
    %v2074 = vadd.f32 %v1525, %v1828
    %v2075 = vadd.f32 %v1526, %v1829
    %v2076 = vadd.f32 %v1527, %v1831
    %v2077 = vadd.f32 %v1528, %v1833
    %v2078 = vadd.f32 %v1529, %v1834
    %v2079 = vadd.f32 %v1530, %v1836
    %v2080 = vadd.f32 %v1531, %v1838
    %v2081 = vadd.f32 %v1532, %v1839
    %v2082 = vadd.f32 %v1533, %v1841
    %v2083 = vadd.f32 %v1534, %v1843
    %v2084 = vadd.f32 %v1535, %v1844
    %v2085 = vadd.f32 %v1536, %v1846
    %v2086 = vadd.f32 %v1537, %v1848
    %v2087 = vadd.f32 %v1538, %v1849
    %v2088 = vadd.f32 %v1539, %v1851
    %v2089 = vadd.f32 %v1540, %v1853
    %v2090 = vadd.f32 %v1541, %v1854
    %v2091 = vadd.f32 %v1542, %v1856
    %v2092 = vadd.f32 %v1543, %v1858
    %v2093 = vadd.f32 %v1544, %v1859
    %v2094 = vadd.f32 %v1545, %v1861
    %v2095 = vadd.f32 %v1546, %v1863
    %v2096 = vadd.f32 %v1547, %v1864
    %v2097 = vadd.f32 %v1548, %v1866
    %v2098 = vadd.f32 %v1549, %v1868
    %v2099 = vadd.f32 %v1550, %v1869
    %v2100 = vadd.f32 %v1551, %v1871
    %v2101 = vadd.f32 %v1552, %v1873
    %v2102 = vadd.f32 %v1553, %v1874
    %v2103 = vadd.f32 %v1554, %v1876
    %v2104 = vadd.f32 %v1555, %v1878
    %v2105 = vadd.f32 %v1556, %v1879
    %v2106 = vadd.f32 %v1557, %v1881
    %v2107 = vadd.f32 %v1558, %v1883
    %v2108 = vadd.f32 %v1559, %v1884
    %v2109 = vadd.f32 %v1560, %v1886
    %v2110 = vadd.f32 %v1561, %v1888
    %v2111 = vadd.f32 %v1562, %v1889
    %v2112 = vadd.f32 %v1563, %v1891
    %v2113 = vadd.f32 %v1564, %v1893
    %v2114 = vadd.f32 %v1565, %v1894
    %v2115 = vadd.f32 %v1566, %v1896
    %v2116 = vadd.f32 %v1567, %v1898
    %v2117 = vadd.f32 %v1568, %v1899
    %v2118 = vadd.f32 %v1569, %v1901
    %v2119 = vadd.f32 %v1570, %v1903
    %v2120 = vadd.f32 %v1571, %v1904
    %v2121 = vadd.f32 %v1572, %v1906
    %v2122 = vadd.f32 %v1573, %v1908
    %v2123 = vadd.f32 %v1574, %v1909
    %v2124 = vadd.f32 %v1575, %v1911
    %v2125 = vadd.f32 %v1576, %v1913
    %v2126 = vadd.f32 %v1577, %v1914
    %v2127 = vadd.f32 %v1578, %v1916
    %v2128 = vadd.f32 %v1579, %v1918
    %v2129 = vadd.f32 %v1580, %v1919
    %v2130 = vadd.f32 %v1581, %v1921
    %v2131 = vadd.f32 %v1582, %v1923
    %v2132 = vadd.f32 %v1583, %v1924
    %v2133 = vadd.f32 %v1584, %v1926
    %v2134 = vadd.f32 %v1585, %v1928
    %v2135 = vadd.f32 %v1586, %v1929
    %v2136 = vadd.f32 %v1587, %v1931
    %v2137 = vadd.f32 %v1588, %v1933
    %v2138 = vadd.f32 %v1589, %v1934
    %v2139 = vadd.f32 %v1590, %v1936
    %v2140 = vadd.f32 %v1591, %v1938
    %v2141 = vadd.f32 %v1592, %v1939
    %v2142 = vadd.f32 %v1593, %v1941
    %v2143 = vadd.f32 %v1594, %v1943
    %v2144 = vadd.f32 %v1595, %v1944
    %v2145 = vadd.f32 %v1596, %v1946
    %v2146 = vadd.f32 %v1597, %v1948
    %v2147 = vadd.f32 %v1598, %v1949
    %v2148 = vadd.f32 %v1599, %v1951
    %v2149 = vadd.f32 %v1600, %v1953
    %v2150 = vadd.f32 %v1601, %v1954
    %v2151 = vadd.f32 %v1602, %v1956
    %v2152 = vadd.f32 %v1603, %v1958
    %v2153 = vadd.f32 %v1604, %v1959
    %v2154 = vadd.f32 %v1605, %v1961
    %v2155 = vadd.f32 %v1606, %v1963
    %v2156 = vld [vmem:[%s731] sm:$0xff]
    %v2157 = vld [vmem:[%s731 + $0x8] sm:$0xff]
    %v2158 = vld [vmem:[%s731 + $0x10] sm:$0xff]
    %v2159 = vld [vmem:[%s731 + $0x18] sm:$0xff]
    %v2160 = vld [vmem:[%s731 + $0x20] sm:$0xff]
    %v2161 = vld [vmem:[%s731 + $0x28] sm:$0xff]
    %v2162 = vld [vmem:[%s731 + $0x30] sm:$0xff]
    %v2163 = vld [vmem:[%s731 + $0x38] sm:$0xff]
    %v2164 = vld [vmem:[%s731 + $0x40] sm:$0xff]
    %v2165 = vld [vmem:[%s731 + $0x48] sm:$0xff]
    %v2166 = vld [vmem:[%s731 + $0x50] sm:$0xff]
    %v2167 = vld [vmem:[%s731 + $0x58] sm:$0xff]
    %v2168 = vld [vmem:[%s731 + $0x60] sm:$0xff]
    %v2169 = vld [vmem:[%s731 + $0x68] sm:$0xff]
    %v2170 = vld [vmem:[%s731 + $0x70] sm:$0xff]
    %v2171 = vld [vmem:[%s731 + $0x78] sm:$0xff]
    %v2172 = vld [vmem:[%s731 + $0x80] sm:$0xff]
    %v2173 = vld [vmem:[%s731 + $0x88] sm:$0xff]
    %v2174 = vld [vmem:[%s731 + $0x90] sm:$0xff]
    %v2175 = vld [vmem:[%s731 + $0x98] sm:$0xff]
    %v2176 = vld [vmem:[%s731 + $0xa0] sm:$0xff]
    %v2177 = vld [vmem:[%s731 + $0xa8] sm:$0xff]
    %v2178 = vld [vmem:[%s731 + $0xb0] sm:$0xff]
    %v2179 = vld [vmem:[%s731 + $0xb8] sm:$0xff]
    %v2180 = vld [vmem:[%s731 + $0xc0] sm:$0xff]
    %v2181 = vld [vmem:[%s731 + $0xc8] sm:$0xff]
    %v2182 = vld [vmem:[%s731 + $0xd0] sm:$0xff]
    %v2183 = vld [vmem:[%s731 + $0xd8] sm:$0xff]
    %v2184 = vld [vmem:[%s731 + $0xe0] sm:$0xff]
    %v2185 = vld [vmem:[%s731 + $0xe8] sm:$0xff]
    %v2186 = vld [vmem:[%s731 + $0xf0] sm:$0xff]
    %v2187 = vld [vmem:[%s731 + $0xf8] sm:$0xff]
    %v2188 = vld [vmem:[%s731 + $0x100] sm:$0xff]
    %v2189 = vld [vmem:[%s731 + $0x108] sm:$0xff]
    %v2190 = vld [vmem:[%s731 + $0x110] sm:$0xff]
    %v2191 = vld [vmem:[%s731 + $0x118] sm:$0xff]
    %v2192 = vld [vmem:[%s731 + $0x120] sm:$0xff]
    %v2193 = vld [vmem:[%s731 + $0x128] sm:$0xff]
    %v2194 = vld [vmem:[%s731 + $0x130] sm:$0xff]
    %v2195 = vld [vmem:[%s731 + $0x138] sm:$0xff]
    %v2196 = vld [vmem:[%s731 + $0x140] sm:$0xff]
    %v2197 = vld [vmem:[%s731 + $0x148] sm:$0xff]
    %v2198 = vld [vmem:[%s731 + $0x150] sm:$0xff]
    %v2199 = vld [vmem:[%s731 + $0x158] sm:$0xff]
    %v2200 = vld [vmem:[%s731 + $0x160] sm:$0xff]
    %v2201 = vld [vmem:[%s731 + $0x168] sm:$0xff]
    %v2202 = vld [vmem:[%s731 + $0x170] sm:$0xff]
    %v2203 = vld [vmem:[%s731 + $0x178] sm:$0xff]
    %v2204 = vld [vmem:[%s731 + $0x180] sm:$0xff]
    %v2205 = vld [vmem:[%s731 + $0x188] sm:$0xff]
    %v2206 = vld [vmem:[%s731 + $0x190] sm:$0xff]
    %v2207 = vld [vmem:[%s731 + $0x198] sm:$0xff]
    %v2208 = vld [vmem:[%s731 + $0x1a0] sm:$0xff]
    %v2209 = vld [vmem:[%s731 + $0x1a8] sm:$0xff]
    %v2210 = vld [vmem:[%s731 + $0x1b0] sm:$0xff]
    %v2211 = vld [vmem:[%s731 + $0x1b8] sm:$0xff]
    %v2212 = vld [vmem:[%s731 + $0x1c0] sm:$0xff]
    %v2213 = vld [vmem:[%s731 + $0x1c8] sm:$0xff]
    %v2214 = vld [vmem:[%s731 + $0x1d0] sm:$0xff]
    %v2215 = vld [vmem:[%s731 + $0x1d8] sm:$0xff]
    %v2216 = vld [vmem:[%s731 + $0x1e0] sm:$0xff]
    %v2217 = vld [vmem:[%s731 + $0x1e8] sm:$0xff]
    %v2218 = vld [vmem:[%s731 + $0x1f0] sm:$0xff]
    %v2219 = vld [vmem:[%s731 + $0x1f8] sm:$0xff]
    %v2220 = vld [vmem:[%s731 + $0x240] sm:$0xff]
    %v2221 = vld [vmem:[%s731 + $0x248] sm:$0xff]
    %v2222 = vld [vmem:[%s731 + $0x250] sm:$0xff]
    %v2223 = vld [vmem:[%s731 + $0x258] sm:$0xff]
    %v2224 = vld [vmem:[%s731 + $0x260] sm:$0xff]
    %v2225 = vld [vmem:[%s731 + $0x268] sm:$0xff]
    %v2226 = vld [vmem:[%s731 + $0x270] sm:$0xff]
    %v2227 = vld [vmem:[%s731 + $0x278] sm:$0xff]
    %v2228 = vld [vmem:[%s731 + $0x280] sm:$0xff]
    %v2229 = vld [vmem:[%s731 + $0x288] sm:$0xff]
    %v2230 = vld [vmem:[%s731 + $0x290] sm:$0xff]
    %v2231 = vld [vmem:[%s731 + $0x298] sm:$0xff]
    %v2232 = vld [vmem:[%s731 + $0x2a0] sm:$0xff]
    %v2233 = vld [vmem:[%s731 + $0x2a8] sm:$0xff]
    %v2234 = vld [vmem:[%s731 + $0x2b0] sm:$0xff]
    %v2235 = vld [vmem:[%s731 + $0x2b8] sm:$0xff]
    %v2236 = vld [vmem:[%s731 + $0x2c0] sm:$0xff]
    %v2237 = vld [vmem:[%s731 + $0x2c8] sm:$0xff]
    %v2238 = vld [vmem:[%s731 + $0x2d0] sm:$0xff]
    %v2239 = vld [vmem:[%s731 + $0x2d8] sm:$0xff]
    %v2240 = vld [vmem:[%s731 + $0x2e0] sm:$0xff]
    %v2241 = vld [vmem:[%s731 + $0x2e8] sm:$0xff]
    %v2242 = vld [vmem:[%s731 + $0x2f0] sm:$0xff]
    %v2243 = vld [vmem:[%s731 + $0x2f8] sm:$0xff]
    %v2244 = vld [vmem:[%s731 + $0x300] sm:$0xff]
    %v2245 = vld [vmem:[%s731 + $0x308] sm:$0xff]
    %v2246 = vld [vmem:[%s731 + $0x310] sm:$0xff]
    %v2247 = vld [vmem:[%s731 + $0x318] sm:$0xff]
    %v2248 = vld [vmem:[%s731 + $0x320] sm:$0xff]
    %v2249 = vld [vmem:[%s731 + $0x328] sm:$0xff]
    %v2250 = vld [vmem:[%s731 + $0x330] sm:$0xff]
    %v2251 = vld [vmem:[%s731 + $0x338] sm:$0xff]
    %v2252 = vld [vmem:[%s731 + $0x340] sm:$0xff]
    %v2253 = vld [vmem:[%s731 + $0x348] sm:$0xff]
    %v2254 = vld [vmem:[%s731 + $0x350] sm:$0xff]
    %v2255 = vld [vmem:[%s731 + $0x358] sm:$0xff]
    %v2256 = vld [vmem:[%s731 + $0x360] sm:$0xff]
    %v2257 = vld [vmem:[%s731 + $0x368] sm:$0xff]
    %v2258 = vld [vmem:[%s731 + $0x370] sm:$0xff]
    %v2259 = vld [vmem:[%s731 + $0x378] sm:$0xff]
    %v2260 = vld [vmem:[%s731 + $0x380] sm:$0xff]
    %v2261 = vld [vmem:[%s731 + $0x388] sm:$0xff]
    %v2262 = vld [vmem:[%s731 + $0x390] sm:$0xff]
    %v2263 = vld [vmem:[%s731 + $0x398] sm:$0xff]
    %v2264 = vld [vmem:[%s731 + $0x3a0] sm:$0xff]
    %v2265 = vld [vmem:[%s731 + $0x3a8] sm:$0xff]
    %v2266 = vld [vmem:[%s731 + $0x3b0] sm:$0xff]
    %v2267 = vld [vmem:[%s731 + $0x3b8] sm:$0xff]
    %v2268 = vld [vmem:[%s731 + $0x3c0] sm:$0xff]
    %v2269 = vld [vmem:[%s731 + $0x3c8] sm:$0xff]
    %v2270 = vld [vmem:[%s731 + $0x3d0] sm:$0xff]
    %v2271 = vld [vmem:[%s731 + $0x3d8] sm:$0xff]
    %v2272 = vld [vmem:[%s731 + $0x3e0] sm:$0xff]
    %v2273 = vld [vmem:[%s731 + $0x3e8] sm:$0xff]
    %v2274 = vld [vmem:[%s731 + $0x3f0] sm:$0xff]
    %v2275 = vld [vmem:[%s731 + $0x3f8] sm:$0xff]
    %v2276 = vld [vmem:[%s731 + $0x400] sm:$0xff]
    %v2277 = vld [vmem:[%s731 + $0x408] sm:$0xff]
    %v2278 = vld [vmem:[%s731 + $0x410] sm:$0xff]
    %v2279 = vld [vmem:[%s731 + $0x418] sm:$0xff]
    %v2280 = vld [vmem:[%s731 + $0x420] sm:$0xff]
    %v2281 = vld [vmem:[%s731 + $0x428] sm:$0xff]
    %v2282 = vld [vmem:[%s731 + $0x430] sm:$0xff]
    %v2283 = vld [vmem:[%s731 + $0x438] sm:$0xff]
    %v2284 = vlaneseq
    %v2285 = vshrl.u32 %v2284, 7
    %v2286 = vsub.s32 3, %v2285
    %v2287 = vrot.slane %v860, %v2286
    %v2288 = vmul.f32 %v2156, %v2287
    %v2289 = vmul.f32 %v2157, %v2287
    %v2290 = vmul.f32 %v2158, %v2287
    %v2291 = vmul.f32 %v2160, %v2287
    %v2292 = vmul.f32 %v2161, %v2287
    %v2293 = vmul.f32 %v2162, %v2287
    %v2294 = vmul.f32 %v2164, %v2287
    %v2295 = vmul.f32 %v2165, %v2287
    %v2296 = vmul.f32 %v2166, %v2287
    %v2297 = vmul.f32 %v2168, %v2287
    %v2298 = vmul.f32 %v2169, %v2287
    %v2299 = vmul.f32 %v2170, %v2287
    %v2300 = vmul.f32 %v2172, %v2287
    %v2301 = vmul.f32 %v2173, %v2287
    %v2302 = vmul.f32 %v2174, %v2287
    %v2303 = vmul.f32 %v2176, %v2287
    %v2304 = vmul.f32 %v2177, %v2287
    %v2305 = vmul.f32 %v2178, %v2287
    %v2306 = vmul.f32 %v2180, %v2287
    %v2307 = vmul.f32 %v2181, %v2287
    %v2308 = vmul.f32 %v2182, %v2287
    %v2309 = vmul.f32 %v2184, %v2287
    %v2310 = vmul.f32 %v2185, %v2287
    %v2311 = vmul.f32 %v2186, %v2287
    %v2312 = vmul.f32 %v2188, %v2287
    %v2313 = vmul.f32 %v2189, %v2287
    %v2314 = vmul.f32 %v2190, %v2287
    %v2315 = vmul.f32 %v2192, %v2287
    %v2316 = vmul.f32 %v2193, %v2287
    %v2317 = vmul.f32 %v2194, %v2287
    %v2318 = vmul.f32 %v2196, %v2287
    %v2319 = vmul.f32 %v2197, %v2287
    %v2320 = vmul.f32 %v2198, %v2287
    %v2321 = vmul.f32 %v2200, %v2287
    %v2322 = vmul.f32 %v2201, %v2287
    %v2323 = vmul.f32 %v2202, %v2287
    %v2324 = vmul.f32 %v2204, %v2287
    %v2325 = vmul.f32 %v2205, %v2287
    %v2326 = vmul.f32 %v2206, %v2287
    %v2327 = vmul.f32 %v2208, %v2287
    %v2328 = vmul.f32 %v2209, %v2287
    %v2329 = vmul.f32 %v2210, %v2287
    %v2330 = vmul.f32 %v2212, %v2287
    %v2331 = vmul.f32 %v2213, %v2287
    %v2332 = vmul.f32 %v2214, %v2287
    %v2333 = vmul.f32 %v2216, %v2287
    %v2334 = vmul.f32 %v2217, %v2287
    %v2335 = vmul.f32 %v2218, %v2287
    %v2336 = vmul.f32 %v2220, %v2287
    %v2337 = vmul.f32 %v2221, %v2287
    %v2338 = vmul.f32 %v2222, %v2287
    %v2339 = vmul.f32 %v2224, %v2287
    %v2340 = vmul.f32 %v2225, %v2287
    %v2341 = vmul.f32 %v2226, %v2287
    %v2342 = vmul.f32 %v2228, %v2287
    %v2343 = vmul.f32 %v2229, %v2287
    %v2344 = vmul.f32 %v2230, %v2287
    %v2345 = vmul.f32 %v2232, %v2287
    %v2346 = vmul.f32 %v2233, %v2287
    %v2347 = vmul.f32 %v2234, %v2287
    %v2348 = vmul.f32 %v2236, %v2287
    %v2349 = vmul.f32 %v2237, %v2287
    %v2350 = vmul.f32 %v2238, %v2287
    %v2351 = vmul.f32 %v2240, %v2287
    %v2352 = vmul.f32 %v2241, %v2287
    %v2353 = vmul.f32 %v2242, %v2287
    %v2354 = vmul.f32 %v2244, %v2287
    %v2355 = vmul.f32 %v2245, %v2287
    %v2356 = vmul.f32 %v2246, %v2287
    %v2357 = vmul.f32 %v2248, %v2287
    %v2358 = vmul.f32 %v2249, %v2287
    %v2359 = vmul.f32 %v2250, %v2287
    %v2360 = vmul.f32 %v2252, %v2287
    %v2361 = vmul.f32 %v2253, %v2287
    %v2362 = vmul.f32 %v2254, %v2287
    %v2363 = vmul.f32 %v2256, %v2287
    %v2364 = vmul.f32 %v2257, %v2287
    %v2365 = vmul.f32 %v2258, %v2287
    %v2366 = vmul.f32 %v2260, %v2287
    %v2367 = vmul.f32 %v2261, %v2287
    %v2368 = vmul.f32 %v2262, %v2287
    %v2369 = vmul.f32 %v2264, %v2287
    %v2370 = vmul.f32 %v2265, %v2287
    %v2371 = vmul.f32 %v2266, %v2287
    %v2372 = vmul.f32 %v2268, %v2287
    %v2373 = vmul.f32 %v2269, %v2287
    %v2374 = vmul.f32 %v2270, %v2287
    %v2375 = vmul.f32 %v2272, %v2287
    %v2376 = vmul.f32 %v2273, %v2287
    %v2377 = vmul.f32 %v2274, %v2287
    %v2378 = vmul.f32 %v2276, %v2287
    %v2379 = vmul.f32 %v2277, %v2287
    %v2380 = vmul.f32 %v2278, %v2287
    %v2381 = vmul.f32 %v2280, %v2287
    %v2382 = vmul.f32 %v2281, %v2287
    %v2383 = vmul.f32 %v2282, %v2287
    %v2384 = vadd.f32 %v2060, %v2288
    %v2385 = vadd.f32 %v2061, %v2289
    %v2386 = vadd.f32 %v2062, %v2290
    %v2387 = vadd.f32 %v2063, %v2291
    %v2388 = vadd.f32 %v2064, %v2292
    %v2389 = vadd.f32 %v2065, %v2293
    %v2390 = vadd.f32 %v2066, %v2294
    %v2391 = vadd.f32 %v2067, %v2295
    %v2392 = vadd.f32 %v2068, %v2296
    %v2393 = vadd.f32 %v2069, %v2297
    %v2394 = vadd.f32 %v2070, %v2298
    %v2395 = vadd.f32 %v2071, %v2299
    %v2396 = vadd.f32 %v2072, %v2300
    %v2397 = vadd.f32 %v2073, %v2301
    %v2398 = vadd.f32 %v2074, %v2302
    %v2399 = vadd.f32 %v2075, %v2303
    %v2400 = vadd.f32 %v2076, %v2304
    %v2401 = vadd.f32 %v2077, %v2305
    %v2402 = vadd.f32 %v2078, %v2306
    %v2403 = vadd.f32 %v2079, %v2307
    %v2404 = vadd.f32 %v2080, %v2308
    %v2405 = vadd.f32 %v2081, %v2309
    %v2406 = vadd.f32 %v2082, %v2310
    %v2407 = vadd.f32 %v2083, %v2311
    %v2408 = vadd.f32 %v2084, %v2312
    %v2409 = vadd.f32 %v2085, %v2313
    %v2410 = vadd.f32 %v2086, %v2314
    %v2411 = vadd.f32 %v2087, %v2315
    %v2412 = vadd.f32 %v2088, %v2316
    %v2413 = vadd.f32 %v2089, %v2317
    %v2414 = vadd.f32 %v2090, %v2318
    %v2415 = vadd.f32 %v2091, %v2319
    %v2416 = vadd.f32 %v2092, %v2320
    %v2417 = vadd.f32 %v2093, %v2321
    %v2418 = vadd.f32 %v2094, %v2322
    %v2419 = vadd.f32 %v2095, %v2323
    %v2420 = vadd.f32 %v2096, %v2324
    %v2421 = vadd.f32 %v2097, %v2325
    %v2422 = vadd.f32 %v2098, %v2326
    %v2423 = vadd.f32 %v2099, %v2327
    %v2424 = vadd.f32 %v2100, %v2328
    %v2425 = vadd.f32 %v2101, %v2329
    %v2426 = vadd.f32 %v2102, %v2330
    %v2427 = vadd.f32 %v2103, %v2331
    %v2428 = vadd.f32 %v2104, %v2332
    %v2429 = vadd.f32 %v2105, %v2333
    %v2430 = vadd.f32 %v2106, %v2334
    %v2431 = vadd.f32 %v2107, %v2335
    %v2432 = vadd.f32 %v2108, %v2336
    %v2433 = vadd.f32 %v2109, %v2337
    %v2434 = vadd.f32 %v2110, %v2338
    %v2435 = vadd.f32 %v2111, %v2339
    %v2436 = vadd.f32 %v2112, %v2340
    %v2437 = vadd.f32 %v2113, %v2341
    %v2438 = vadd.f32 %v2114, %v2342
    %v2439 = vadd.f32 %v2115, %v2343
    %v2440 = vadd.f32 %v2116, %v2344
    %v2441 = vadd.f32 %v2117, %v2345
    %v2442 = vadd.f32 %v2118, %v2346
    %v2443 = vadd.f32 %v2119, %v2347
    %v2444 = vadd.f32 %v2120, %v2348
    %v2445 = vadd.f32 %v2121, %v2349
    %v2446 = vadd.f32 %v2122, %v2350
    %v2447 = vadd.f32 %v2123, %v2351
    %v2448 = vadd.f32 %v2124, %v2352
    %v2449 = vadd.f32 %v2125, %v2353
    %v2450 = vadd.f32 %v2126, %v2354
    %v2451 = vadd.f32 %v2127, %v2355
    %v2452 = vadd.f32 %v2128, %v2356
    %v2453 = vadd.f32 %v2129, %v2357
    %v2454 = vadd.f32 %v2130, %v2358
    %v2455 = vadd.f32 %v2131, %v2359
    %v2456 = vadd.f32 %v2132, %v2360
    %v2457 = vadd.f32 %v2133, %v2361
    %v2458 = vadd.f32 %v2134, %v2362
    %v2459 = vadd.f32 %v2135, %v2363
    %v2460 = vadd.f32 %v2136, %v2364
    %v2461 = vadd.f32 %v2137, %v2365
    %v2462 = vadd.f32 %v2138, %v2366
    %v2463 = vadd.f32 %v2139, %v2367
    %v2464 = vadd.f32 %v2140, %v2368
    %v2465 = vadd.f32 %v2141, %v2369
    %v2466 = vadd.f32 %v2142, %v2370
    %v2467 = vadd.f32 %v2143, %v2371
    %v2468 = vadd.f32 %v2144, %v2372
    %v2469 = vadd.f32 %v2145, %v2373
    %v2470 = vadd.f32 %v2146, %v2374
    %v2471 = vadd.f32 %v2147, %v2375
    %v2472 = vadd.f32 %v2148, %v2376
    %v2473 = vadd.f32 %v2149, %v2377
    %v2474 = vadd.f32 %v2150, %v2378
    %v2475 = vadd.f32 %v2151, %v2379
    %v2476 = vadd.f32 %v2152, %v2380
    %v2477 = vadd.f32 %v2153, %v2381
    %v2478 = vadd.f32 %v2154, %v2382
    %v2479 = vadd.f32 %v2155, %v2383
    %v2480 = vlaneseq
    %v2481 = vshrl.u32 %v2480, 7
    %v2482 = vsub.s32 4, %v2481
    %v2483 = vrot.slane %v860, %v2482
    %v2484 = vmul.f32 %v2157, %v2483
    %v2485 = vmul.f32 %v2158, %v2483
    %v2486 = vmul.f32 %v2161, %v2483
    %v2487 = vmul.f32 %v2162, %v2483
    %v2488 = vmul.f32 %v2165, %v2483
    %v2489 = vmul.f32 %v2166, %v2483
    %v2490 = vmul.f32 %v2169, %v2483
    %v2491 = vmul.f32 %v2170, %v2483
    %v2492 = vmul.f32 %v2173, %v2483
    %v2493 = vmul.f32 %v2174, %v2483
    %v2494 = vmul.f32 %v2177, %v2483
    %v2495 = vmul.f32 %v2178, %v2483
    %v2496 = vmul.f32 %v2181, %v2483
    %v2497 = vmul.f32 %v2182, %v2483
    %v2498 = vmul.f32 %v2185, %v2483
    %v2499 = vmul.f32 %v2186, %v2483
    %v2500 = vmul.f32 %v2189, %v2483
    %v2501 = vmul.f32 %v2190, %v2483
    %v2502 = vmul.f32 %v2193, %v2483
    %v2503 = vmul.f32 %v2194, %v2483
    %v2504 = vmul.f32 %v2197, %v2483
    %v2505 = vmul.f32 %v2198, %v2483
    %v2506 = vmul.f32 %v2201, %v2483
    %v2507 = vmul.f32 %v2202, %v2483
    %v2508 = vmul.f32 %v2205, %v2483
    %v2509 = vmul.f32 %v2206, %v2483
    %v2510 = vmul.f32 %v2209, %v2483
    %v2511 = vmul.f32 %v2210, %v2483
    %v2512 = vmul.f32 %v2213, %v2483
    %v2513 = vmul.f32 %v2214, %v2483
    %v2514 = vmul.f32 %v2217, %v2483
    %v2515 = vmul.f32 %v2218, %v2483
    %v2516 = vmul.f32 %v2221, %v2483
    %v2517 = vmul.f32 %v2222, %v2483
    %v2518 = vmul.f32 %v2225, %v2483
    %v2519 = vmul.f32 %v2226, %v2483
    %v2520 = vmul.f32 %v2229, %v2483
    %v2521 = vmul.f32 %v2230, %v2483
    %v2522 = vmul.f32 %v2233, %v2483
    %v2523 = vmul.f32 %v2234, %v2483
    %v2524 = vmul.f32 %v2237, %v2483
    %v2525 = vmul.f32 %v2238, %v2483
    %v2526 = vmul.f32 %v2241, %v2483
    %v2527 = vmul.f32 %v2242, %v2483
    %v2528 = vmul.f32 %v2245, %v2483
    %v2529 = vmul.f32 %v2246, %v2483
    %v2530 = vmul.f32 %v2249, %v2483
    %v2531 = vmul.f32 %v2250, %v2483
    %v2532 = vmul.f32 %v2253, %v2483
    %v2533 = vmul.f32 %v2254, %v2483
    %v2534 = vmul.f32 %v2257, %v2483
    %v2535 = vmul.f32 %v2258, %v2483
    %v2536 = vmul.f32 %v2261, %v2483
    %v2537 = vmul.f32 %v2262, %v2483
    %v2538 = vmul.f32 %v2265, %v2483
    %v2539 = vmul.f32 %v2266, %v2483
    %v2540 = vmul.f32 %v2269, %v2483
    %v2541 = vmul.f32 %v2270, %v2483
    %v2542 = vmul.f32 %v2273, %v2483
    %v2543 = vmul.f32 %v2274, %v2483
    %v2544 = vmul.f32 %v2277, %v2483
    %v2545 = vmul.f32 %v2278, %v2483
    %v2546 = vmul.f32 %v2281, %v2483
    %v2547 = vmul.f32 %v2282, %v2483
    %v2612 = vrot.slane %v2484, 1
    %v2613 = vrot.slane %v2485, 1
    %v2614 = vsel %vm1318, %v2612, %v2613
    %v2615 = vrot.slane %v2486, 1
    %v2616 = vrot.slane %v2487, 1
    %v2617 = vsel %vm1318, %v2615, %v2616
    %v2618 = vrot.slane %v2488, 1
    %v2619 = vrot.slane %v2489, 1
    %v2620 = vsel %vm1318, %v2618, %v2619
    %v2621 = vrot.slane %v2490, 1
    %v2622 = vrot.slane %v2491, 1
    %v2623 = vsel %vm1318, %v2621, %v2622
    %v2624 = vrot.slane %v2492, 1
    %v2625 = vrot.slane %v2493, 1
    %v2626 = vsel %vm1318, %v2624, %v2625
    %v2627 = vrot.slane %v2494, 1
    %v2628 = vrot.slane %v2495, 1
    %v2629 = vsel %vm1318, %v2627, %v2628
    %v2630 = vrot.slane %v2496, 1
    %v2631 = vrot.slane %v2497, 1
    %v2632 = vsel %vm1318, %v2630, %v2631
    %v2633 = vrot.slane %v2498, 1
    %v2634 = vrot.slane %v2499, 1
    %v2635 = vsel %vm1318, %v2633, %v2634
    %v2636 = vrot.slane %v2500, 1
    %v2637 = vrot.slane %v2501, 1
    %v2638 = vsel %vm1318, %v2636, %v2637
    %v2639 = vrot.slane %v2502, 1
    %v2640 = vrot.slane %v2503, 1
    %v2641 = vsel %vm1318, %v2639, %v2640
    %v2642 = vrot.slane %v2504, 1
    %v2643 = vrot.slane %v2505, 1
    %v2644 = vsel %vm1318, %v2642, %v2643
    %v2645 = vrot.slane %v2506, 1
    %v2646 = vrot.slane %v2507, 1
    %v2647 = vsel %vm1318, %v2645, %v2646
    %v2648 = vrot.slane %v2508, 1
    %v2649 = vrot.slane %v2509, 1
    %v2650 = vsel %vm1318, %v2648, %v2649
    %v2651 = vrot.slane %v2510, 1
    %v2652 = vrot.slane %v2511, 1
    %v2653 = vsel %vm1318, %v2651, %v2652
    %v2654 = vrot.slane %v2512, 1
    %v2655 = vrot.slane %v2513, 1
    %v2656 = vsel %vm1318, %v2654, %v2655
    %v2657 = vrot.slane %v2514, 1
    %v2658 = vrot.slane %v2515, 1
    %v2659 = vsel %vm1318, %v2657, %v2658
    %v2660 = vrot.slane %v2516, 1
    %v2661 = vrot.slane %v2517, 1
    %v2662 = vsel %vm1318, %v2660, %v2661
    %v2663 = vrot.slane %v2518, 1
    %v2664 = vrot.slane %v2519, 1
    %v2665 = vsel %vm1318, %v2663, %v2664
    %v2666 = vrot.slane %v2520, 1
    %v2667 = vrot.slane %v2521, 1
    %v2668 = vsel %vm1318, %v2666, %v2667
    %v2669 = vrot.slane %v2522, 1
    %v2670 = vrot.slane %v2523, 1
    %v2671 = vsel %vm1318, %v2669, %v2670
    %v2672 = vrot.slane %v2524, 1
    %v2673 = vrot.slane %v2525, 1
    %v2674 = vsel %vm1318, %v2672, %v2673
    %v2675 = vrot.slane %v2526, 1
    %v2676 = vrot.slane %v2527, 1
    %v2677 = vsel %vm1318, %v2675, %v2676
    %v2678 = vrot.slane %v2528, 1
    %v2679 = vrot.slane %v2529, 1
    %v2680 = vsel %vm1318, %v2678, %v2679
    %v2681 = vrot.slane %v2530, 1
    %v2682 = vrot.slane %v2531, 1
    %v2683 = vsel %vm1318, %v2681, %v2682
    %v2684 = vrot.slane %v2532, 1
    %v2685 = vrot.slane %v2533, 1
    %v2686 = vsel %vm1318, %v2684, %v2685
    %v2687 = vrot.slane %v2534, 1
    %v2688 = vrot.slane %v2535, 1
    %v2689 = vsel %vm1318, %v2687, %v2688
    %v2690 = vrot.slane %v2536, 1
    %v2691 = vrot.slane %v2537, 1
    %v2692 = vsel %vm1318, %v2690, %v2691
    %v2693 = vrot.slane %v2538, 1
    %v2694 = vrot.slane %v2539, 1
    %v2695 = vsel %vm1318, %v2693, %v2694
    %v2696 = vrot.slane %v2540, 1
    %v2697 = vrot.slane %v2541, 1
    %v2698 = vsel %vm1318, %v2696, %v2697
    %v2699 = vrot.slane %v2542, 1
    %v2700 = vrot.slane %v2543, 1
    %v2701 = vsel %vm1318, %v2699, %v2700
    %v2702 = vrot.slane %v2544, 1
    %v2703 = vrot.slane %v2545, 1
    %v2704 = vsel %vm1318, %v2702, %v2703
    %v2705 = vrot.slane %v2546, 1
    %v2706 = vrot.slane %v2547, 1
    %v2707 = vsel %vm1318, %v2705, %v2706
    %v2804 = vadd.f32 %v2384, %v2612
    %v2805 = vadd.f32 %v2385, %v2614
    %v2806 = vadd.f32 %v2386, %v2613
    %v2807 = vadd.f32 %v2387, %v2615
    %v2808 = vadd.f32 %v2388, %v2617
    %v2809 = vadd.f32 %v2389, %v2616
    %v2810 = vadd.f32 %v2390, %v2618
    %v2811 = vadd.f32 %v2391, %v2620
    %v2812 = vadd.f32 %v2392, %v2619
    %v2813 = vadd.f32 %v2393, %v2621
    %v2814 = vadd.f32 %v2394, %v2623
    %v2815 = vadd.f32 %v2395, %v2622
    %v2816 = vadd.f32 %v2396, %v2624
    %v2817 = vadd.f32 %v2397, %v2626
    %v2818 = vadd.f32 %v2398, %v2625
    %v2819 = vadd.f32 %v2399, %v2627
    %v2820 = vadd.f32 %v2400, %v2629
    %v2821 = vadd.f32 %v2401, %v2628
    %v2822 = vadd.f32 %v2402, %v2630
    %v2823 = vadd.f32 %v2403, %v2632
    %v2824 = vadd.f32 %v2404, %v2631
    %v2825 = vadd.f32 %v2405, %v2633
    %v2826 = vadd.f32 %v2406, %v2635
    %v2827 = vadd.f32 %v2407, %v2634
    %v2828 = vadd.f32 %v2408, %v2636
    %v2829 = vadd.f32 %v2409, %v2638
    %v2830 = vadd.f32 %v2410, %v2637
    %v2831 = vadd.f32 %v2411, %v2639
    %v2832 = vadd.f32 %v2412, %v2641
    %v2833 = vadd.f32 %v2413, %v2640
    %v2834 = vadd.f32 %v2414, %v2642
    %v2835 = vadd.f32 %v2415, %v2644
    %v2836 = vadd.f32 %v2416, %v2643
    %v2837 = vadd.f32 %v2417, %v2645
    %v2838 = vadd.f32 %v2418, %v2647
    %v2839 = vadd.f32 %v2419, %v2646
    %v2840 = vadd.f32 %v2420, %v2648
    %v2841 = vadd.f32 %v2421, %v2650
    %v2842 = vadd.f32 %v2422, %v2649
    %v2843 = vadd.f32 %v2423, %v2651
    %v2844 = vadd.f32 %v2424, %v2653
    %v2845 = vadd.f32 %v2425, %v2652
    %v2846 = vadd.f32 %v2426, %v2654
    %v2847 = vadd.f32 %v2427, %v2656
    %v2848 = vadd.f32 %v2428, %v2655
    %v2849 = vadd.f32 %v2429, %v2657
    %v2850 = vadd.f32 %v2430, %v2659
    %v2851 = vadd.f32 %v2431, %v2658
    %v2852 = vadd.f32 %v2432, %v2660
    %v2853 = vadd.f32 %v2433, %v2662
    %v2854 = vadd.f32 %v2434, %v2661
    %v2855 = vadd.f32 %v2435, %v2663
    %v2856 = vadd.f32 %v2436, %v2665
    %v2857 = vadd.f32 %v2437, %v2664
    %v2858 = vadd.f32 %v2438, %v2666
    %v2859 = vadd.f32 %v2439, %v2668
    %v2860 = vadd.f32 %v2440, %v2667
    %v2861 = vadd.f32 %v2441, %v2669
    %v2862 = vadd.f32 %v2442, %v2671
    %v2863 = vadd.f32 %v2443, %v2670
    %v2864 = vadd.f32 %v2444, %v2672
    %v2865 = vadd.f32 %v2445, %v2674
    %v2866 = vadd.f32 %v2446, %v2673
    %v2867 = vadd.f32 %v2447, %v2675
    %v2868 = vadd.f32 %v2448, %v2677
    %v2869 = vadd.f32 %v2449, %v2676
    %v2870 = vadd.f32 %v2450, %v2678
    %v2871 = vadd.f32 %v2451, %v2680
    %v2872 = vadd.f32 %v2452, %v2679
    %v2873 = vadd.f32 %v2453, %v2681
    %v2874 = vadd.f32 %v2454, %v2683
    %v2875 = vadd.f32 %v2455, %v2682
    %v2876 = vadd.f32 %v2456, %v2684
    %v2877 = vadd.f32 %v2457, %v2686
    %v2878 = vadd.f32 %v2458, %v2685
    %v2879 = vadd.f32 %v2459, %v2687
    %v2880 = vadd.f32 %v2460, %v2689
    %v2881 = vadd.f32 %v2461, %v2688
    %v2882 = vadd.f32 %v2462, %v2690
    %v2883 = vadd.f32 %v2463, %v2692
    %v2884 = vadd.f32 %v2464, %v2691
    %v2885 = vadd.f32 %v2465, %v2693
    %v2886 = vadd.f32 %v2466, %v2695
    %v2887 = vadd.f32 %v2467, %v2694
    %v2888 = vadd.f32 %v2468, %v2696
    %v2889 = vadd.f32 %v2469, %v2698
    %v2890 = vadd.f32 %v2470, %v2697
    %v2891 = vadd.f32 %v2471, %v2699
    %v2892 = vadd.f32 %v2472, %v2701
    %v2893 = vadd.f32 %v2473, %v2700
    %v2894 = vadd.f32 %v2474, %v2702
    %v2895 = vadd.f32 %v2475, %v2704
    %v2896 = vadd.f32 %v2476, %v2703
    %v2897 = vadd.f32 %v2477, %v2705
    %v2898 = vadd.f32 %v2478, %v2707
    %v2899 = vadd.f32 %v2479, %v2706
    %v2900 = vlaneseq
    %v2901 = vshrl.u32 %v2900, 7
    %v2902 = vsub.s32 5, %v2901
    %v2903 = vrot.slane %v860, %v2902
    %v2904 = vmul.f32 %v2157, %v2903
    %v2905 = vmul.f32 %v2158, %v2903
    %v2906 = vmul.f32 %v2159, %v2903
    %v2907 = vmul.f32 %v2161, %v2903
    %v2908 = vmul.f32 %v2162, %v2903
    %v2909 = vmul.f32 %v2163, %v2903
    %v2910 = vmul.f32 %v2165, %v2903
    %v2911 = vmul.f32 %v2166, %v2903
    %v2912 = vmul.f32 %v2167, %v2903
    %v2913 = vmul.f32 %v2169, %v2903
    %v2914 = vmul.f32 %v2170, %v2903
    %v2915 = vmul.f32 %v2171, %v2903
    %v2916 = vmul.f32 %v2173, %v2903
    %v2917 = vmul.f32 %v2174, %v2903
    %v2918 = vmul.f32 %v2175, %v2903
    %v2919 = vmul.f32 %v2177, %v2903
    %v2920 = vmul.f32 %v2178, %v2903
    %v2921 = vmul.f32 %v2179, %v2903
    %v2922 = vmul.f32 %v2181, %v2903
    %v2923 = vmul.f32 %v2182, %v2903
    %v2924 = vmul.f32 %v2183, %v2903
    %v2925 = vmul.f32 %v2185, %v2903
    %v2926 = vmul.f32 %v2186, %v2903
    %v2927 = vmul.f32 %v2187, %v2903
    %v2928 = vmul.f32 %v2189, %v2903
    %v2929 = vmul.f32 %v2190, %v2903
    %v2930 = vmul.f32 %v2191, %v2903
    %v2931 = vmul.f32 %v2193, %v2903
    %v2932 = vmul.f32 %v2194, %v2903
    %v2933 = vmul.f32 %v2195, %v2903
    %v2934 = vmul.f32 %v2197, %v2903
    %v2935 = vmul.f32 %v2198, %v2903
    %v2936 = vmul.f32 %v2199, %v2903
    %v2937 = vmul.f32 %v2201, %v2903
    %v2938 = vmul.f32 %v2202, %v2903
    %v2939 = vmul.f32 %v2203, %v2903
    %v2940 = vmul.f32 %v2205, %v2903
    %v2941 = vmul.f32 %v2206, %v2903
    %v2942 = vmul.f32 %v2207, %v2903
    %v2943 = vmul.f32 %v2209, %v2903
    %v2944 = vmul.f32 %v2210, %v2903
    %v2945 = vmul.f32 %v2211, %v2903
    %v2946 = vmul.f32 %v2213, %v2903
    %v2947 = vmul.f32 %v2214, %v2903
    %v2948 = vmul.f32 %v2215, %v2903
    %v2949 = vmul.f32 %v2217, %v2903
    %v2950 = vmul.f32 %v2218, %v2903
    %v2951 = vmul.f32 %v2219, %v2903
    %v2952 = vmul.f32 %v2221, %v2903
    %v2953 = vmul.f32 %v2222, %v2903
    %v2954 = vmul.f32 %v2223, %v2903
    %v2955 = vmul.f32 %v2225, %v2903
    %v2956 = vmul.f32 %v2226, %v2903
    %v2957 = vmul.f32 %v2227, %v2903
    %v2958 = vmul.f32 %v2229, %v2903
    %v2959 = vmul.f32 %v2230, %v2903
    %v2960 = vmul.f32 %v2231, %v2903
    %v2961 = vmul.f32 %v2233, %v2903
    %v2962 = vmul.f32 %v2234, %v2903
    %v2963 = vmul.f32 %v2235, %v2903
    %v2964 = vmul.f32 %v2237, %v2903
    %v2965 = vmul.f32 %v2238, %v2903
    %v2966 = vmul.f32 %v2239, %v2903
    %v2967 = vmul.f32 %v2241, %v2903
    %v2968 = vmul.f32 %v2242, %v2903
    %v2969 = vmul.f32 %v2243, %v2903
    %v2970 = vmul.f32 %v2245, %v2903
    %v2971 = vmul.f32 %v2246, %v2903
    %v2972 = vmul.f32 %v2247, %v2903
    %v2973 = vmul.f32 %v2249, %v2903
    %v2974 = vmul.f32 %v2250, %v2903
    %v2975 = vmul.f32 %v2251, %v2903
    %v2976 = vmul.f32 %v2253, %v2903
    %v2977 = vmul.f32 %v2254, %v2903
    %v2978 = vmul.f32 %v2255, %v2903
    %v2979 = vmul.f32 %v2257, %v2903
    %v2980 = vmul.f32 %v2258, %v2903
    %v2981 = vmul.f32 %v2259, %v2903
    %v2982 = vmul.f32 %v2261, %v2903
    %v2983 = vmul.f32 %v2262, %v2903
    %v2984 = vmul.f32 %v2263, %v2903
    %v2985 = vmul.f32 %v2265, %v2903
    %v2986 = vmul.f32 %v2266, %v2903
    %v2987 = vmul.f32 %v2267, %v2903
    %v2988 = vmul.f32 %v2269, %v2903
    %v2989 = vmul.f32 %v2270, %v2903
    %v2990 = vmul.f32 %v2271, %v2903
    %v2991 = vmul.f32 %v2273, %v2903
    %v2992 = vmul.f32 %v2274, %v2903
    %v2993 = vmul.f32 %v2275, %v2903
    %v2994 = vmul.f32 %v2277, %v2903
    %v2995 = vmul.f32 %v2278, %v2903
    %v2996 = vmul.f32 %v2279, %v2903
    %v2997 = vmul.f32 %v2281, %v2903
    %v2998 = vmul.f32 %v2282, %v2903
    %v2999 = vmul.f32 %v2283, %v2903
    %v3096 = vrot.slane %v2904, 2
    %v3097 = vrot.slane %v2905, 2
    %v3098 = vsel %vm1803, %v3096, %v3097
    %v3099 = vrot.slane %v2906, 2
    %v3100 = vsel %vm1803, %v3097, %v3099
    %v3101 = vrot.slane %v2907, 2
    %v3102 = vrot.slane %v2908, 2
    %v3103 = vsel %vm1803, %v3101, %v3102
    %v3104 = vrot.slane %v2909, 2
    %v3105 = vsel %vm1803, %v3102, %v3104
    %v3106 = vrot.slane %v2910, 2
    %v3107 = vrot.slane %v2911, 2
    %v3108 = vsel %vm1803, %v3106, %v3107
    %v3109 = vrot.slane %v2912, 2
    %v3110 = vsel %vm1803, %v3107, %v3109
    %v3111 = vrot.slane %v2913, 2
    %v3112 = vrot.slane %v2914, 2
    %v3113 = vsel %vm1803, %v3111, %v3112
    %v3114 = vrot.slane %v2915, 2
    %v3115 = vsel %vm1803, %v3112, %v3114
    %v3116 = vrot.slane %v2916, 2
    %v3117 = vrot.slane %v2917, 2
    %v3118 = vsel %vm1803, %v3116, %v3117
    %v3119 = vrot.slane %v2918, 2
    %v3120 = vsel %vm1803, %v3117, %v3119
    %v3121 = vrot.slane %v2919, 2
    %v3122 = vrot.slane %v2920, 2
    %v3123 = vsel %vm1803, %v3121, %v3122
    %v3124 = vrot.slane %v2921, 2
    %v3125 = vsel %vm1803, %v3122, %v3124
    %v3126 = vrot.slane %v2922, 2
    %v3127 = vrot.slane %v2923, 2
    %v3128 = vsel %vm1803, %v3126, %v3127
    %v3129 = vrot.slane %v2924, 2
    %v3130 = vsel %vm1803, %v3127, %v3129
    %v3131 = vrot.slane %v2925, 2
    %v3132 = vrot.slane %v2926, 2
    %v3133 = vsel %vm1803, %v3131, %v3132
    %v3134 = vrot.slane %v2927, 2
    %v3135 = vsel %vm1803, %v3132, %v3134
    %v3136 = vrot.slane %v2928, 2
    %v3137 = vrot.slane %v2929, 2
    %v3138 = vsel %vm1803, %v3136, %v3137
    %v3139 = vrot.slane %v2930, 2
    %v3140 = vsel %vm1803, %v3137, %v3139
    %v3141 = vrot.slane %v2931, 2
    %v3142 = vrot.slane %v2932, 2
    %v3143 = vsel %vm1803, %v3141, %v3142
    %v3144 = vrot.slane %v2933, 2
    %v3145 = vsel %vm1803, %v3142, %v3144
    %v3146 = vrot.slane %v2934, 2
    %v3147 = vrot.slane %v2935, 2
    %v3148 = vsel %vm1803, %v3146, %v3147
    %v3149 = vrot.slane %v2936, 2
    %v3150 = vsel %vm1803, %v3147, %v3149
    %v3151 = vrot.slane %v2937, 2
    %v3152 = vrot.slane %v2938, 2
    %v3153 = vsel %vm1803, %v3151, %v3152
    %v3154 = vrot.slane %v2939, 2
    %v3155 = vsel %vm1803, %v3152, %v3154
    %v3156 = vrot.slane %v2940, 2
    %v3157 = vrot.slane %v2941, 2
    %v3158 = vsel %vm1803, %v3156, %v3157
    %v3159 = vrot.slane %v2942, 2
    %v3160 = vsel %vm1803, %v3157, %v3159
    %v3161 = vrot.slane %v2943, 2
    %v3162 = vrot.slane %v2944, 2
    %v3163 = vsel %vm1803, %v3161, %v3162
    %v3164 = vrot.slane %v2945, 2
    %v3165 = vsel %vm1803, %v3162, %v3164
    %v3166 = vrot.slane %v2946, 2
    %v3167 = vrot.slane %v2947, 2
    %v3168 = vsel %vm1803, %v3166, %v3167
    %v3169 = vrot.slane %v2948, 2
    %v3170 = vsel %vm1803, %v3167, %v3169
    %v3171 = vrot.slane %v2949, 2
    %v3172 = vrot.slane %v2950, 2
    %v3173 = vsel %vm1803, %v3171, %v3172
    %v3174 = vrot.slane %v2951, 2
    %v3175 = vsel %vm1803, %v3172, %v3174
    %v3176 = vrot.slane %v2952, 2
    %v3177 = vrot.slane %v2953, 2
    %v3178 = vsel %vm1803, %v3176, %v3177
    %v3179 = vrot.slane %v2954, 2
    %v3180 = vsel %vm1803, %v3177, %v3179
    %v3181 = vrot.slane %v2955, 2
    %v3182 = vrot.slane %v2956, 2
    %v3183 = vsel %vm1803, %v3181, %v3182
    %v3184 = vrot.slane %v2957, 2
    %v3185 = vsel %vm1803, %v3182, %v3184
    %v3186 = vrot.slane %v2958, 2
    %v3187 = vrot.slane %v2959, 2
    %v3188 = vsel %vm1803, %v3186, %v3187
    %v3189 = vrot.slane %v2960, 2
    %v3190 = vsel %vm1803, %v3187, %v3189
    %v3191 = vrot.slane %v2961, 2
    %v3192 = vrot.slane %v2962, 2
    %v3193 = vsel %vm1803, %v3191, %v3192
    %v3194 = vrot.slane %v2963, 2
    %v3195 = vsel %vm1803, %v3192, %v3194
    %v3196 = vrot.slane %v2964, 2
    %v3197 = vrot.slane %v2965, 2
    %v3198 = vsel %vm1803, %v3196, %v3197
    %v3199 = vrot.slane %v2966, 2
    %v3200 = vsel %vm1803, %v3197, %v3199
    %v3201 = vrot.slane %v2967, 2
    %v3202 = vrot.slane %v2968, 2
    %v3203 = vsel %vm1803, %v3201, %v3202
    %v3204 = vrot.slane %v2969, 2
    %v3205 = vsel %vm1803, %v3202, %v3204
    %v3206 = vrot.slane %v2970, 2
    %v3207 = vrot.slane %v2971, 2
    %v3208 = vsel %vm1803, %v3206, %v3207
    %v3209 = vrot.slane %v2972, 2
    %v3210 = vsel %vm1803, %v3207, %v3209
    %v3211 = vrot.slane %v2973, 2
    %v3212 = vrot.slane %v2974, 2
    %v3213 = vsel %vm1803, %v3211, %v3212
    %v3214 = vrot.slane %v2975, 2
    %v3215 = vsel %vm1803, %v3212, %v3214
    %v3216 = vrot.slane %v2976, 2
    %v3217 = vrot.slane %v2977, 2
    %v3218 = vsel %vm1803, %v3216, %v3217
    %v3219 = vrot.slane %v2978, 2
    %v3220 = vsel %vm1803, %v3217, %v3219
    %v3221 = vrot.slane %v2979, 2
    %v3222 = vrot.slane %v2980, 2
    %v3223 = vsel %vm1803, %v3221, %v3222
    %v3224 = vrot.slane %v2981, 2
    %v3225 = vsel %vm1803, %v3222, %v3224
    %v3226 = vrot.slane %v2982, 2
    %v3227 = vrot.slane %v2983, 2
    %v3228 = vsel %vm1803, %v3226, %v3227
    %v3229 = vrot.slane %v2984, 2
    %v3230 = vsel %vm1803, %v3227, %v3229
    %v3231 = vrot.slane %v2985, 2
    %v3232 = vrot.slane %v2986, 2
    %v3233 = vsel %vm1803, %v3231, %v3232
    %v3234 = vrot.slane %v2987, 2
    %v3235 = vsel %vm1803, %v3232, %v3234
    %v3236 = vrot.slane %v2988, 2
    %v3237 = vrot.slane %v2989, 2
    %v3238 = vsel %vm1803, %v3236, %v3237
    %v3239 = vrot.slane %v2990, 2
    %v3240 = vsel %vm1803, %v3237, %v3239
    %v3241 = vrot.slane %v2991, 2
    %v3242 = vrot.slane %v2992, 2
    %v3243 = vsel %vm1803, %v3241, %v3242
    %v3244 = vrot.slane %v2993, 2
    %v3245 = vsel %vm1803, %v3242, %v3244
    %v3246 = vrot.slane %v2994, 2
    %v3247 = vrot.slane %v2995, 2
    %v3248 = vsel %vm1803, %v3246, %v3247
    %v3249 = vrot.slane %v2996, 2
    %v3250 = vsel %vm1803, %v3247, %v3249
    %v3251 = vrot.slane %v2997, 2
    %v3252 = vrot.slane %v2998, 2
    %v3253 = vsel %vm1803, %v3251, %v3252
    %v3254 = vrot.slane %v2999, 2
    %v3255 = vsel %vm1803, %v3252, %v3254
    %v3352 = vadd.f32 %v2804, %v3096
    %v3353 = vadd.f32 %v2805, %v3098
    %v3354 = vadd.f32 %v2806, %v3100
    %v3355 = vadd.f32 %v2807, %v3101
    %v3356 = vadd.f32 %v2808, %v3103
    %v3357 = vadd.f32 %v2809, %v3105
    %v3358 = vadd.f32 %v2810, %v3106
    %v3359 = vadd.f32 %v2811, %v3108
    %v3360 = vadd.f32 %v2812, %v3110
    %v3361 = vadd.f32 %v2813, %v3111
    %v3362 = vadd.f32 %v2814, %v3113
    %v3363 = vadd.f32 %v2815, %v3115
    %v3364 = vadd.f32 %v2816, %v3116
    %v3365 = vadd.f32 %v2817, %v3118
    %v3366 = vadd.f32 %v2818, %v3120
    %v3367 = vadd.f32 %v2819, %v3121
    %v3368 = vadd.f32 %v2820, %v3123
    %v3369 = vadd.f32 %v2821, %v3125
    %v3370 = vadd.f32 %v2822, %v3126
    %v3371 = vadd.f32 %v2823, %v3128
    %v3372 = vadd.f32 %v2824, %v3130
    %v3373 = vadd.f32 %v2825, %v3131
    %v3374 = vadd.f32 %v2826, %v3133
    %v3375 = vadd.f32 %v2827, %v3135
    %v3376 = vadd.f32 %v2828, %v3136
    %v3377 = vadd.f32 %v2829, %v3138
    %v3378 = vadd.f32 %v2830, %v3140
    %v3379 = vadd.f32 %v2831, %v3141
    %v3380 = vadd.f32 %v2832, %v3143
    %v3381 = vadd.f32 %v2833, %v3145
    %v3382 = vadd.f32 %v2834, %v3146
    %v3383 = vadd.f32 %v2835, %v3148
    %v3384 = vadd.f32 %v2836, %v3150
    %v3385 = vadd.f32 %v2837, %v3151
    %v3386 = vadd.f32 %v2838, %v3153
    %v3387 = vadd.f32 %v2839, %v3155
    %v3388 = vadd.f32 %v2840, %v3156
    %v3389 = vadd.f32 %v2841, %v3158
    %v3390 = vadd.f32 %v2842, %v3160
    %v3391 = vadd.f32 %v2843, %v3161
    %v3392 = vadd.f32 %v2844, %v3163
    %v3393 = vadd.f32 %v2845, %v3165
    %v3394 = vadd.f32 %v2846, %v3166
    %v3395 = vadd.f32 %v2847, %v3168
    %v3396 = vadd.f32 %v2848, %v3170
    %v3397 = vadd.f32 %v2849, %v3171
    %v3398 = vadd.f32 %v2850, %v3173
    %v3399 = vadd.f32 %v2851, %v3175
    %v3400 = vadd.f32 %v2852, %v3176
    %v3401 = vadd.f32 %v2853, %v3178
    %v3402 = vadd.f32 %v2854, %v3180
    %v3403 = vadd.f32 %v2855, %v3181
    %v3404 = vadd.f32 %v2856, %v3183
    %v3405 = vadd.f32 %v2857, %v3185
    %v3406 = vadd.f32 %v2858, %v3186
    %v3407 = vadd.f32 %v2859, %v3188
    %v3408 = vadd.f32 %v2860, %v3190
    %v3409 = vadd.f32 %v2861, %v3191
    %v3410 = vadd.f32 %v2862, %v3193
    %v3411 = vadd.f32 %v2863, %v3195
    %v3412 = vadd.f32 %v2864, %v3196
    %v3413 = vadd.f32 %v2865, %v3198
    %v3414 = vadd.f32 %v2866, %v3200
    %v3415 = vadd.f32 %v2867, %v3201
    %v3416 = vadd.f32 %v2868, %v3203
    %v3417 = vadd.f32 %v2869, %v3205
    %v3418 = vadd.f32 %v2870, %v3206
    %v3419 = vadd.f32 %v2871, %v3208
    %v3420 = vadd.f32 %v2872, %v3210
    %v3421 = vadd.f32 %v2873, %v3211
    %v3422 = vadd.f32 %v2874, %v3213
    %v3423 = vadd.f32 %v2875, %v3215
    %v3424 = vadd.f32 %v2876, %v3216
    %v3425 = vadd.f32 %v2877, %v3218
    %v3426 = vadd.f32 %v2878, %v3220
    %v3427 = vadd.f32 %v2879, %v3221
    %v3428 = vadd.f32 %v2880, %v3223
    %v3429 = vadd.f32 %v2881, %v3225
    %v3430 = vadd.f32 %v2882, %v3226
    %v3431 = vadd.f32 %v2883, %v3228
    %v3432 = vadd.f32 %v2884, %v3230
    %v3433 = vadd.f32 %v2885, %v3231
    %v3434 = vadd.f32 %v2886, %v3233
    %v3435 = vadd.f32 %v2887, %v3235
    %v3436 = vadd.f32 %v2888, %v3236
    %v3437 = vadd.f32 %v2889, %v3238
    %v3438 = vadd.f32 %v2890, %v3240
    %v3439 = vadd.f32 %v2891, %v3241
    %v3440 = vadd.f32 %v2892, %v3243
    %v3441 = vadd.f32 %v2893, %v3245
    %v3442 = vadd.f32 %v2894, %v3246
    %v3443 = vadd.f32 %v2895, %v3248
    %v3444 = vadd.f32 %v2896, %v3250
    %v3445 = vadd.f32 %v2897, %v3251
    %v3446 = vadd.f32 %v2898, %v3253
    %v3447 = vadd.f32 %v2899, %v3255
    %s3448 = scalar_lea.vmem [#allocation2], 64
    %v3449 = vld [vmem:[%s3448] sm:$0xff]
    %v3450 = vld [vmem:[%s3448 + $0x8] sm:$0xff]
    %v3451 = vld [vmem:[%s3448 + $0x10] sm:$0xff]
    %v3452 = vld [vmem:[%s3448 + $0x18] sm:$0xff]
    %v3453 = vld [vmem:[%s3448 + $0x20] sm:$0xff]
    %v3454 = vld [vmem:[%s3448 + $0x28] sm:$0xff]
    %v3455 = vld [vmem:[%s3448 + $0x30] sm:$0xff]
    %v3456 = vld [vmem:[%s3448 + $0x38] sm:$0xff]
    %v3457 = vld [vmem:[%s3448 + $0x40] sm:$0xff]
    %v3458 = vld [vmem:[%s3448 + $0x48] sm:$0xff]
    %v3459 = vld [vmem:[%s3448 + $0x50] sm:$0xff]
    %v3460 = vld [vmem:[%s3448 + $0x58] sm:$0xff]
    %v3461 = vld [vmem:[%s3448 + $0x60] sm:$0xff]
    %v3462 = vld [vmem:[%s3448 + $0x68] sm:$0xff]
    %v3463 = vld [vmem:[%s3448 + $0x70] sm:$0xff]
    %v3464 = vld [vmem:[%s3448 + $0x78] sm:$0xff]
    %v3465 = vld [vmem:[%s3448 + $0x80] sm:$0xff]
    %v3466 = vld [vmem:[%s3448 + $0x88] sm:$0xff]
    %v3467 = vld [vmem:[%s3448 + $0x90] sm:$0xff]
    %v3468 = vld [vmem:[%s3448 + $0x98] sm:$0xff]
    %v3469 = vld [vmem:[%s3448 + $0xa0] sm:$0xff]
    %v3470 = vld [vmem:[%s3448 + $0xa8] sm:$0xff]
    %v3471 = vld [vmem:[%s3448 + $0xb0] sm:$0xff]
    %v3472 = vld [vmem:[%s3448 + $0xb8] sm:$0xff]
    %v3473 = vld [vmem:[%s3448 + $0xc0] sm:$0xff]
    %v3474 = vld [vmem:[%s3448 + $0xc8] sm:$0xff]
    %v3475 = vld [vmem:[%s3448 + $0xd0] sm:$0xff]
    %v3476 = vld [vmem:[%s3448 + $0xd8] sm:$0xff]
    %v3477 = vld [vmem:[%s3448 + $0xe0] sm:$0xff]
    %v3478 = vld [vmem:[%s3448 + $0xe8] sm:$0xff]
    %v3479 = vld [vmem:[%s3448 + $0xf0] sm:$0xff]
    %v3480 = vld [vmem:[%s3448 + $0xf8] sm:$0xff]
    %v3481 = vld [vmem:[%s3448 + $0x100] sm:$0xff]
    %v3482 = vld [vmem:[%s3448 + $0x108] sm:$0xff]
    %v3483 = vld [vmem:[%s3448 + $0x110] sm:$0xff]
    %v3484 = vld [vmem:[%s3448 + $0x118] sm:$0xff]
    %v3485 = vld [vmem:[%s3448 + $0x120] sm:$0xff]
    %v3486 = vld [vmem:[%s3448 + $0x128] sm:$0xff]
    %v3487 = vld [vmem:[%s3448 + $0x130] sm:$0xff]
    %v3488 = vld [vmem:[%s3448 + $0x138] sm:$0xff]
    %v3489 = vld [vmem:[%s3448 + $0x140] sm:$0xff]
    %v3490 = vld [vmem:[%s3448 + $0x148] sm:$0xff]
    %v3491 = vld [vmem:[%s3448 + $0x150] sm:$0xff]
    %v3492 = vld [vmem:[%s3448 + $0x158] sm:$0xff]
    %v3493 = vld [vmem:[%s3448 + $0x160] sm:$0xff]
    %v3494 = vld [vmem:[%s3448 + $0x168] sm:$0xff]
    %v3495 = vld [vmem:[%s3448 + $0x170] sm:$0xff]
    %v3496 = vld [vmem:[%s3448 + $0x178] sm:$0xff]
    %v3497 = vld [vmem:[%s3448 + $0x180] sm:$0xff]
    %v3498 = vld [vmem:[%s3448 + $0x188] sm:$0xff]
    %v3499 = vld [vmem:[%s3448 + $0x190] sm:$0xff]
    %v3500 = vld [vmem:[%s3448 + $0x198] sm:$0xff]
    %v3501 = vld [vmem:[%s3448 + $0x1a0] sm:$0xff]
    %v3502 = vld [vmem:[%s3448 + $0x1a8] sm:$0xff]
    %v3503 = vld [vmem:[%s3448 + $0x1b0] sm:$0xff]
    %v3504 = vld [vmem:[%s3448 + $0x1b8] sm:$0xff]
    %v3505 = vld [vmem:[%s3448 + $0x1c0] sm:$0xff]
    %v3506 = vld [vmem:[%s3448 + $0x1c8] sm:$0xff]
    %v3507 = vld [vmem:[%s3448 + $0x1d0] sm:$0xff]
    %v3508 = vld [vmem:[%s3448 + $0x1d8] sm:$0xff]
    %v3509 = vld [vmem:[%s3448 + $0x1e0] sm:$0xff]
    %v3510 = vld [vmem:[%s3448 + $0x1e8] sm:$0xff]
    %v3511 = vld [vmem:[%s3448 + $0x1f0] sm:$0xff]
    %v3512 = vld [vmem:[%s3448 + $0x1f8] sm:$0xff]
    %v3513 = vld [vmem:[%s3448 + $0x240] sm:$0xff]
    %v3514 = vld [vmem:[%s3448 + $0x248] sm:$0xff]
    %v3515 = vld [vmem:[%s3448 + $0x250] sm:$0xff]
    %v3516 = vld [vmem:[%s3448 + $0x258] sm:$0xff]
    %v3517 = vld [vmem:[%s3448 + $0x260] sm:$0xff]
    %v3518 = vld [vmem:[%s3448 + $0x268] sm:$0xff]
    %v3519 = vld [vmem:[%s3448 + $0x270] sm:$0xff]
    %v3520 = vld [vmem:[%s3448 + $0x278] sm:$0xff]
    %v3521 = vld [vmem:[%s3448 + $0x280] sm:$0xff]
    %v3522 = vld [vmem:[%s3448 + $0x288] sm:$0xff]
    %v3523 = vld [vmem:[%s3448 + $0x290] sm:$0xff]
    %v3524 = vld [vmem:[%s3448 + $0x298] sm:$0xff]
    %v3525 = vld [vmem:[%s3448 + $0x2a0] sm:$0xff]
    %v3526 = vld [vmem:[%s3448 + $0x2a8] sm:$0xff]
    %v3527 = vld [vmem:[%s3448 + $0x2b0] sm:$0xff]
    %v3528 = vld [vmem:[%s3448 + $0x2b8] sm:$0xff]
    %v3529 = vld [vmem:[%s3448 + $0x2c0] sm:$0xff]
    %v3530 = vld [vmem:[%s3448 + $0x2c8] sm:$0xff]
    %v3531 = vld [vmem:[%s3448 + $0x2d0] sm:$0xff]
    %v3532 = vld [vmem:[%s3448 + $0x2d8] sm:$0xff]
    %v3533 = vld [vmem:[%s3448 + $0x2e0] sm:$0xff]
    %v3534 = vld [vmem:[%s3448 + $0x2e8] sm:$0xff]
    %v3535 = vld [vmem:[%s3448 + $0x2f0] sm:$0xff]
    %v3536 = vld [vmem:[%s3448 + $0x2f8] sm:$0xff]
    %v3537 = vld [vmem:[%s3448 + $0x300] sm:$0xff]
    %v3538 = vld [vmem:[%s3448 + $0x308] sm:$0xff]
    %v3539 = vld [vmem:[%s3448 + $0x310] sm:$0xff]
    %v3540 = vld [vmem:[%s3448 + $0x318] sm:$0xff]
    %v3541 = vld [vmem:[%s3448 + $0x320] sm:$0xff]
    %v3542 = vld [vmem:[%s3448 + $0x328] sm:$0xff]
    %v3543 = vld [vmem:[%s3448 + $0x330] sm:$0xff]
    %v3544 = vld [vmem:[%s3448 + $0x338] sm:$0xff]
    %v3545 = vld [vmem:[%s3448 + $0x340] sm:$0xff]
    %v3546 = vld [vmem:[%s3448 + $0x348] sm:$0xff]
    %v3547 = vld [vmem:[%s3448 + $0x350] sm:$0xff]
    %v3548 = vld [vmem:[%s3448 + $0x358] sm:$0xff]
    %v3549 = vld [vmem:[%s3448 + $0x360] sm:$0xff]
    %v3550 = vld [vmem:[%s3448 + $0x368] sm:$0xff]
    %v3551 = vld [vmem:[%s3448 + $0x370] sm:$0xff]
    %v3552 = vld [vmem:[%s3448 + $0x378] sm:$0xff]
    %v3553 = vld [vmem:[%s3448 + $0x380] sm:$0xff]
    %v3554 = vld [vmem:[%s3448 + $0x388] sm:$0xff]
    %v3555 = vld [vmem:[%s3448 + $0x390] sm:$0xff]
    %v3556 = vld [vmem:[%s3448 + $0x398] sm:$0xff]
    %v3557 = vld [vmem:[%s3448 + $0x3a0] sm:$0xff]
    %v3558 = vld [vmem:[%s3448 + $0x3a8] sm:$0xff]
    %v3559 = vld [vmem:[%s3448 + $0x3b0] sm:$0xff]
    %v3560 = vld [vmem:[%s3448 + $0x3b8] sm:$0xff]
    %v3561 = vld [vmem:[%s3448 + $0x3c0] sm:$0xff]
    %v3562 = vld [vmem:[%s3448 + $0x3c8] sm:$0xff]
    %v3563 = vld [vmem:[%s3448 + $0x3d0] sm:$0xff]
    %v3564 = vld [vmem:[%s3448 + $0x3d8] sm:$0xff]
    %v3565 = vld [vmem:[%s3448 + $0x3e0] sm:$0xff]
    %v3566 = vld [vmem:[%s3448 + $0x3e8] sm:$0xff]
    %v3567 = vld [vmem:[%s3448 + $0x3f0] sm:$0xff]
    %v3568 = vld [vmem:[%s3448 + $0x3f8] sm:$0xff]
    %v3569 = vld [vmem:[%s3448 + $0x400] sm:$0xff]
    %v3570 = vld [vmem:[%s3448 + $0x408] sm:$0xff]
    %v3571 = vld [vmem:[%s3448 + $0x410] sm:$0xff]
    %v3572 = vld [vmem:[%s3448 + $0x418] sm:$0xff]
    %v3573 = vld [vmem:[%s3448 + $0x420] sm:$0xff]
    %v3574 = vld [vmem:[%s3448 + $0x428] sm:$0xff]
    %v3575 = vld [vmem:[%s3448 + $0x430] sm:$0xff]
    %v3576 = vld [vmem:[%s3448 + $0x438] sm:$0xff]
    %v3577 = vlaneseq
    %v3578 = vshrl.u32 %v3577, 7
    %v3579 = vsub.s32 6, %v3578
    %v3580 = vrot.slane %v860, %v3579
    %v3581 = vmul.f32 %v3449, %v3580
    %v3582 = vmul.f32 %v3450, %v3580
    %v3583 = vmul.f32 %v3451, %v3580
    %v3584 = vmul.f32 %v3453, %v3580
    %v3585 = vmul.f32 %v3454, %v3580
    %v3586 = vmul.f32 %v3455, %v3580
    %v3587 = vmul.f32 %v3457, %v3580
    %v3588 = vmul.f32 %v3458, %v3580
    %v3589 = vmul.f32 %v3459, %v3580
    %v3590 = vmul.f32 %v3461, %v3580
    %v3591 = vmul.f32 %v3462, %v3580
    %v3592 = vmul.f32 %v3463, %v3580
    %v3593 = vmul.f32 %v3465, %v3580
    %v3594 = vmul.f32 %v3466, %v3580
    %v3595 = vmul.f32 %v3467, %v3580
    %v3596 = vmul.f32 %v3469, %v3580
    %v3597 = vmul.f32 %v3470, %v3580
    %v3598 = vmul.f32 %v3471, %v3580
    %v3599 = vmul.f32 %v3473, %v3580
    %v3600 = vmul.f32 %v3474, %v3580
    %v3601 = vmul.f32 %v3475, %v3580
    %v3602 = vmul.f32 %v3477, %v3580
    %v3603 = vmul.f32 %v3478, %v3580
    %v3604 = vmul.f32 %v3479, %v3580
    %v3605 = vmul.f32 %v3481, %v3580
    %v3606 = vmul.f32 %v3482, %v3580
    %v3607 = vmul.f32 %v3483, %v3580
    %v3608 = vmul.f32 %v3485, %v3580
    %v3609 = vmul.f32 %v3486, %v3580
    %v3610 = vmul.f32 %v3487, %v3580
    %v3611 = vmul.f32 %v3489, %v3580
    %v3612 = vmul.f32 %v3490, %v3580
    %v3613 = vmul.f32 %v3491, %v3580
    %v3614 = vmul.f32 %v3493, %v3580
    %v3615 = vmul.f32 %v3494, %v3580
    %v3616 = vmul.f32 %v3495, %v3580
    %v3617 = vmul.f32 %v3497, %v3580
    %v3618 = vmul.f32 %v3498, %v3580
    %v3619 = vmul.f32 %v3499, %v3580
    %v3620 = vmul.f32 %v3501, %v3580
    %v3621 = vmul.f32 %v3502, %v3580
    %v3622 = vmul.f32 %v3503, %v3580
    %v3623 = vmul.f32 %v3505, %v3580
    %v3624 = vmul.f32 %v3506, %v3580
    %v3625 = vmul.f32 %v3507, %v3580
    %v3626 = vmul.f32 %v3509, %v3580
    %v3627 = vmul.f32 %v3510, %v3580
    %v3628 = vmul.f32 %v3511, %v3580
    %v3629 = vmul.f32 %v3513, %v3580
    %v3630 = vmul.f32 %v3514, %v3580
    %v3631 = vmul.f32 %v3515, %v3580
    %v3632 = vmul.f32 %v3517, %v3580
    %v3633 = vmul.f32 %v3518, %v3580
    %v3634 = vmul.f32 %v3519, %v3580
    %v3635 = vmul.f32 %v3521, %v3580
    %v3636 = vmul.f32 %v3522, %v3580
    %v3637 = vmul.f32 %v3523, %v3580
    %v3638 = vmul.f32 %v3525, %v3580
    %v3639 = vmul.f32 %v3526, %v3580
    %v3640 = vmul.f32 %v3527, %v3580
    %v3641 = vmul.f32 %v3529, %v3580
    %v3642 = vmul.f32 %v3530, %v3580
    %v3643 = vmul.f32 %v3531, %v3580
    %v3644 = vmul.f32 %v3533, %v3580
    %v3645 = vmul.f32 %v3534, %v3580
    %v3646 = vmul.f32 %v3535, %v3580
    %v3647 = vmul.f32 %v3537, %v3580
    %v3648 = vmul.f32 %v3538, %v3580
    %v3649 = vmul.f32 %v3539, %v3580
    %v3650 = vmul.f32 %v3541, %v3580
    %v3651 = vmul.f32 %v3542, %v3580
    %v3652 = vmul.f32 %v3543, %v3580
    %v3653 = vmul.f32 %v3545, %v3580
    %v3654 = vmul.f32 %v3546, %v3580
    %v3655 = vmul.f32 %v3547, %v3580
    %v3656 = vmul.f32 %v3549, %v3580
    %v3657 = vmul.f32 %v3550, %v3580
    %v3658 = vmul.f32 %v3551, %v3580
    %v3659 = vmul.f32 %v3553, %v3580
    %v3660 = vmul.f32 %v3554, %v3580
    %v3661 = vmul.f32 %v3555, %v3580
    %v3662 = vmul.f32 %v3557, %v3580
    %v3663 = vmul.f32 %v3558, %v3580
    %v3664 = vmul.f32 %v3559, %v3580
    %v3665 = vmul.f32 %v3561, %v3580
    %v3666 = vmul.f32 %v3562, %v3580
    %v3667 = vmul.f32 %v3563, %v3580
    %v3668 = vmul.f32 %v3565, %v3580
    %v3669 = vmul.f32 %v3566, %v3580
    %v3670 = vmul.f32 %v3567, %v3580
    %v3671 = vmul.f32 %v3569, %v3580
    %v3672 = vmul.f32 %v3570, %v3580
    %v3673 = vmul.f32 %v3571, %v3580
    %v3674 = vmul.f32 %v3573, %v3580
    %v3675 = vmul.f32 %v3574, %v3580
    %v3676 = vmul.f32 %v3575, %v3580
    %v3677 = vadd.f32 %v3352, %v3581
    %v3678 = vadd.f32 %v3353, %v3582
    %v3679 = vadd.f32 %v3354, %v3583
    %v3680 = vadd.f32 %v3355, %v3584
    %v3681 = vadd.f32 %v3356, %v3585
    %v3682 = vadd.f32 %v3357, %v3586
    %v3683 = vadd.f32 %v3358, %v3587
    %v3684 = vadd.f32 %v3359, %v3588
    %v3685 = vadd.f32 %v3360, %v3589
    %v3686 = vadd.f32 %v3361, %v3590
    %v3687 = vadd.f32 %v3362, %v3591
    %v3688 = vadd.f32 %v3363, %v3592
    %v3689 = vadd.f32 %v3364, %v3593
    %v3690 = vadd.f32 %v3365, %v3594
    %v3691 = vadd.f32 %v3366, %v3595
    %v3692 = vadd.f32 %v3367, %v3596
    %v3693 = vadd.f32 %v3368, %v3597
    %v3694 = vadd.f32 %v3369, %v3598
    %v3695 = vadd.f32 %v3370, %v3599
    %v3696 = vadd.f32 %v3371, %v3600
    %v3697 = vadd.f32 %v3372, %v3601
    %v3698 = vadd.f32 %v3373, %v3602
    %v3699 = vadd.f32 %v3374, %v3603
    %v3700 = vadd.f32 %v3375, %v3604
    %v3701 = vadd.f32 %v3376, %v3605
    %v3702 = vadd.f32 %v3377, %v3606
    %v3703 = vadd.f32 %v3378, %v3607
    %v3704 = vadd.f32 %v3379, %v3608
    %v3705 = vadd.f32 %v3380, %v3609
    %v3706 = vadd.f32 %v3381, %v3610
    %v3707 = vadd.f32 %v3382, %v3611
    %v3708 = vadd.f32 %v3383, %v3612
    %v3709 = vadd.f32 %v3384, %v3613
    %v3710 = vadd.f32 %v3385, %v3614
    %v3711 = vadd.f32 %v3386, %v3615
    %v3712 = vadd.f32 %v3387, %v3616
    %v3713 = vadd.f32 %v3388, %v3617
    %v3714 = vadd.f32 %v3389, %v3618
    %v3715 = vadd.f32 %v3390, %v3619
    %v3716 = vadd.f32 %v3391, %v3620
    %v3717 = vadd.f32 %v3392, %v3621
    %v3718 = vadd.f32 %v3393, %v3622
    %v3719 = vadd.f32 %v3394, %v3623
    %v3720 = vadd.f32 %v3395, %v3624
    %v3721 = vadd.f32 %v3396, %v3625
    %v3722 = vadd.f32 %v3397, %v3626
    %v3723 = vadd.f32 %v3398, %v3627
    %v3724 = vadd.f32 %v3399, %v3628
    %v3725 = vadd.f32 %v3400, %v3629
    %v3726 = vadd.f32 %v3401, %v3630
    %v3727 = vadd.f32 %v3402, %v3631
    %v3728 = vadd.f32 %v3403, %v3632
    %v3729 = vadd.f32 %v3404, %v3633
    %v3730 = vadd.f32 %v3405, %v3634
    %v3731 = vadd.f32 %v3406, %v3635
    %v3732 = vadd.f32 %v3407, %v3636
    %v3733 = vadd.f32 %v3408, %v3637
    %v3734 = vadd.f32 %v3409, %v3638
    %v3735 = vadd.f32 %v3410, %v3639
    %v3736 = vadd.f32 %v3411, %v3640
    %v3737 = vadd.f32 %v3412, %v3641
    %v3738 = vadd.f32 %v3413, %v3642
    %v3739 = vadd.f32 %v3414, %v3643
    %v3740 = vadd.f32 %v3415, %v3644
    %v3741 = vadd.f32 %v3416, %v3645
    %v3742 = vadd.f32 %v3417, %v3646
    %v3743 = vadd.f32 %v3418, %v3647
    %v3744 = vadd.f32 %v3419, %v3648
    %v3745 = vadd.f32 %v3420, %v3649
    %v3746 = vadd.f32 %v3421, %v3650
    %v3747 = vadd.f32 %v3422, %v3651
    %v3748 = vadd.f32 %v3423, %v3652
    %v3749 = vadd.f32 %v3424, %v3653
    %v3750 = vadd.f32 %v3425, %v3654
    %v3751 = vadd.f32 %v3426, %v3655
    %v3752 = vadd.f32 %v3427, %v3656
    %v3753 = vadd.f32 %v3428, %v3657
    %v3754 = vadd.f32 %v3429, %v3658
    %v3755 = vadd.f32 %v3430, %v3659
    %v3756 = vadd.f32 %v3431, %v3660
    %v3757 = vadd.f32 %v3432, %v3661
    %v3758 = vadd.f32 %v3433, %v3662
    %v3759 = vadd.f32 %v3434, %v3663
    %v3760 = vadd.f32 %v3435, %v3664
    %v3761 = vadd.f32 %v3436, %v3665
    %v3762 = vadd.f32 %v3437, %v3666
    %v3763 = vadd.f32 %v3438, %v3667
    %v3764 = vadd.f32 %v3439, %v3668
    %v3765 = vadd.f32 %v3440, %v3669
    %v3766 = vadd.f32 %v3441, %v3670
    %v3767 = vadd.f32 %v3442, %v3671
    %v3768 = vadd.f32 %v3443, %v3672
    %v3769 = vadd.f32 %v3444, %v3673
    %v3770 = vadd.f32 %v3445, %v3674
    %v3771 = vadd.f32 %v3446, %v3675
    %v3772 = vadd.f32 %v3447, %v3676
    %v3773 = vlaneseq
    %v3774 = vshrl.u32 %v3773, 7
    %v3775 = vsub.s32 7, %v3774
    %v3776 = vrot.slane %v860, %v3775
    %v3777 = vmul.f32 %v3450, %v3776
    %v3778 = vmul.f32 %v3451, %v3776
    %v3779 = vmul.f32 %v3454, %v3776
    %v3780 = vmul.f32 %v3455, %v3776
    %v3781 = vmul.f32 %v3458, %v3776
    %v3782 = vmul.f32 %v3459, %v3776
    %v3783 = vmul.f32 %v3462, %v3776
    %v3784 = vmul.f32 %v3463, %v3776
    %v3785 = vmul.f32 %v3466, %v3776
    %v3786 = vmul.f32 %v3467, %v3776
    %v3787 = vmul.f32 %v3470, %v3776
    %v3788 = vmul.f32 %v3471, %v3776
    %v3789 = vmul.f32 %v3474, %v3776
    %v3790 = vmul.f32 %v3475, %v3776
    %v3791 = vmul.f32 %v3478, %v3776
    %v3792 = vmul.f32 %v3479, %v3776
    %v3793 = vmul.f32 %v3482, %v3776
    %v3794 = vmul.f32 %v3483, %v3776
    %v3795 = vmul.f32 %v3486, %v3776
    %v3796 = vmul.f32 %v3487, %v3776
    %v3797 = vmul.f32 %v3490, %v3776
    %v3798 = vmul.f32 %v3491, %v3776
    %v3799 = vmul.f32 %v3494, %v3776
    %v3800 = vmul.f32 %v3495, %v3776
    %v3801 = vmul.f32 %v3498, %v3776
    %v3802 = vmul.f32 %v3499, %v3776
    %v3803 = vmul.f32 %v3502, %v3776
    %v3804 = vmul.f32 %v3503, %v3776
    %v3805 = vmul.f32 %v3506, %v3776
    %v3806 = vmul.f32 %v3507, %v3776
    %v3807 = vmul.f32 %v3510, %v3776
    %v3808 = vmul.f32 %v3511, %v3776
    %v3809 = vmul.f32 %v3514, %v3776
    %v3810 = vmul.f32 %v3515, %v3776
    %v3811 = vmul.f32 %v3518, %v3776
    %v3812 = vmul.f32 %v3519, %v3776
    %v3813 = vmul.f32 %v3522, %v3776
    %v3814 = vmul.f32 %v3523, %v3776
    %v3815 = vmul.f32 %v3526, %v3776
    %v3816 = vmul.f32 %v3527, %v3776
    %v3817 = vmul.f32 %v3530, %v3776
    %v3818 = vmul.f32 %v3531, %v3776
    %v3819 = vmul.f32 %v3534, %v3776
    %v3820 = vmul.f32 %v3535, %v3776
    %v3821 = vmul.f32 %v3538, %v3776
    %v3822 = vmul.f32 %v3539, %v3776
    %v3823 = vmul.f32 %v3542, %v3776
    %v3824 = vmul.f32 %v3543, %v3776
    %v3825 = vmul.f32 %v3546, %v3776
    %v3826 = vmul.f32 %v3547, %v3776
    %v3827 = vmul.f32 %v3550, %v3776
    %v3828 = vmul.f32 %v3551, %v3776
    %v3829 = vmul.f32 %v3554, %v3776
    %v3830 = vmul.f32 %v3555, %v3776
    %v3831 = vmul.f32 %v3558, %v3776
    %v3832 = vmul.f32 %v3559, %v3776
    %v3833 = vmul.f32 %v3562, %v3776
    %v3834 = vmul.f32 %v3563, %v3776
    %v3835 = vmul.f32 %v3566, %v3776
    %v3836 = vmul.f32 %v3567, %v3776
    %v3837 = vmul.f32 %v3570, %v3776
    %v3838 = vmul.f32 %v3571, %v3776
    %v3839 = vmul.f32 %v3574, %v3776
    %v3840 = vmul.f32 %v3575, %v3776
    %v3905 = vrot.slane %v3777, 1
    %v3906 = vrot.slane %v3778, 1
    %v3907 = vsel %vm1318, %v3905, %v3906
    %v3908 = vrot.slane %v3779, 1
    %v3909 = vrot.slane %v3780, 1
    %v3910 = vsel %vm1318, %v3908, %v3909
    %v3911 = vrot.slane %v3781, 1
    %v3912 = vrot.slane %v3782, 1
    %v3913 = vsel %vm1318, %v3911, %v3912
    %v3914 = vrot.slane %v3783, 1
    %v3915 = vrot.slane %v3784, 1
    %v3916 = vsel %vm1318, %v3914, %v3915
    %v3917 = vrot.slane %v3785, 1
    %v3918 = vrot.slane %v3786, 1
    %v3919 = vsel %vm1318, %v3917, %v3918
    %v3920 = vrot.slane %v3787, 1
    %v3921 = vrot.slane %v3788, 1
    %v3922 = vsel %vm1318, %v3920, %v3921
    %v3923 = vrot.slane %v3789, 1
    %v3924 = vrot.slane %v3790, 1
    %v3925 = vsel %vm1318, %v3923, %v3924
    %v3926 = vrot.slane %v3791, 1
    %v3927 = vrot.slane %v3792, 1
    %v3928 = vsel %vm1318, %v3926, %v3927
    %v3929 = vrot.slane %v3793, 1
    %v3930 = vrot.slane %v3794, 1
    %v3931 = vsel %vm1318, %v3929, %v3930
    %v3932 = vrot.slane %v3795, 1
    %v3933 = vrot.slane %v3796, 1
    %v3934 = vsel %vm1318, %v3932, %v3933
    %v3935 = vrot.slane %v3797, 1
    %v3936 = vrot.slane %v3798, 1
    %v3937 = vsel %vm1318, %v3935, %v3936
    %v3938 = vrot.slane %v3799, 1
    %v3939 = vrot.slane %v3800, 1
    %v3940 = vsel %vm1318, %v3938, %v3939
    %v3941 = vrot.slane %v3801, 1
    %v3942 = vrot.slane %v3802, 1
    %v3943 = vsel %vm1318, %v3941, %v3942
    %v3944 = vrot.slane %v3803, 1
    %v3945 = vrot.slane %v3804, 1
    %v3946 = vsel %vm1318, %v3944, %v3945
    %v3947 = vrot.slane %v3805, 1
    %v3948 = vrot.slane %v3806, 1
    %v3949 = vsel %vm1318, %v3947, %v3948
    %v3950 = vrot.slane %v3807, 1
    %v3951 = vrot.slane %v3808, 1
    %v3952 = vsel %vm1318, %v3950, %v3951
    %v3953 = vrot.slane %v3809, 1
    %v3954 = vrot.slane %v3810, 1
    %v3955 = vsel %vm1318, %v3953, %v3954
    %v3956 = vrot.slane %v3811, 1
    %v3957 = vrot.slane %v3812, 1
    %v3958 = vsel %vm1318, %v3956, %v3957
    %v3959 = vrot.slane %v3813, 1
    %v3960 = vrot.slane %v3814, 1
    %v3961 = vsel %vm1318, %v3959, %v3960
    %v3962 = vrot.slane %v3815, 1
    %v3963 = vrot.slane %v3816, 1
    %v3964 = vsel %vm1318, %v3962, %v3963
    %v3965 = vrot.slane %v3817, 1
    %v3966 = vrot.slane %v3818, 1
    %v3967 = vsel %vm1318, %v3965, %v3966
    %v3968 = vrot.slane %v3819, 1
    %v3969 = vrot.slane %v3820, 1
    %v3970 = vsel %vm1318, %v3968, %v3969
    %v3971 = vrot.slane %v3821, 1
    %v3972 = vrot.slane %v3822, 1
    %v3973 = vsel %vm1318, %v3971, %v3972
    %v3974 = vrot.slane %v3823, 1
    %v3975 = vrot.slane %v3824, 1
    %v3976 = vsel %vm1318, %v3974, %v3975
    %v3977 = vrot.slane %v3825, 1
    %v3978 = vrot.slane %v3826, 1
    %v3979 = vsel %vm1318, %v3977, %v3978
    %v3980 = vrot.slane %v3827, 1
    %v3981 = vrot.slane %v3828, 1
    %v3982 = vsel %vm1318, %v3980, %v3981
    %v3983 = vrot.slane %v3829, 1
    %v3984 = vrot.slane %v3830, 1
    %v3985 = vsel %vm1318, %v3983, %v3984
    %v3986 = vrot.slane %v3831, 1
    %v3987 = vrot.slane %v3832, 1
    %v3988 = vsel %vm1318, %v3986, %v3987
    %v3989 = vrot.slane %v3833, 1
    %v3990 = vrot.slane %v3834, 1
    %v3991 = vsel %vm1318, %v3989, %v3990
    %v3992 = vrot.slane %v3835, 1
    %v3993 = vrot.slane %v3836, 1
    %v3994 = vsel %vm1318, %v3992, %v3993
    %v3995 = vrot.slane %v3837, 1
    %v3996 = vrot.slane %v3838, 1
    %v3997 = vsel %vm1318, %v3995, %v3996
    %v3998 = vrot.slane %v3839, 1
    %v3999 = vrot.slane %v3840, 1
    %v4000 = vsel %vm1318, %v3998, %v3999
    %v4097 = vadd.f32 %v3677, %v3905
    %v4098 = vadd.f32 %v3678, %v3907
    %v4099 = vadd.f32 %v3679, %v3906
    %v4100 = vadd.f32 %v3680, %v3908
    %v4101 = vadd.f32 %v3681, %v3910
    %v4102 = vadd.f32 %v3682, %v3909
    %v4103 = vadd.f32 %v3683, %v3911
    %v4104 = vadd.f32 %v3684, %v3913
    %v4105 = vadd.f32 %v3685, %v3912
    %v4106 = vadd.f32 %v3686, %v3914
    %v4107 = vadd.f32 %v3687, %v3916
    %v4108 = vadd.f32 %v3688, %v3915
    %v4109 = vadd.f32 %v3689, %v3917
    %v4110 = vadd.f32 %v3690, %v3919
    %v4111 = vadd.f32 %v3691, %v3918
    %v4112 = vadd.f32 %v3692, %v3920
    %v4113 = vadd.f32 %v3693, %v3922
    %v4114 = vadd.f32 %v3694, %v3921
    %v4115 = vadd.f32 %v3695, %v3923
    %v4116 = vadd.f32 %v3696, %v3925
    %v4117 = vadd.f32 %v3697, %v3924
    %v4118 = vadd.f32 %v3698, %v3926
    %v4119 = vadd.f32 %v3699, %v3928
    %v4120 = vadd.f32 %v3700, %v3927
    %v4121 = vadd.f32 %v3701, %v3929
    %v4122 = vadd.f32 %v3702, %v3931
    %v4123 = vadd.f32 %v3703, %v3930
    %v4124 = vadd.f32 %v3704, %v3932
    %v4125 = vadd.f32 %v3705, %v3934
    %v4126 = vadd.f32 %v3706, %v3933
    %v4127 = vadd.f32 %v3707, %v3935
    %v4128 = vadd.f32 %v3708, %v3937
    %v4129 = vadd.f32 %v3709, %v3936
    %v4130 = vadd.f32 %v3710, %v3938
    %v4131 = vadd.f32 %v3711, %v3940
    %v4132 = vadd.f32 %v3712, %v3939
    %v4133 = vadd.f32 %v3713, %v3941
    %v4134 = vadd.f32 %v3714, %v3943
    %v4135 = vadd.f32 %v3715, %v3942
    %v4136 = vadd.f32 %v3716, %v3944
    %v4137 = vadd.f32 %v3717, %v3946
    %v4138 = vadd.f32 %v3718, %v3945
    %v4139 = vadd.f32 %v3719, %v3947
    %v4140 = vadd.f32 %v3720, %v3949
    %v4141 = vadd.f32 %v3721, %v3948
    %v4142 = vadd.f32 %v3722, %v3950
    %v4143 = vadd.f32 %v3723, %v3952
    %v4144 = vadd.f32 %v3724, %v3951
    %v4145 = vadd.f32 %v3725, %v3953
    %v4146 = vadd.f32 %v3726, %v3955
    %v4147 = vadd.f32 %v3727, %v3954
    %v4148 = vadd.f32 %v3728, %v3956
    %v4149 = vadd.f32 %v3729, %v3958
    %v4150 = vadd.f32 %v3730, %v3957
    %v4151 = vadd.f32 %v3731, %v3959
    %v4152 = vadd.f32 %v3732, %v3961
    %v4153 = vadd.f32 %v3733, %v3960
    %v4154 = vadd.f32 %v3734, %v3962
    %v4155 = vadd.f32 %v3735, %v3964
    %v4156 = vadd.f32 %v3736, %v3963
    %v4157 = vadd.f32 %v3737, %v3965
    %v4158 = vadd.f32 %v3738, %v3967
    %v4159 = vadd.f32 %v3739, %v3966
    %v4160 = vadd.f32 %v3740, %v3968
    %v4161 = vadd.f32 %v3741, %v3970
    %v4162 = vadd.f32 %v3742, %v3969
    %v4163 = vadd.f32 %v3743, %v3971
    %v4164 = vadd.f32 %v3744, %v3973
    %v4165 = vadd.f32 %v3745, %v3972
    %v4166 = vadd.f32 %v3746, %v3974
    %v4167 = vadd.f32 %v3747, %v3976
    %v4168 = vadd.f32 %v3748, %v3975
    %v4169 = vadd.f32 %v3749, %v3977
    %v4170 = vadd.f32 %v3750, %v3979
    %v4171 = vadd.f32 %v3751, %v3978
    %v4172 = vadd.f32 %v3752, %v3980
    %v4173 = vadd.f32 %v3753, %v3982
    %v4174 = vadd.f32 %v3754, %v3981
    %v4175 = vadd.f32 %v3755, %v3983
    %v4176 = vadd.f32 %v3756, %v3985
    %v4177 = vadd.f32 %v3757, %v3984
    %v4178 = vadd.f32 %v3758, %v3986
    %v4179 = vadd.f32 %v3759, %v3988
    %v4180 = vadd.f32 %v3760, %v3987
    %v4181 = vadd.f32 %v3761, %v3989
    %v4182 = vadd.f32 %v3762, %v3991
    %v4183 = vadd.f32 %v3763, %v3990
    %v4184 = vadd.f32 %v3764, %v3992
    %v4185 = vadd.f32 %v3765, %v3994
    %v4186 = vadd.f32 %v3766, %v3993
    %v4187 = vadd.f32 %v3767, %v3995
    %v4188 = vadd.f32 %v3768, %v3997
    %v4189 = vadd.f32 %v3769, %v3996
    %v4190 = vadd.f32 %v3770, %v3998
    %v4191 = vadd.f32 %v3771, %v4000
    %v4192 = vadd.f32 %v3772, %v3999
    %v4193 = vlaneseq
    %v4194 = vshrl.u32 %v4193, 7
    %v4195 = vsub.s32 0, %v4194
    %v4196 = vrot.slane %v861, %v4195
    %v4197 = vmul.f32 %v3450, %v4196
    %v4198 = vmul.f32 %v3451, %v4196
    %v4199 = vmul.f32 %v3452, %v4196
    %v4200 = vmul.f32 %v3454, %v4196
    %v4201 = vmul.f32 %v3455, %v4196
    %v4202 = vmul.f32 %v3456, %v4196
    %v4203 = vmul.f32 %v3458, %v4196
    %v4204 = vmul.f32 %v3459, %v4196
    %v4205 = vmul.f32 %v3460, %v4196
    %v4206 = vmul.f32 %v3462, %v4196
    %v4207 = vmul.f32 %v3463, %v4196
    %v4208 = vmul.f32 %v3464, %v4196
    %v4209 = vmul.f32 %v3466, %v4196
    %v4210 = vmul.f32 %v3467, %v4196
    %v4211 = vmul.f32 %v3468, %v4196
    %v4212 = vmul.f32 %v3470, %v4196
    %v4213 = vmul.f32 %v3471, %v4196
    %v4214 = vmul.f32 %v3472, %v4196
    %v4215 = vmul.f32 %v3474, %v4196
    %v4216 = vmul.f32 %v3475, %v4196
    %v4217 = vmul.f32 %v3476, %v4196
    %v4218 = vmul.f32 %v3478, %v4196
    %v4219 = vmul.f32 %v3479, %v4196
    %v4220 = vmul.f32 %v3480, %v4196
    %v4221 = vmul.f32 %v3482, %v4196
    %v4222 = vmul.f32 %v3483, %v4196
    %v4223 = vmul.f32 %v3484, %v4196
    %v4224 = vmul.f32 %v3486, %v4196
    %v4225 = vmul.f32 %v3487, %v4196
    %v4226 = vmul.f32 %v3488, %v4196
    %v4227 = vmul.f32 %v3490, %v4196
    %v4228 = vmul.f32 %v3491, %v4196
    %v4229 = vmul.f32 %v3492, %v4196
    %v4230 = vmul.f32 %v3494, %v4196
    %v4231 = vmul.f32 %v3495, %v4196
    %v4232 = vmul.f32 %v3496, %v4196
    %v4233 = vmul.f32 %v3498, %v4196
    %v4234 = vmul.f32 %v3499, %v4196
    %v4235 = vmul.f32 %v3500, %v4196
    %v4236 = vmul.f32 %v3502, %v4196
    %v4237 = vmul.f32 %v3503, %v4196
    %v4238 = vmul.f32 %v3504, %v4196
    %v4239 = vmul.f32 %v3506, %v4196
    %v4240 = vmul.f32 %v3507, %v4196
    %v4241 = vmul.f32 %v3508, %v4196
    %v4242 = vmul.f32 %v3510, %v4196
    %v4243 = vmul.f32 %v3511, %v4196
    %v4244 = vmul.f32 %v3512, %v4196
    %v4245 = vmul.f32 %v3514, %v4196
    %v4246 = vmul.f32 %v3515, %v4196
    %v4247 = vmul.f32 %v3516, %v4196
    %v4248 = vmul.f32 %v3518, %v4196
    %v4249 = vmul.f32 %v3519, %v4196
    %v4250 = vmul.f32 %v3520, %v4196
    %v4251 = vmul.f32 %v3522, %v4196
    %v4252 = vmul.f32 %v3523, %v4196
    %v4253 = vmul.f32 %v3524, %v4196
    %v4254 = vmul.f32 %v3526, %v4196
    %v4255 = vmul.f32 %v3527, %v4196
    %v4256 = vmul.f32 %v3528, %v4196
    %v4257 = vmul.f32 %v3530, %v4196
    %v4258 = vmul.f32 %v3531, %v4196
    %v4259 = vmul.f32 %v3532, %v4196
    %v4260 = vmul.f32 %v3534, %v4196
    %v4261 = vmul.f32 %v3535, %v4196
    %v4262 = vmul.f32 %v3536, %v4196
    %v4263 = vmul.f32 %v3538, %v4196
    %v4264 = vmul.f32 %v3539, %v4196
    %v4265 = vmul.f32 %v3540, %v4196
    %v4266 = vmul.f32 %v3542, %v4196
    %v4267 = vmul.f32 %v3543, %v4196
    %v4268 = vmul.f32 %v3544, %v4196
    %v4269 = vmul.f32 %v3546, %v4196
    %v4270 = vmul.f32 %v3547, %v4196
    %v4271 = vmul.f32 %v3548, %v4196
    %v4272 = vmul.f32 %v3550, %v4196
    %v4273 = vmul.f32 %v3551, %v4196
    %v4274 = vmul.f32 %v3552, %v4196
    %v4275 = vmul.f32 %v3554, %v4196
    %v4276 = vmul.f32 %v3555, %v4196
    %v4277 = vmul.f32 %v3556, %v4196
    %v4278 = vmul.f32 %v3558, %v4196
    %v4279 = vmul.f32 %v3559, %v4196
    %v4280 = vmul.f32 %v3560, %v4196
    %v4281 = vmul.f32 %v3562, %v4196
    %v4282 = vmul.f32 %v3563, %v4196
    %v4283 = vmul.f32 %v3564, %v4196
    %v4284 = vmul.f32 %v3566, %v4196
    %v4285 = vmul.f32 %v3567, %v4196
    %v4286 = vmul.f32 %v3568, %v4196
    %v4287 = vmul.f32 %v3570, %v4196
    %v4288 = vmul.f32 %v3571, %v4196
    %v4289 = vmul.f32 %v3572, %v4196
    %v4290 = vmul.f32 %v3574, %v4196
    %v4291 = vmul.f32 %v3575, %v4196
    %v4292 = vmul.f32 %v3576, %v4196
    %v4389 = vrot.slane %v4197, 2
    %v4390 = vrot.slane %v4198, 2
    %v4391 = vsel %vm1803, %v4389, %v4390
    %v4392 = vrot.slane %v4199, 2
    %v4393 = vsel %vm1803, %v4390, %v4392
    %v4394 = vrot.slane %v4200, 2
    %v4395 = vrot.slane %v4201, 2
    %v4396 = vsel %vm1803, %v4394, %v4395
    %v4397 = vrot.slane %v4202, 2
    %v4398 = vsel %vm1803, %v4395, %v4397
    %v4399 = vrot.slane %v4203, 2
    %v4400 = vrot.slane %v4204, 2
    %v4401 = vsel %vm1803, %v4399, %v4400
    %v4402 = vrot.slane %v4205, 2
    %v4403 = vsel %vm1803, %v4400, %v4402
    %v4404 = vrot.slane %v4206, 2
    %v4405 = vrot.slane %v4207, 2
    %v4406 = vsel %vm1803, %v4404, %v4405
    %v4407 = vrot.slane %v4208, 2
    %v4408 = vsel %vm1803, %v4405, %v4407
    %v4409 = vrot.slane %v4209, 2
    %v4410 = vrot.slane %v4210, 2
    %v4411 = vsel %vm1803, %v4409, %v4410
    %v4412 = vrot.slane %v4211, 2
    %v4413 = vsel %vm1803, %v4410, %v4412
    %v4414 = vrot.slane %v4212, 2
    %v4415 = vrot.slane %v4213, 2
    %v4416 = vsel %vm1803, %v4414, %v4415
    %v4417 = vrot.slane %v4214, 2
    %v4418 = vsel %vm1803, %v4415, %v4417
    %v4419 = vrot.slane %v4215, 2
    %v4420 = vrot.slane %v4216, 2
    %v4421 = vsel %vm1803, %v4419, %v4420
    %v4422 = vrot.slane %v4217, 2
    %v4423 = vsel %vm1803, %v4420, %v4422
    %v4424 = vrot.slane %v4218, 2
    %v4425 = vrot.slane %v4219, 2
    %v4426 = vsel %vm1803, %v4424, %v4425
    %v4427 = vrot.slane %v4220, 2
    %v4428 = vsel %vm1803, %v4425, %v4427
    %v4429 = vrot.slane %v4221, 2
    %v4430 = vrot.slane %v4222, 2
    %v4431 = vsel %vm1803, %v4429, %v4430
    %v4432 = vrot.slane %v4223, 2
    %v4433 = vsel %vm1803, %v4430, %v4432
    %v4434 = vrot.slane %v4224, 2
    %v4435 = vrot.slane %v4225, 2
    %v4436 = vsel %vm1803, %v4434, %v4435
    %v4437 = vrot.slane %v4226, 2
    %v4438 = vsel %vm1803, %v4435, %v4437
    %v4439 = vrot.slane %v4227, 2
    %v4440 = vrot.slane %v4228, 2
    %v4441 = vsel %vm1803, %v4439, %v4440
    %v4442 = vrot.slane %v4229, 2
    %v4443 = vsel %vm1803, %v4440, %v4442
    %v4444 = vrot.slane %v4230, 2
    %v4445 = vrot.slane %v4231, 2
    %v4446 = vsel %vm1803, %v4444, %v4445
    %v4447 = vrot.slane %v4232, 2
    %v4448 = vsel %vm1803, %v4445, %v4447
    %v4449 = vrot.slane %v4233, 2
    %v4450 = vrot.slane %v4234, 2
    %v4451 = vsel %vm1803, %v4449, %v4450
    %v4452 = vrot.slane %v4235, 2
    %v4453 = vsel %vm1803, %v4450, %v4452
    %v4454 = vrot.slane %v4236, 2
    %v4455 = vrot.slane %v4237, 2
    %v4456 = vsel %vm1803, %v4454, %v4455
    %v4457 = vrot.slane %v4238, 2
    %v4458 = vsel %vm1803, %v4455, %v4457
    %v4459 = vrot.slane %v4239, 2
    %v4460 = vrot.slane %v4240, 2
    %v4461 = vsel %vm1803, %v4459, %v4460
    %v4462 = vrot.slane %v4241, 2
    %v4463 = vsel %vm1803, %v4460, %v4462
    %v4464 = vrot.slane %v4242, 2
    %v4465 = vrot.slane %v4243, 2
    %v4466 = vsel %vm1803, %v4464, %v4465
    %v4467 = vrot.slane %v4244, 2
    %v4468 = vsel %vm1803, %v4465, %v4467
    %v4469 = vrot.slane %v4245, 2
    %v4470 = vrot.slane %v4246, 2
    %v4471 = vsel %vm1803, %v4469, %v4470
    %v4472 = vrot.slane %v4247, 2
    %v4473 = vsel %vm1803, %v4470, %v4472
    %v4474 = vrot.slane %v4248, 2
    %v4475 = vrot.slane %v4249, 2
    %v4476 = vsel %vm1803, %v4474, %v4475
    %v4477 = vrot.slane %v4250, 2
    %v4478 = vsel %vm1803, %v4475, %v4477
    %v4479 = vrot.slane %v4251, 2
    %v4480 = vrot.slane %v4252, 2
    %v4481 = vsel %vm1803, %v4479, %v4480
    %v4482 = vrot.slane %v4253, 2
    %v4483 = vsel %vm1803, %v4480, %v4482
    %v4484 = vrot.slane %v4254, 2
    %v4485 = vrot.slane %v4255, 2
    %v4486 = vsel %vm1803, %v4484, %v4485
    %v4487 = vrot.slane %v4256, 2
    %v4488 = vsel %vm1803, %v4485, %v4487
    %v4489 = vrot.slane %v4257, 2
    %v4490 = vrot.slane %v4258, 2
    %v4491 = vsel %vm1803, %v4489, %v4490
    %v4492 = vrot.slane %v4259, 2
    %v4493 = vsel %vm1803, %v4490, %v4492
    %v4494 = vrot.slane %v4260, 2
    %v4495 = vrot.slane %v4261, 2
    %v4496 = vsel %vm1803, %v4494, %v4495
    %v4497 = vrot.slane %v4262, 2
    %v4498 = vsel %vm1803, %v4495, %v4497
    %v4499 = vrot.slane %v4263, 2
    %v4500 = vrot.slane %v4264, 2
    %v4501 = vsel %vm1803, %v4499, %v4500
    %v4502 = vrot.slane %v4265, 2
    %v4503 = vsel %vm1803, %v4500, %v4502
    %v4504 = vrot.slane %v4266, 2
    %v4505 = vrot.slane %v4267, 2
    %v4506 = vsel %vm1803, %v4504, %v4505
    %v4507 = vrot.slane %v4268, 2
    %v4508 = vsel %vm1803, %v4505, %v4507
    %v4509 = vrot.slane %v4269, 2
    %v4510 = vrot.slane %v4270, 2
    %v4511 = vsel %vm1803, %v4509, %v4510
    %v4512 = vrot.slane %v4271, 2
    %v4513 = vsel %vm1803, %v4510, %v4512
    %v4514 = vrot.slane %v4272, 2
    %v4515 = vrot.slane %v4273, 2
    %v4516 = vsel %vm1803, %v4514, %v4515
    %v4517 = vrot.slane %v4274, 2
    %v4518 = vsel %vm1803, %v4515, %v4517
    %v4519 = vrot.slane %v4275, 2
    %v4520 = vrot.slane %v4276, 2
    %v4521 = vsel %vm1803, %v4519, %v4520
    %v4522 = vrot.slane %v4277, 2
    %v4523 = vsel %vm1803, %v4520, %v4522
    %v4524 = vrot.slane %v4278, 2
    %v4525 = vrot.slane %v4279, 2
    %v4526 = vsel %vm1803, %v4524, %v4525
    %v4527 = vrot.slane %v4280, 2
    %v4528 = vsel %vm1803, %v4525, %v4527
    %v4529 = vrot.slane %v4281, 2
    %v4530 = vrot.slane %v4282, 2
    %v4531 = vsel %vm1803, %v4529, %v4530
    %v4532 = vrot.slane %v4283, 2
    %v4533 = vsel %vm1803, %v4530, %v4532
    %v4534 = vrot.slane %v4284, 2
    %v4535 = vrot.slane %v4285, 2
    %v4536 = vsel %vm1803, %v4534, %v4535
    %v4537 = vrot.slane %v4286, 2
    %v4538 = vsel %vm1803, %v4535, %v4537
    %v4539 = vrot.slane %v4287, 2
    %v4540 = vrot.slane %v4288, 2
    %v4541 = vsel %vm1803, %v4539, %v4540
    %v4542 = vrot.slane %v4289, 2
    %v4543 = vsel %vm1803, %v4540, %v4542
    %v4544 = vrot.slane %v4290, 2
    %v4545 = vrot.slane %v4291, 2
    %v4546 = vsel %vm1803, %v4544, %v4545
    %v4547 = vrot.slane %v4292, 2
    %v4548 = vsel %vm1803, %v4545, %v4547
    %v4645 = vadd.f32 %v4097, %v4389
    %v4646 = vadd.f32 %v4098, %v4391
    %v4647 = vadd.f32 %v4099, %v4393
    %v4648 = vadd.f32 %v4100, %v4394
    %v4649 = vadd.f32 %v4101, %v4396
    %v4650 = vadd.f32 %v4102, %v4398
    %v4651 = vadd.f32 %v4103, %v4399
    %v4652 = vadd.f32 %v4104, %v4401
    %v4653 = vadd.f32 %v4105, %v4403
    %v4654 = vadd.f32 %v4106, %v4404
    %v4655 = vadd.f32 %v4107, %v4406
    %v4656 = vadd.f32 %v4108, %v4408
    %v4657 = vadd.f32 %v4109, %v4409
    %v4658 = vadd.f32 %v4110, %v4411
    %v4659 = vadd.f32 %v4111, %v4413
    %v4660 = vadd.f32 %v4112, %v4414
    %v4661 = vadd.f32 %v4113, %v4416
    %v4662 = vadd.f32 %v4114, %v4418
    %v4663 = vadd.f32 %v4115, %v4419
    %v4664 = vadd.f32 %v4116, %v4421
    %v4665 = vadd.f32 %v4117, %v4423
    %v4666 = vadd.f32 %v4118, %v4424
    %v4667 = vadd.f32 %v4119, %v4426
    %v4668 = vadd.f32 %v4120, %v4428
    %v4669 = vadd.f32 %v4121, %v4429
    %v4670 = vadd.f32 %v4122, %v4431
    %v4671 = vadd.f32 %v4123, %v4433
    %v4672 = vadd.f32 %v4124, %v4434
    %v4673 = vadd.f32 %v4125, %v4436
    %v4674 = vadd.f32 %v4126, %v4438
    %v4675 = vadd.f32 %v4127, %v4439
    %v4676 = vadd.f32 %v4128, %v4441
    %v4677 = vadd.f32 %v4129, %v4443
    %v4678 = vadd.f32 %v4130, %v4444
    %v4679 = vadd.f32 %v4131, %v4446
    %v4680 = vadd.f32 %v4132, %v4448
    %v4681 = vadd.f32 %v4133, %v4449
    %v4682 = vadd.f32 %v4134, %v4451
    %v4683 = vadd.f32 %v4135, %v4453
    %v4684 = vadd.f32 %v4136, %v4454
    %v4685 = vadd.f32 %v4137, %v4456
    %v4686 = vadd.f32 %v4138, %v4458
    %v4687 = vadd.f32 %v4139, %v4459
    %v4688 = vadd.f32 %v4140, %v4461
    %v4689 = vadd.f32 %v4141, %v4463
    %v4690 = vadd.f32 %v4142, %v4464
    %v4691 = vadd.f32 %v4143, %v4466
    %v4692 = vadd.f32 %v4144, %v4468
    %v4693 = vadd.f32 %v4145, %v4469
    %v4694 = vadd.f32 %v4146, %v4471
    %v4695 = vadd.f32 %v4147, %v4473
    %v4696 = vadd.f32 %v4148, %v4474
    %v4697 = vadd.f32 %v4149, %v4476
    %v4698 = vadd.f32 %v4150, %v4478
    %v4699 = vadd.f32 %v4151, %v4479
    %v4700 = vadd.f32 %v4152, %v4481
    %v4701 = vadd.f32 %v4153, %v4483
    %v4702 = vadd.f32 %v4154, %v4484
    %v4703 = vadd.f32 %v4155, %v4486
    %v4704 = vadd.f32 %v4156, %v4488
    %v4705 = vadd.f32 %v4157, %v4489
    %v4706 = vadd.f32 %v4158, %v4491
    %v4707 = vadd.f32 %v4159, %v4493
    %v4708 = vadd.f32 %v4160, %v4494
    %v4709 = vadd.f32 %v4161, %v4496
    %v4710 = vadd.f32 %v4162, %v4498
    %v4711 = vadd.f32 %v4163, %v4499
    %v4712 = vadd.f32 %v4164, %v4501
    %v4713 = vadd.f32 %v4165, %v4503
    %v4714 = vadd.f32 %v4166, %v4504
    %v4715 = vadd.f32 %v4167, %v4506
    %v4716 = vadd.f32 %v4168, %v4508
    %v4717 = vadd.f32 %v4169, %v4509
    %v4718 = vadd.f32 %v4170, %v4511
    %v4719 = vadd.f32 %v4171, %v4513
    %v4720 = vadd.f32 %v4172, %v4514
    %v4721 = vadd.f32 %v4173, %v4516
    %v4722 = vadd.f32 %v4174, %v4518
    %v4723 = vadd.f32 %v4175, %v4519
    %v4724 = vadd.f32 %v4176, %v4521
    %v4725 = vadd.f32 %v4177, %v4523
    %v4726 = vadd.f32 %v4178, %v4524
    %v4727 = vadd.f32 %v4179, %v4526
    %v4728 = vadd.f32 %v4180, %v4528
    %v4729 = vadd.f32 %v4181, %v4529
    %v4730 = vadd.f32 %v4182, %v4531
    %v4731 = vadd.f32 %v4183, %v4533
    %v4732 = vadd.f32 %v4184, %v4534
    %v4733 = vadd.f32 %v4185, %v4536
    %v4734 = vadd.f32 %v4186, %v4538
    %v4735 = vadd.f32 %v4187, %v4539
    %v4736 = vadd.f32 %v4188, %v4541
    %v4737 = vadd.f32 %v4189, %v4543
    %v4738 = vadd.f32 %v4190, %v4544
    %v4739 = vadd.f32 %v4191, %v4546
    %v4740 = vadd.f32 %v4192, %v4548
    %vm4837 = vcmask 1040384
    %v4838 = vrot.slane %v4645, 7
    %v4839 = vrot.slane %v4646, 7
    %v4840 = vsel %vm4837, %v4838, %v4839
    %v4841 = vrot.slane %v4647, 7
    %v4842 = vsel %vm4837, %v4839, %v4841
    %v4843 = vrot.slane %v4648, 7
    %v4844 = vrot.slane %v4649, 7
    %v4845 = vsel %vm4837, %v4843, %v4844
    %v4846 = vrot.slane %v4650, 7
    %v4847 = vsel %vm4837, %v4844, %v4846
    %v4848 = vrot.slane %v4651, 7
    %v4849 = vrot.slane %v4652, 7
    %v4850 = vsel %vm4837, %v4848, %v4849
    %v4851 = vrot.slane %v4653, 7
    %v4852 = vsel %vm4837, %v4849, %v4851
    %v4853 = vrot.slane %v4654, 7
    %v4854 = vrot.slane %v4655, 7
    %v4855 = vsel %vm4837, %v4853, %v4854
    %v4856 = vrot.slane %v4656, 7
    %v4857 = vsel %vm4837, %v4854, %v4856
    %v4858 = vrot.slane %v4657, 7
    %v4859 = vrot.slane %v4658, 7
    %v4860 = vsel %vm4837, %v4858, %v4859
    %v4861 = vrot.slane %v4659, 7
    %v4862 = vsel %vm4837, %v4859, %v4861
    %v4863 = vrot.slane %v4660, 7
    %v4864 = vrot.slane %v4661, 7
    %v4865 = vsel %vm4837, %v4863, %v4864
    %v4866 = vrot.slane %v4662, 7
    %v4867 = vsel %vm4837, %v4864, %v4866
    %v4868 = vrot.slane %v4663, 7
    %v4869 = vrot.slane %v4664, 7
    %v4870 = vsel %vm4837, %v4868, %v4869
    %v4871 = vrot.slane %v4665, 7
    %v4872 = vsel %vm4837, %v4869, %v4871
    %v4873 = vrot.slane %v4666, 7
    %v4874 = vrot.slane %v4667, 7
    %v4875 = vsel %vm4837, %v4873, %v4874
    %v4876 = vrot.slane %v4668, 7
    %v4877 = vsel %vm4837, %v4874, %v4876
    %v4878 = vrot.slane %v4669, 7
    %v4879 = vrot.slane %v4670, 7
    %v4880 = vsel %vm4837, %v4878, %v4879
    %v4881 = vrot.slane %v4671, 7
    %v4882 = vsel %vm4837, %v4879, %v4881
    %v4883 = vrot.slane %v4672, 7
    %v4884 = vrot.slane %v4673, 7
    %v4885 = vsel %vm4837, %v4883, %v4884
    %v4886 = vrot.slane %v4674, 7
    %v4887 = vsel %vm4837, %v4884, %v4886
    %v4888 = vrot.slane %v4675, 7
    %v4889 = vrot.slane %v4676, 7
    %v4890 = vsel %vm4837, %v4888, %v4889
    %v4891 = vrot.slane %v4677, 7
    %v4892 = vsel %vm4837, %v4889, %v4891
    %v4893 = vrot.slane %v4678, 7
    %v4894 = vrot.slane %v4679, 7
    %v4895 = vsel %vm4837, %v4893, %v4894
    %v4896 = vrot.slane %v4680, 7
    %v4897 = vsel %vm4837, %v4894, %v4896
    %v4898 = vrot.slane %v4681, 7
    %v4899 = vrot.slane %v4682, 7
    %v4900 = vsel %vm4837, %v4898, %v4899
    %v4901 = vrot.slane %v4683, 7
    %v4902 = vsel %vm4837, %v4899, %v4901
    %v4903 = vrot.slane %v4684, 7
    %v4904 = vrot.slane %v4685, 7
    %v4905 = vsel %vm4837, %v4903, %v4904
    %v4906 = vrot.slane %v4686, 7
    %v4907 = vsel %vm4837, %v4904, %v4906
    %v4908 = vrot.slane %v4687, 7
    %v4909 = vrot.slane %v4688, 7
    %v4910 = vsel %vm4837, %v4908, %v4909
    %v4911 = vrot.slane %v4689, 7
    %v4912 = vsel %vm4837, %v4909, %v4911
    %v4913 = vrot.slane %v4690, 7
    %v4914 = vrot.slane %v4691, 7
    %v4915 = vsel %vm4837, %v4913, %v4914
    %v4916 = vrot.slane %v4692, 7
    %v4917 = vsel %vm4837, %v4914, %v4916
    %v4918 = vrot.slane %v4693, 7
    %v4919 = vrot.slane %v4694, 7
    %v4920 = vsel %vm4837, %v4918, %v4919
    %v4921 = vrot.slane %v4695, 7
    %v4922 = vsel %vm4837, %v4919, %v4921
    %v4923 = vrot.slane %v4696, 7
    %v4924 = vrot.slane %v4697, 7
    %v4925 = vsel %vm4837, %v4923, %v4924
    %v4926 = vrot.slane %v4698, 7
    %v4927 = vsel %vm4837, %v4924, %v4926
    %v4928 = vrot.slane %v4699, 7
    %v4929 = vrot.slane %v4700, 7
    %v4930 = vsel %vm4837, %v4928, %v4929
    %v4931 = vrot.slane %v4701, 7
    %v4932 = vsel %vm4837, %v4929, %v4931
    %v4933 = vrot.slane %v4702, 7
    %v4934 = vrot.slane %v4703, 7
    %v4935 = vsel %vm4837, %v4933, %v4934
    %v4936 = vrot.slane %v4704, 7
    %v4937 = vsel %vm4837, %v4934, %v4936
    %v4938 = vrot.slane %v4705, 7
    %v4939 = vrot.slane %v4706, 7
    %v4940 = vsel %vm4837, %v4938, %v4939
    %v4941 = vrot.slane %v4707, 7
    %v4942 = vsel %vm4837, %v4939, %v4941
    %v4943 = vrot.slane %v4708, 7
    %v4944 = vrot.slane %v4709, 7
    %v4945 = vsel %vm4837, %v4943, %v4944
    %v4946 = vrot.slane %v4710, 7
    %v4947 = vsel %vm4837, %v4944, %v4946
    %v4948 = vrot.slane %v4711, 7
    %v4949 = vrot.slane %v4712, 7
    %v4950 = vsel %vm4837, %v4948, %v4949
    %v4951 = vrot.slane %v4713, 7
    %v4952 = vsel %vm4837, %v4949, %v4951
    %v4953 = vrot.slane %v4714, 7
    %v4954 = vrot.slane %v4715, 7
    %v4955 = vsel %vm4837, %v4953, %v4954
    %v4956 = vrot.slane %v4716, 7
    %v4957 = vsel %vm4837, %v4954, %v4956
    %v4958 = vrot.slane %v4717, 7
    %v4959 = vrot.slane %v4718, 7
    %v4960 = vsel %vm4837, %v4958, %v4959
    %v4961 = vrot.slane %v4719, 7
    %v4962 = vsel %vm4837, %v4959, %v4961
    %v4963 = vrot.slane %v4720, 7
    %v4964 = vrot.slane %v4721, 7
    %v4965 = vsel %vm4837, %v4963, %v4964
    %v4966 = vrot.slane %v4722, 7
    %v4967 = vsel %vm4837, %v4964, %v4966
    %v4968 = vrot.slane %v4723, 7
    %v4969 = vrot.slane %v4724, 7
    %v4970 = vsel %vm4837, %v4968, %v4969
    %v4971 = vrot.slane %v4725, 7
    %v4972 = vsel %vm4837, %v4969, %v4971
    %v4973 = vrot.slane %v4726, 7
    %v4974 = vrot.slane %v4727, 7
    %v4975 = vsel %vm4837, %v4973, %v4974
    %v4976 = vrot.slane %v4728, 7
    %v4977 = vsel %vm4837, %v4974, %v4976
    %v4978 = vrot.slane %v4729, 7
    %v4979 = vrot.slane %v4730, 7
    %v4980 = vsel %vm4837, %v4978, %v4979
    %v4981 = vrot.slane %v4731, 7
    %v4982 = vsel %vm4837, %v4979, %v4981
    %v4983 = vrot.slane %v4732, 7
    %v4984 = vrot.slane %v4733, 7
    %v4985 = vsel %vm4837, %v4983, %v4984
    %v4986 = vrot.slane %v4734, 7
    %v4987 = vsel %vm4837, %v4984, %v4986
    %v4988 = vrot.slane %v4735, 7
    %v4989 = vrot.slane %v4736, 7
    %v4990 = vsel %vm4837, %v4988, %v4989
    %v4991 = vrot.slane %v4737, 7
    %v4992 = vsel %vm4837, %v4989, %v4991
    %v4993 = vrot.slane %v4738, 7
    %v4994 = vrot.slane %v4739, 7
    %v4995 = vsel %vm4837, %v4993, %v4994
    %v4996 = vrot.slane %v4740, 7
    %v4997 = vsel %vm4837, %v4994, %v4996
    %v5062 = vpack.c.bf16 %v4842, %v4840
    %v5063 = vpack.c.bf16 %v4847, %v4845
    %v5064 = vpack.c.bf16 %v4852, %v4850
    %v5065 = vpack.c.bf16 %v4857, %v4855
    %v5066 = vpack.c.bf16 %v4862, %v4860
    %v5067 = vpack.c.bf16 %v4867, %v4865
    %v5068 = vpack.c.bf16 %v4872, %v4870
    %v5069 = vpack.c.bf16 %v4877, %v4875
    %v5070 = vpack.c.bf16 %v4882, %v4880
    %v5071 = vpack.c.bf16 %v4887, %v4885
    %v5072 = vpack.c.bf16 %v4892, %v4890
    %v5073 = vpack.c.bf16 %v4897, %v4895
    %v5074 = vpack.c.bf16 %v4902, %v4900
    %v5075 = vpack.c.bf16 %v4907, %v4905
    %v5076 = vpack.c.bf16 %v4912, %v4910
    %v5077 = vpack.c.bf16 %v4917, %v4915
    %v5078 = vpack.c.bf16 %v4922, %v4920
    %v5079 = vpack.c.bf16 %v4927, %v4925
    %v5080 = vpack.c.bf16 %v4932, %v4930
    %v5081 = vpack.c.bf16 %v4937, %v4935
    %v5082 = vpack.c.bf16 %v4942, %v4940
    %v5083 = vpack.c.bf16 %v4947, %v4945
    %v5084 = vpack.c.bf16 %v4952, %v4950
    %v5085 = vpack.c.bf16 %v4957, %v4955
    %v5086 = vpack.c.bf16 %v4962, %v4960
    %v5087 = vpack.c.bf16 %v4967, %v4965
    %v5088 = vpack.c.bf16 %v4972, %v4970
    %v5089 = vpack.c.bf16 %v4977, %v4975
    %v5090 = vpack.c.bf16 %v4982, %v4980
    %v5091 = vpack.c.bf16 %v4987, %v4985
    %v5092 = vpack.c.bf16 %v4992, %v4990
    %v5093 = vpack.c.bf16 %v4997, %v4995
    %v5094 = vld [vmem:[#allocation9] sm:$0xf]
    %v5095 = vld [vmem:[#allocation9 + $0x4] sm:$0xf]
    %v5096 = vld [vmem:[%s5] sm:$0x1]
    %v5098 = vlaneseq
    %v5099 = vshrl.u32 %v5098, 7
    %v5100 = vsub.s32 0, %v5099
    %v5101 = vrot.slane %v5096, %v5100
    %v5105 = vunpack.c.l.b16 %v5094
    %v5106 = vunpack.c.l.b16 %v5095
    %v5107 = vpack.c.b16 %v5106, %v5105
    %v5110 = vsel %vm713, %v5062, 0
    %v5113 = vsel %vm713, %v5063, 0
    %v5116 = vsel %vm713, %v5064, 0
    %v5119 = vsel %vm713, %v5065, 0
    %v5122 = vsel %vm713, %v5066, 0
    %v5125 = vsel %vm713, %v5067, 0
    %v5128 = vsel %vm713, %v5068, 0
    %v5131 = vsel %vm713, %v5069, 0
    %v5134 = vsel %vm713, %v5070, 0
    %v5137 = vsel %vm713, %v5071, 0
    %v5140 = vsel %vm713, %v5072, 0
    %v5143 = vsel %vm713, %v5073, 0
    %v5146 = vsel %vm713, %v5074, 0
    %v5149 = vsel %vm713, %v5075, 0
    %v5152 = vsel %vm713, %v5076, 0
    %v5155 = vsel %vm713, %v5077, 0
    %v5158 = vsel %vm713, %v5078, 0
    %v5161 = vsel %vm713, %v5079, 0
    %v5164 = vsel %vm713, %v5080, 0
    %v5167 = vsel %vm713, %v5081, 0
    %v5170 = vsel %vm713, %v5082, 0
    %v5173 = vsel %vm713, %v5083, 0
    %v5176 = vsel %vm713, %v5084, 0
    %v5179 = vsel %vm713, %v5085, 0
    %v5182 = vsel %vm713, %v5086, 0
    %v5185 = vsel %vm713, %v5087, 0
    %v5188 = vsel %vm713, %v5088, 0
    %v5191 = vsel %vm713, %v5089, 0
    %v5194 = vsel %vm713, %v5090, 0
    %v5197 = vsel %vm713, %v5091, 0
    %v5200 = vsel %vm713, %v5092, 0
    %v5203 = vsel %vm713, %v5093, 0
    %5205 = vmatprep.subr.bf16.mxu0 0
    %5206 = vmatpush1.bf16.msra.mxu0 0
    %5207 = vmatprep.subr.bf16.mxu0 0
    %5208 = vmatpush1.bf16.msra.mxu0 0
    %5209 = vmatprep.subr.bf16.mxu0 0
    %5210 = vmatpush1.bf16.msra.mxu0 0
    %5211 = vmatprep.subr.bf16.mxu0 0
    %5212 = vmatpush1.bf16.msra.mxu0 0
    %5213 = vmatprep.subr.bf16.mxu0 0
    %5214 = vmatpush1.bf16.msra.mxu0 0
    %5215 = vmatprep.subr.bf16.mxu0 0
    %5216 = vmatpush1.bf16.msra.mxu0 0
    %5217 = vmatprep.subr.bf16.mxu0 0
    %5218 = vmatpush1.bf16.msra.mxu0 0
    %5219 = vmatprep.subr.bf16.mxu0 0
    %5220 = vmatpush1.bf16.msra.mxu0 %v5107
    %5221 = vmatprep.subr.bf16.mxu0 0
    %5222 = vmatpush2.bf16.msra.mxu0 0
    %5223 = vmatprep.subr.bf16.mxu0 0
    %5224 = vmatpush2.bf16.msra.mxu0 0
    %5225 = vmatprep.subr.bf16.mxu0 0
    %5226 = vmatpush2.bf16.msra.mxu0 0
    %5227 = vmatprep.subr.bf16.mxu0 0
    %5228 = vmatpush2.bf16.msra.mxu0 0
    %5229 = vmatprep.subr.bf16.mxu0 0
    %5230 = vmatpush2.bf16.msra.mxu0 0
    %5231 = vmatprep.subr.bf16.mxu0 0
    %5232 = vmatpush2.bf16.msra.mxu0 0
    %5233 = vmatprep.subr.bf16.mxu0 0
    %5234 = vmatpush2.bf16.msra.mxu0 0
    %5235 = vmatprep.subr.bf16.mxu0 0
    %5236 = vmatpush2.bf16.msra.mxu0 0
    %5237 = vmatprep.mubr.bf16.mxu0 0
    %5238 = vmatmul.mubr.bf16.gmra.mxu0 %v5110
    %v5239 = vpop.f32.mrf.mxu0
    %v5240 = vadd.f32 %v5101, %v5239
    %v5241 = vpop.f32.mrf.mxu0
    %v5242 = vpop.f32.mrf.mxu0
    %v5243 = vadd.f32 %v5101, %v5242
    %v5244 = vpop.f32.mrf.mxu0
    %5245 = vmatprep.mubr.bf16.mxu0 0
    %5246 = vmatmul.mubr.bf16.gmra.mxu0 %v5113
    %v5247 = vpop.f32.mrf.mxu0
    %v5248 = vadd.f32 %v5101, %v5247
    %v5249 = vpop.f32.mrf.mxu0
    %v5250 = vpop.f32.mrf.mxu0
    %v5251 = vadd.f32 %v5101, %v5250
    %v5252 = vpop.f32.mrf.mxu0
    %5253 = vmatprep.mubr.bf16.mxu0 0
    %5254 = vmatmul.mubr.bf16.gmra.mxu0 %v5116
    %v5255 = vpop.f32.mrf.mxu0
    %v5256 = vadd.f32 %v5101, %v5255
    %v5257 = vpop.f32.mrf.mxu0
    %v5258 = vpop.f32.mrf.mxu0
    %v5259 = vadd.f32 %v5101, %v5258
    %v5260 = vpop.f32.mrf.mxu0
    %5261 = vmatprep.mubr.bf16.mxu0 0
    %5262 = vmatmul.mubr.bf16.gmra.mxu0 %v5119
    %v5263 = vpop.f32.mrf.mxu0
    %v5264 = vadd.f32 %v5101, %v5263
    %v5265 = vpop.f32.mrf.mxu0
    %v5266 = vpop.f32.mrf.mxu0
    %v5267 = vadd.f32 %v5101, %v5266
    %v5268 = vpop.f32.mrf.mxu0
    %5269 = vmatprep.mubr.bf16.mxu0 0
    %5270 = vmatmul.mubr.bf16.gmra.mxu0 %v5122
    %v5271 = vpop.f32.mrf.mxu0
    %v5272 = vadd.f32 %v5101, %v5271
    %v5273 = vpop.f32.mrf.mxu0
    %v5274 = vpop.f32.mrf.mxu0
    %v5275 = vadd.f32 %v5101, %v5274
    %v5276 = vpop.f32.mrf.mxu0
    %5277 = vmatprep.mubr.bf16.mxu0 0
    %5278 = vmatmul.mubr.bf16.gmra.mxu0 %v5125
    %v5279 = vpop.f32.mrf.mxu0
    %v5280 = vadd.f32 %v5101, %v5279
    %v5281 = vpop.f32.mrf.mxu0
    %v5282 = vpop.f32.mrf.mxu0
    %v5283 = vadd.f32 %v5101, %v5282
    %v5284 = vpop.f32.mrf.mxu0
    %5285 = vmatprep.mubr.bf16.mxu0 0
    %5286 = vmatmul.mubr.bf16.gmra.mxu0 %v5128
    %v5287 = vpop.f32.mrf.mxu0
    %v5288 = vadd.f32 %v5101, %v5287
    %v5289 = vpop.f32.mrf.mxu0
    %v5290 = vpop.f32.mrf.mxu0
    %v5291 = vadd.f32 %v5101, %v5290
    %v5292 = vpop.f32.mrf.mxu0
    %5293 = vmatprep.mubr.bf16.mxu0 0
    %5294 = vmatmul.mubr.bf16.gmra.mxu0 %v5131
    %v5295 = vpop.f32.mrf.mxu0
    %v5296 = vadd.f32 %v5101, %v5295
    %v5297 = vpop.f32.mrf.mxu0
    %v5298 = vpop.f32.mrf.mxu0
    %v5299 = vadd.f32 %v5101, %v5298
    %v5300 = vpop.f32.mrf.mxu0
    %5301 = vmatprep.mubr.bf16.mxu0 0
    %5302 = vmatmul.mubr.bf16.gmra.mxu0 %v5134
    %v5303 = vpop.f32.mrf.mxu0
    %v5304 = vadd.f32 %v5101, %v5303
    %v5305 = vpop.f32.mrf.mxu0
    %v5306 = vpop.f32.mrf.mxu0
    %v5307 = vadd.f32 %v5101, %v5306
    %v5308 = vpop.f32.mrf.mxu0
    %5309 = vmatprep.mubr.bf16.mxu0 0
    %5310 = vmatmul.mubr.bf16.gmra.mxu0 %v5137
    %v5311 = vpop.f32.mrf.mxu0
    %v5312 = vadd.f32 %v5101, %v5311
    %v5313 = vpop.f32.mrf.mxu0
    %v5314 = vpop.f32.mrf.mxu0
    %v5315 = vadd.f32 %v5101, %v5314
    %v5316 = vpop.f32.mrf.mxu0
    %5317 = vmatprep.mubr.bf16.mxu0 0
    %5318 = vmatmul.mubr.bf16.gmra.mxu0 %v5140
    %v5319 = vpop.f32.mrf.mxu0
    %v5320 = vadd.f32 %v5101, %v5319
    %v5321 = vpop.f32.mrf.mxu0
    %v5322 = vpop.f32.mrf.mxu0
    %v5323 = vadd.f32 %v5101, %v5322
    %v5324 = vpop.f32.mrf.mxu0
    %5325 = vmatprep.mubr.bf16.mxu0 0
    %5326 = vmatmul.mubr.bf16.gmra.mxu0 %v5143
    %v5327 = vpop.f32.mrf.mxu0
    %v5328 = vadd.f32 %v5101, %v5327
    %v5329 = vpop.f32.mrf.mxu0
    %v5330 = vpop.f32.mrf.mxu0
    %v5331 = vadd.f32 %v5101, %v5330
    %v5332 = vpop.f32.mrf.mxu0
    %5333 = vmatprep.mubr.bf16.mxu0 0
    %5334 = vmatmul.mubr.bf16.gmra.mxu0 %v5146
    %v5335 = vpop.f32.mrf.mxu0
    %v5336 = vadd.f32 %v5101, %v5335
    %v5337 = vpop.f32.mrf.mxu0
    %v5338 = vpop.f32.mrf.mxu0
    %v5339 = vadd.f32 %v5101, %v5338
    %v5340 = vpop.f32.mrf.mxu0
    %5341 = vmatprep.mubr.bf16.mxu0 0
    %5342 = vmatmul.mubr.bf16.gmra.mxu0 %v5149
    %v5343 = vpop.f32.mrf.mxu0
    %v5344 = vadd.f32 %v5101, %v5343
    %v5345 = vpop.f32.mrf.mxu0
    %v5346 = vpop.f32.mrf.mxu0
    %v5347 = vadd.f32 %v5101, %v5346
    %v5348 = vpop.f32.mrf.mxu0
    %5349 = vmatprep.mubr.bf16.mxu0 0
    %5350 = vmatmul.mubr.bf16.gmra.mxu0 %v5152
    %v5351 = vpop.f32.mrf.mxu0
    %v5352 = vadd.f32 %v5101, %v5351
    %v5353 = vpop.f32.mrf.mxu0
    %v5354 = vpop.f32.mrf.mxu0
    %v5355 = vadd.f32 %v5101, %v5354
    %v5356 = vpop.f32.mrf.mxu0
    %5357 = vmatprep.mubr.bf16.mxu0 0
    %5358 = vmatmul.mubr.bf16.gmra.mxu0 %v5155
    %v5359 = vpop.f32.mrf.mxu0
    %v5360 = vadd.f32 %v5101, %v5359
    %v5361 = vpop.f32.mrf.mxu0
    %v5362 = vpop.f32.mrf.mxu0
    %v5363 = vadd.f32 %v5101, %v5362
    %v5364 = vpop.f32.mrf.mxu0
    %5365 = vmatprep.mubr.bf16.mxu0 0
    %5366 = vmatmul.mubr.bf16.gmra.mxu0 %v5158
    %v5367 = vpop.f32.mrf.mxu0
    %v5368 = vadd.f32 %v5101, %v5367
    %v5369 = vpop.f32.mrf.mxu0
    %v5370 = vpop.f32.mrf.mxu0
    %v5371 = vadd.f32 %v5101, %v5370
    %v5372 = vpop.f32.mrf.mxu0
    %5373 = vmatprep.mubr.bf16.mxu0 0
    %5374 = vmatmul.mubr.bf16.gmra.mxu0 %v5161
    %v5375 = vpop.f32.mrf.mxu0
    %v5376 = vadd.f32 %v5101, %v5375
    %v5377 = vpop.f32.mrf.mxu0
    %v5378 = vpop.f32.mrf.mxu0
    %v5379 = vadd.f32 %v5101, %v5378
    %v5380 = vpop.f32.mrf.mxu0
    %5381 = vmatprep.mubr.bf16.mxu0 0
    %5382 = vmatmul.mubr.bf16.gmra.mxu0 %v5164
    %v5383 = vpop.f32.mrf.mxu0
    %v5384 = vadd.f32 %v5101, %v5383
    %v5385 = vpop.f32.mrf.mxu0
    %v5386 = vpop.f32.mrf.mxu0
    %v5387 = vadd.f32 %v5101, %v5386
    %v5388 = vpop.f32.mrf.mxu0
    %5389 = vmatprep.mubr.bf16.mxu0 0
    %5390 = vmatmul.mubr.bf16.gmra.mxu0 %v5167
    %v5391 = vpop.f32.mrf.mxu0
    %v5392 = vadd.f32 %v5101, %v5391
    %v5393 = vpop.f32.mrf.mxu0
    %v5394 = vpop.f32.mrf.mxu0
    %v5395 = vadd.f32 %v5101, %v5394
    %v5396 = vpop.f32.mrf.mxu0
    %5397 = vmatprep.mubr.bf16.mxu0 0
    %5398 = vmatmul.mubr.bf16.gmra.mxu0 %v5170
    %v5399 = vpop.f32.mrf.mxu0
    %v5400 = vadd.f32 %v5101, %v5399
    %v5401 = vpop.f32.mrf.mxu0
    %v5402 = vpop.f32.mrf.mxu0
    %v5403 = vadd.f32 %v5101, %v5402
    %v5404 = vpop.f32.mrf.mxu0
    %5405 = vmatprep.mubr.bf16.mxu0 0
    %5406 = vmatmul.mubr.bf16.gmra.mxu0 %v5173
    %v5407 = vpop.f32.mrf.mxu0
    %v5408 = vadd.f32 %v5101, %v5407
    %v5409 = vpop.f32.mrf.mxu0
    %v5410 = vpop.f32.mrf.mxu0
    %v5411 = vadd.f32 %v5101, %v5410
    %v5412 = vpop.f32.mrf.mxu0
    %5413 = vmatprep.mubr.bf16.mxu0 0
    %5414 = vmatmul.mubr.bf16.gmra.mxu0 %v5176
    %v5415 = vpop.f32.mrf.mxu0
    %v5416 = vadd.f32 %v5101, %v5415
    %v5417 = vpop.f32.mrf.mxu0
    %v5418 = vpop.f32.mrf.mxu0
    %v5419 = vadd.f32 %v5101, %v5418
    %v5420 = vpop.f32.mrf.mxu0
    %5421 = vmatprep.mubr.bf16.mxu0 0
    %5422 = vmatmul.mubr.bf16.gmra.mxu0 %v5179
    %v5423 = vpop.f32.mrf.mxu0
    %v5424 = vadd.f32 %v5101, %v5423
    %v5425 = vpop.f32.mrf.mxu0
    %v5426 = vpop.f32.mrf.mxu0
    %v5427 = vadd.f32 %v5101, %v5426
    %v5428 = vpop.f32.mrf.mxu0
    %5429 = vmatprep.mubr.bf16.mxu0 0
    %5430 = vmatmul.mubr.bf16.gmra.mxu0 %v5182
    %v5431 = vpop.f32.mrf.mxu0
    %v5432 = vadd.f32 %v5101, %v5431
    %v5433 = vpop.f32.mrf.mxu0
    %v5434 = vpop.f32.mrf.mxu0
    %v5435 = vadd.f32 %v5101, %v5434
    %v5436 = vpop.f32.mrf.mxu0
    %5437 = vmatprep.mubr.bf16.mxu0 0
    %5438 = vmatmul.mubr.bf16.gmra.mxu0 %v5185
    %v5439 = vpop.f32.mrf.mxu0
    %v5440 = vadd.f32 %v5101, %v5439
    %v5441 = vpop.f32.mrf.mxu0
    %v5442 = vpop.f32.mrf.mxu0
    %v5443 = vadd.f32 %v5101, %v5442
    %v5444 = vpop.f32.mrf.mxu0
    %5445 = vmatprep.mubr.bf16.mxu0 0
    %5446 = vmatmul.mubr.bf16.gmra.mxu0 %v5188
    %v5447 = vpop.f32.mrf.mxu0
    %v5448 = vadd.f32 %v5101, %v5447
    %v5449 = vpop.f32.mrf.mxu0
    %v5450 = vpop.f32.mrf.mxu0
    %v5451 = vadd.f32 %v5101, %v5450
    %v5452 = vpop.f32.mrf.mxu0
    %5453 = vmatprep.mubr.bf16.mxu0 0
    %5454 = vmatmul.mubr.bf16.gmra.mxu0 %v5191
    %v5455 = vpop.f32.mrf.mxu0
    %v5456 = vadd.f32 %v5101, %v5455
    %v5457 = vpop.f32.mrf.mxu0
    %v5458 = vpop.f32.mrf.mxu0
    %v5459 = vadd.f32 %v5101, %v5458
    %v5460 = vpop.f32.mrf.mxu0
    %5461 = vmatprep.mubr.bf16.mxu0 0
    %5462 = vmatmul.mubr.bf16.gmra.mxu0 %v5194
    %v5463 = vpop.f32.mrf.mxu0
    %v5464 = vadd.f32 %v5101, %v5463
    %v5465 = vpop.f32.mrf.mxu0
    %v5466 = vpop.f32.mrf.mxu0
    %v5467 = vadd.f32 %v5101, %v5466
    %v5468 = vpop.f32.mrf.mxu0
    %5469 = vmatprep.mubr.bf16.mxu0 0
    %5470 = vmatmul.mubr.bf16.gmra.mxu0 %v5197
    %v5471 = vpop.f32.mrf.mxu0
    %v5472 = vadd.f32 %v5101, %v5471
    %v5473 = vpop.f32.mrf.mxu0
    %v5474 = vpop.f32.mrf.mxu0
    %v5475 = vadd.f32 %v5101, %v5474
    %v5476 = vpop.f32.mrf.mxu0
    %5477 = vmatprep.mubr.bf16.mxu0 0
    %5478 = vmatmul.mubr.bf16.gmra.mxu0 %v5200
    %v5479 = vpop.f32.mrf.mxu0
    %v5480 = vadd.f32 %v5101, %v5479
    %v5481 = vpop.f32.mrf.mxu0
    %v5482 = vpop.f32.mrf.mxu0
    %v5483 = vadd.f32 %v5101, %v5482
    %v5484 = vpop.f32.mrf.mxu0
    %5485 = vmatprep.mubr.bf16.mxu0 0
    %5486 = vmatmul.mubr.bf16.gmra.mxu0 %v5203
    %v5487 = vpop.f32.mrf.mxu0
    %v5488 = vadd.f32 %v5101, %v5487
    %v5489 = vpop.f32.mrf.mxu0
    %v5490 = vpop.f32.mrf.mxu0
    %v5491 = vadd.f32 %v5101, %v5490
    %v5492 = vpop.f32.mrf.mxu0
    %5493 = vdwg.mxu0
    %v5494 = vmax.f32 %v5240, 0.0
    %v5495 = vmax.f32 %v5243, 0.0
    %v5496 = vmax.f32 %v5248, 0.0
    %v5497 = vmax.f32 %v5251, 0.0
    %v5498 = vmax.f32 %v5256, 0.0
    %v5499 = vmax.f32 %v5259, 0.0
    %v5500 = vmax.f32 %v5264, 0.0
    %v5501 = vmax.f32 %v5267, 0.0
    %v5502 = vmax.f32 %v5272, 0.0
    %v5503 = vmax.f32 %v5275, 0.0
    %v5504 = vmax.f32 %v5280, 0.0
    %v5505 = vmax.f32 %v5283, 0.0
    %v5506 = vmax.f32 %v5288, 0.0
    %v5507 = vmax.f32 %v5291, 0.0
    %v5508 = vmax.f32 %v5296, 0.0
    %v5509 = vmax.f32 %v5299, 0.0
    %v5510 = vmax.f32 %v5304, 0.0
    %v5511 = vmax.f32 %v5307, 0.0
    %v5512 = vmax.f32 %v5312, 0.0
    %v5513 = vmax.f32 %v5315, 0.0
    %v5514 = vmax.f32 %v5320, 0.0
    %v5515 = vmax.f32 %v5323, 0.0
    %v5516 = vmax.f32 %v5328, 0.0
    %v5517 = vmax.f32 %v5331, 0.0
    %v5518 = vmax.f32 %v5336, 0.0
    %v5519 = vmax.f32 %v5339, 0.0
    %v5520 = vmax.f32 %v5344, 0.0
    %v5521 = vmax.f32 %v5347, 0.0
    %v5522 = vmax.f32 %v5352, 0.0
    %v5523 = vmax.f32 %v5355, 0.0
    %v5524 = vmax.f32 %v5360, 0.0
    %v5525 = vmax.f32 %v5363, 0.0
    %v5526 = vmax.f32 %v5368, 0.0
    %v5527 = vmax.f32 %v5371, 0.0
    %v5528 = vmax.f32 %v5376, 0.0
    %v5529 = vmax.f32 %v5379, 0.0
    %v5530 = vmax.f32 %v5384, 0.0
    %v5531 = vmax.f32 %v5387, 0.0
    %v5532 = vmax.f32 %v5392, 0.0
    %v5533 = vmax.f32 %v5395, 0.0
    %v5534 = vmax.f32 %v5400, 0.0
    %v5535 = vmax.f32 %v5403, 0.0
    %v5536 = vmax.f32 %v5408, 0.0
    %v5537 = vmax.f32 %v5411, 0.0
    %v5538 = vmax.f32 %v5416, 0.0
    %v5539 = vmax.f32 %v5419, 0.0
    %v5540 = vmax.f32 %v5424, 0.0
    %v5541 = vmax.f32 %v5427, 0.0
    %v5542 = vmax.f32 %v5432, 0.0
    %v5543 = vmax.f32 %v5435, 0.0
    %v5544 = vmax.f32 %v5440, 0.0
    %v5545 = vmax.f32 %v5443, 0.0
    %v5546 = vmax.f32 %v5448, 0.0
    %v5547 = vmax.f32 %v5451, 0.0
    %v5548 = vmax.f32 %v5456, 0.0
    %v5549 = vmax.f32 %v5459, 0.0
    %v5550 = vmax.f32 %v5464, 0.0
    %v5551 = vmax.f32 %v5467, 0.0
    %v5552 = vmax.f32 %v5472, 0.0
    %v5553 = vmax.f32 %v5475, 0.0
    %v5554 = vmax.f32 %v5480, 0.0
    %v5555 = vmax.f32 %v5483, 0.0
    %v5556 = vmax.f32 %v5488, 0.0
    %v5557 = vmax.f32 %v5491, 0.0
    %5622 = vrot.lane.b32.xlu0 %v5494, 16
    %v5623 = vpop.permute.xlu0 %5622
    %5624 = vrot.lane.b32.xlu0 %v5495, 16
    %v5625 = vpop.permute.xlu0 %5624
    %5626 = vrot.lane.b32.xlu0 %v5496, 16
    %v5627 = vpop.permute.xlu0 %5626
    %5628 = vrot.lane.b32.xlu0 %v5497, 16
    %v5629 = vpop.permute.xlu0 %5628
    %5630 = vrot.lane.b32.xlu0 %v5498, 16
    %v5631 = vpop.permute.xlu0 %5630
    %5632 = vrot.lane.b32.xlu0 %v5499, 16
    %v5633 = vpop.permute.xlu0 %5632
    %5634 = vrot.lane.b32.xlu0 %v5500, 16
    %v5635 = vpop.permute.xlu0 %5634
    %5636 = vrot.lane.b32.xlu0 %v5501, 16
    %v5637 = vpop.permute.xlu0 %5636
    %5638 = vrot.lane.b32.xlu0 %v5502, 16
    %v5639 = vpop.permute.xlu0 %5638
    %5640 = vrot.lane.b32.xlu0 %v5503, 16
    %v5641 = vpop.permute.xlu0 %5640
    %5642 = vrot.lane.b32.xlu0 %v5504, 16
    %v5643 = vpop.permute.xlu0 %5642
    %5644 = vrot.lane.b32.xlu0 %v5505, 16
    %v5645 = vpop.permute.xlu0 %5644
    %5646 = vrot.lane.b32.xlu0 %v5506, 16
    %v5647 = vpop.permute.xlu0 %5646
    %5648 = vrot.lane.b32.xlu0 %v5507, 16
    %v5649 = vpop.permute.xlu0 %5648
    %5650 = vrot.lane.b32.xlu0 %v5508, 16
    %v5651 = vpop.permute.xlu0 %5650
    %5652 = vrot.lane.b32.xlu0 %v5509, 16
    %v5653 = vpop.permute.xlu0 %5652
    %5654 = vrot.lane.b32.xlu0 %v5510, 16
    %v5655 = vpop.permute.xlu0 %5654
    %5656 = vrot.lane.b32.xlu0 %v5511, 16
    %v5657 = vpop.permute.xlu0 %5656
    %5658 = vrot.lane.b32.xlu0 %v5512, 16
    %v5659 = vpop.permute.xlu0 %5658
    %5660 = vrot.lane.b32.xlu0 %v5513, 16
    %v5661 = vpop.permute.xlu0 %5660
    %5662 = vrot.lane.b32.xlu0 %v5514, 16
    %v5663 = vpop.permute.xlu0 %5662
    %5664 = vrot.lane.b32.xlu0 %v5515, 16
    %v5665 = vpop.permute.xlu0 %5664
    %5666 = vrot.lane.b32.xlu0 %v5516, 16
    %v5667 = vpop.permute.xlu0 %5666
    %5668 = vrot.lane.b32.xlu0 %v5517, 16
    %v5669 = vpop.permute.xlu0 %5668
    %5670 = vrot.lane.b32.xlu0 %v5518, 16
    %v5671 = vpop.permute.xlu0 %5670
    %5672 = vrot.lane.b32.xlu0 %v5519, 16
    %v5673 = vpop.permute.xlu0 %5672
    %5674 = vrot.lane.b32.xlu0 %v5520, 16
    %v5675 = vpop.permute.xlu0 %5674
    %5676 = vrot.lane.b32.xlu0 %v5521, 16
    %v5677 = vpop.permute.xlu0 %5676
    %5678 = vrot.lane.b32.xlu0 %v5522, 16
    %v5679 = vpop.permute.xlu0 %5678
    %5680 = vrot.lane.b32.xlu0 %v5523, 16
    %v5681 = vpop.permute.xlu0 %5680
    %5682 = vrot.lane.b32.xlu0 %v5524, 16
    %v5683 = vpop.permute.xlu0 %5682
    %5684 = vrot.lane.b32.xlu0 %v5525, 16
    %v5685 = vpop.permute.xlu0 %5684
    %5686 = vrot.lane.b32.xlu0 %v5526, 16
    %v5687 = vpop.permute.xlu0 %5686
    %5688 = vrot.lane.b32.xlu0 %v5527, 16
    %v5689 = vpop.permute.xlu0 %5688
    %5690 = vrot.lane.b32.xlu0 %v5528, 16
    %v5691 = vpop.permute.xlu0 %5690
    %5692 = vrot.lane.b32.xlu0 %v5529, 16
    %v5693 = vpop.permute.xlu0 %5692
    %5694 = vrot.lane.b32.xlu0 %v5530, 16
    %v5695 = vpop.permute.xlu0 %5694
    %5696 = vrot.lane.b32.xlu0 %v5531, 16
    %v5697 = vpop.permute.xlu0 %5696
    %5698 = vrot.lane.b32.xlu0 %v5532, 16
    %v5699 = vpop.permute.xlu0 %5698
    %5700 = vrot.lane.b32.xlu0 %v5533, 16
    %v5701 = vpop.permute.xlu0 %5700
    %5702 = vrot.lane.b32.xlu0 %v5534, 16
    %v5703 = vpop.permute.xlu0 %5702
    %5704 = vrot.lane.b32.xlu0 %v5535, 16
    %v5705 = vpop.permute.xlu0 %5704
    %5706 = vrot.lane.b32.xlu0 %v5536, 16
    %v5707 = vpop.permute.xlu0 %5706
    %5708 = vrot.lane.b32.xlu0 %v5537, 16
    %v5709 = vpop.permute.xlu0 %5708
    %5710 = vrot.lane.b32.xlu0 %v5538, 16
    %v5711 = vpop.permute.xlu0 %5710
    %5712 = vrot.lane.b32.xlu0 %v5539, 16
    %v5713 = vpop.permute.xlu0 %5712
    %5714 = vrot.lane.b32.xlu0 %v5540, 16
    %v5715 = vpop.permute.xlu0 %5714
    %5716 = vrot.lane.b32.xlu0 %v5541, 16
    %v5717 = vpop.permute.xlu0 %5716
    %5718 = vrot.lane.b32.xlu0 %v5542, 16
    %v5719 = vpop.permute.xlu0 %5718
    %5720 = vrot.lane.b32.xlu0 %v5543, 16
    %v5721 = vpop.permute.xlu0 %5720
    %5722 = vrot.lane.b32.xlu0 %v5544, 16
    %v5723 = vpop.permute.xlu0 %5722
    %5724 = vrot.lane.b32.xlu0 %v5545, 16
    %v5725 = vpop.permute.xlu0 %5724
    %5726 = vrot.lane.b32.xlu0 %v5546, 16
    %v5727 = vpop.permute.xlu0 %5726
    %5728 = vrot.lane.b32.xlu0 %v5547, 16
    %v5729 = vpop.permute.xlu0 %5728
    %5730 = vrot.lane.b32.xlu0 %v5548, 16
    %v5731 = vpop.permute.xlu0 %5730
    %5732 = vrot.lane.b32.xlu0 %v5549, 16
    %v5733 = vpop.permute.xlu0 %5732
    %5734 = vrot.lane.b32.xlu0 %v5550, 16
    %v5735 = vpop.permute.xlu0 %5734
    %5736 = vrot.lane.b32.xlu0 %v5551, 16
    %v5737 = vpop.permute.xlu0 %5736
    %5738 = vrot.lane.b32.xlu0 %v5552, 16
    %v5739 = vpop.permute.xlu0 %5738
    %5740 = vrot.lane.b32.xlu0 %v5553, 16
    %v5741 = vpop.permute.xlu0 %5740
    %5742 = vrot.lane.b32.xlu0 %v5554, 16
    %v5743 = vpop.permute.xlu0 %5742
    %5744 = vrot.lane.b32.xlu0 %v5555, 16
    %v5745 = vpop.permute.xlu0 %5744
    %5746 = vrot.lane.b32.xlu0 %v5556, 16
    %v5747 = vpop.permute.xlu0 %5746
    %5748 = vrot.lane.b32.xlu0 %v5557, 16
    %v5749 = vpop.permute.xlu0 %5748
    %v5814 = vadd.f32 %v324, %v5623
    %v5815 = vadd.f32 %v327, %v5625
    %v5816 = vadd.f32 %v332, %v5627
    %v5817 = vadd.f32 %v335, %v5629
    %v5818 = vadd.f32 %v340, %v5631
    %v5819 = vadd.f32 %v343, %v5633
    %v5820 = vadd.f32 %v348, %v5635
    %v5821 = vadd.f32 %v351, %v5637
    %v5822 = vadd.f32 %v356, %v5639
    %v5823 = vadd.f32 %v359, %v5641
    %v5824 = vadd.f32 %v364, %v5643
    %v5825 = vadd.f32 %v367, %v5645
    %v5826 = vadd.f32 %v372, %v5647
    %v5827 = vadd.f32 %v375, %v5649
    %v5828 = vadd.f32 %v380, %v5651
    %v5829 = vadd.f32 %v383, %v5653
    %v5830 = vadd.f32 %v388, %v5655
    %v5831 = vadd.f32 %v391, %v5657
    %v5832 = vadd.f32 %v396, %v5659
    %v5833 = vadd.f32 %v399, %v5661
    %v5834 = vadd.f32 %v404, %v5663
    %v5835 = vadd.f32 %v407, %v5665
    %v5836 = vadd.f32 %v412, %v5667
    %v5837 = vadd.f32 %v415, %v5669
    %v5838 = vadd.f32 %v420, %v5671
    %v5839 = vadd.f32 %v423, %v5673
    %v5840 = vadd.f32 %v428, %v5675
    %v5841 = vadd.f32 %v431, %v5677
    %v5842 = vadd.f32 %v436, %v5679
    %v5843 = vadd.f32 %v439, %v5681
    %v5844 = vadd.f32 %v444, %v5683
    %v5845 = vadd.f32 %v447, %v5685
    %v5846 = vadd.f32 %v452, %v5687
    %v5847 = vadd.f32 %v455, %v5689
    %v5848 = vadd.f32 %v460, %v5691
    %v5849 = vadd.f32 %v463, %v5693
    %v5850 = vadd.f32 %v468, %v5695
    %v5851 = vadd.f32 %v471, %v5697
    %v5852 = vadd.f32 %v476, %v5699
    %v5853 = vadd.f32 %v479, %v5701
    %v5854 = vadd.f32 %v484, %v5703
    %v5855 = vadd.f32 %v487, %v5705
    %v5856 = vadd.f32 %v492, %v5707
    %v5857 = vadd.f32 %v495, %v5709
    %v5858 = vadd.f32 %v500, %v5711
    %v5859 = vadd.f32 %v503, %v5713
    %v5860 = vadd.f32 %v508, %v5715
    %v5861 = vadd.f32 %v511, %v5717
    %v5862 = vadd.f32 %v516, %v5719
    %v5863 = vadd.f32 %v519, %v5721
    %v5864 = vadd.f32 %v524, %v5723
    %v5865 = vadd.f32 %v527, %v5725
    %v5866 = vadd.f32 %v532, %v5727
    %v5867 = vadd.f32 %v535, %v5729
    %v5868 = vadd.f32 %v540, %v5731
    %v5869 = vadd.f32 %v543, %v5733
    %v5870 = vadd.f32 %v548, %v5735
    %v5871 = vadd.f32 %v551, %v5737
    %v5872 = vadd.f32 %v556, %v5739
    %v5873 = vadd.f32 %v559, %v5741
    %v5874 = vadd.f32 %v564, %v5743
    %v5875 = vadd.f32 %v567, %v5745
    %v5876 = vadd.f32 %v572, %v5747
    %v5877 = vadd.f32 %v575, %v5749
    %5942 = vrot.lane.b32.xlu0 %v5814, 112
    %v5943 = vpop.permute.xlu0 %5942
    %5944 = vrot.lane.b32.xlu0 %v5815, 112
    %v5945 = vpop.permute.xlu0 %5944
    %5946 = vrot.lane.b32.xlu0 %v5816, 112
    %v5947 = vpop.permute.xlu0 %5946
    %5948 = vrot.lane.b32.xlu0 %v5817, 112
    %v5949 = vpop.permute.xlu0 %5948
    %5950 = vrot.lane.b32.xlu0 %v5818, 112
    %v5951 = vpop.permute.xlu0 %5950
    %5952 = vrot.lane.b32.xlu0 %v5819, 112
    %v5953 = vpop.permute.xlu0 %5952
    %5954 = vrot.lane.b32.xlu0 %v5820, 112
    %v5955 = vpop.permute.xlu0 %5954
    %5956 = vrot.lane.b32.xlu0 %v5821, 112
    %v5957 = vpop.permute.xlu0 %5956
    %5958 = vrot.lane.b32.xlu0 %v5822, 112
    %v5959 = vpop.permute.xlu0 %5958
    %5960 = vrot.lane.b32.xlu0 %v5823, 112
    %v5961 = vpop.permute.xlu0 %5960
    %5962 = vrot.lane.b32.xlu0 %v5824, 112
    %v5963 = vpop.permute.xlu0 %5962
    %5964 = vrot.lane.b32.xlu0 %v5825, 112
    %v5965 = vpop.permute.xlu0 %5964
    %5966 = vrot.lane.b32.xlu0 %v5826, 112
    %v5967 = vpop.permute.xlu0 %5966
    %5968 = vrot.lane.b32.xlu0 %v5827, 112
    %v5969 = vpop.permute.xlu0 %5968
    %5970 = vrot.lane.b32.xlu0 %v5828, 112
    %v5971 = vpop.permute.xlu0 %5970
    %5972 = vrot.lane.b32.xlu0 %v5829, 112
    %v5973 = vpop.permute.xlu0 %5972
    %5974 = vrot.lane.b32.xlu0 %v5830, 112
    %v5975 = vpop.permute.xlu0 %5974
    %5976 = vrot.lane.b32.xlu0 %v5831, 112
    %v5977 = vpop.permute.xlu0 %5976
    %5978 = vrot.lane.b32.xlu0 %v5832, 112
    %v5979 = vpop.permute.xlu0 %5978
    %5980 = vrot.lane.b32.xlu0 %v5833, 112
    %v5981 = vpop.permute.xlu0 %5980
    %5982 = vrot.lane.b32.xlu0 %v5834, 112
    %v5983 = vpop.permute.xlu0 %5982
    %5984 = vrot.lane.b32.xlu0 %v5835, 112
    %v5985 = vpop.permute.xlu0 %5984
    %5986 = vrot.lane.b32.xlu0 %v5836, 112
    %v5987 = vpop.permute.xlu0 %5986
    %5988 = vrot.lane.b32.xlu0 %v5837, 112
    %v5989 = vpop.permute.xlu0 %5988
    %5990 = vrot.lane.b32.xlu0 %v5838, 112
    %v5991 = vpop.permute.xlu0 %5990
    %5992 = vrot.lane.b32.xlu0 %v5839, 112
    %v5993 = vpop.permute.xlu0 %5992
    %5994 = vrot.lane.b32.xlu0 %v5840, 112
    %v5995 = vpop.permute.xlu0 %5994
    %5996 = vrot.lane.b32.xlu0 %v5841, 112
    %v5997 = vpop.permute.xlu0 %5996
    %5998 = vrot.lane.b32.xlu0 %v5842, 112
    %v5999 = vpop.permute.xlu0 %5998
    %6000 = vrot.lane.b32.xlu0 %v5843, 112
    %v6001 = vpop.permute.xlu0 %6000
    %6002 = vrot.lane.b32.xlu0 %v5844, 112
    %v6003 = vpop.permute.xlu0 %6002
    %6004 = vrot.lane.b32.xlu0 %v5845, 112
    %v6005 = vpop.permute.xlu0 %6004
    %6006 = vrot.lane.b32.xlu0 %v5846, 112
    %v6007 = vpop.permute.xlu0 %6006
    %6008 = vrot.lane.b32.xlu0 %v5847, 112
    %v6009 = vpop.permute.xlu0 %6008
    %6010 = vrot.lane.b32.xlu0 %v5848, 112
    %v6011 = vpop.permute.xlu0 %6010
    %6012 = vrot.lane.b32.xlu0 %v5849, 112
    %v6013 = vpop.permute.xlu0 %6012
    %6014 = vrot.lane.b32.xlu0 %v5850, 112
    %v6015 = vpop.permute.xlu0 %6014
    %6016 = vrot.lane.b32.xlu0 %v5851, 112
    %v6017 = vpop.permute.xlu0 %6016
    %6018 = vrot.lane.b32.xlu0 %v5852, 112
    %v6019 = vpop.permute.xlu0 %6018
    %6020 = vrot.lane.b32.xlu0 %v5853, 112
    %v6021 = vpop.permute.xlu0 %6020
    %6022 = vrot.lane.b32.xlu0 %v5854, 112
    %v6023 = vpop.permute.xlu0 %6022
    %6024 = vrot.lane.b32.xlu0 %v5855, 112
    %v6025 = vpop.permute.xlu0 %6024
    %6026 = vrot.lane.b32.xlu0 %v5856, 112
    %v6027 = vpop.permute.xlu0 %6026
    %6028 = vrot.lane.b32.xlu0 %v5857, 112
    %v6029 = vpop.permute.xlu0 %6028
    %6030 = vrot.lane.b32.xlu0 %v5858, 112
    %v6031 = vpop.permute.xlu0 %6030
    %6032 = vrot.lane.b32.xlu0 %v5859, 112
    %v6033 = vpop.permute.xlu0 %6032
    %6034 = vrot.lane.b32.xlu0 %v5860, 112
    %v6035 = vpop.permute.xlu0 %6034
    %6036 = vrot.lane.b32.xlu0 %v5861, 112
    %v6037 = vpop.permute.xlu0 %6036
    %6038 = vrot.lane.b32.xlu0 %v5862, 112
    %v6039 = vpop.permute.xlu0 %6038
    %6040 = vrot.lane.b32.xlu0 %v5863, 112
    %v6041 = vpop.permute.xlu0 %6040
    %6042 = vrot.lane.b32.xlu0 %v5864, 112
    %v6043 = vpop.permute.xlu0 %6042
    %6044 = vrot.lane.b32.xlu0 %v5865, 112
    %v6045 = vpop.permute.xlu0 %6044
    %6046 = vrot.lane.b32.xlu0 %v5866, 112
    %v6047 = vpop.permute.xlu0 %6046
    %6048 = vrot.lane.b32.xlu0 %v5867, 112
    %v6049 = vpop.permute.xlu0 %6048
    %6050 = vrot.lane.b32.xlu0 %v5868, 112
    %v6051 = vpop.permute.xlu0 %6050
    %6052 = vrot.lane.b32.xlu0 %v5869, 112
    %v6053 = vpop.permute.xlu0 %6052
    %6054 = vrot.lane.b32.xlu0 %v5870, 112
    %v6055 = vpop.permute.xlu0 %6054
    %6056 = vrot.lane.b32.xlu0 %v5871, 112
    %v6057 = vpop.permute.xlu0 %6056
    %6058 = vrot.lane.b32.xlu0 %v5872, 112
    %v6059 = vpop.permute.xlu0 %6058
    %6060 = vrot.lane.b32.xlu0 %v5873, 112
    %v6061 = vpop.permute.xlu0 %6060
    %6062 = vrot.lane.b32.xlu0 %v5874, 112
    %v6063 = vpop.permute.xlu0 %6062
    %6064 = vrot.lane.b32.xlu0 %v5875, 112
    %v6065 = vpop.permute.xlu0 %6064
    %6066 = vrot.lane.b32.xlu0 %v5876, 112
    %v6067 = vpop.permute.xlu0 %6066
    %6068 = vrot.lane.b32.xlu0 %v5877, 112
    %v6069 = vpop.permute.xlu0 %6068
    %6134 = vst.msk [vmem:[#allocation11] sm:$0xff] %vm192, %v5943
    %6135 = vst.msk [vmem:[#allocation11 + $0x8] sm:$0xff] %vm192, %v5945
    %6136 = vst.msk [vmem:[#allocation11 + $0x10] sm:$0xff] %vm192, %v5947
    %6137 = vst.msk [vmem:[#allocation11 + $0x18] sm:$0xff] %vm192, %v5949
    %6138 = vst.msk [vmem:[#allocation11 + $0x20] sm:$0xff] %vm192, %v5951
    %6139 = vst.msk [vmem:[#allocation11 + $0x28] sm:$0xff] %vm192, %v5953
    %6140 = vst.msk [vmem:[#allocation11 + $0x30] sm:$0xff] %vm192, %v5955
    %6141 = vst.msk [vmem:[#allocation11 + $0x38] sm:$0xff] %vm192, %v5957
    %6142 = vst.msk [vmem:[#allocation11 + $0x40] sm:$0xff] %vm192, %v5959
    %6143 = vst.msk [vmem:[#allocation11 + $0x48] sm:$0xff] %vm192, %v5961
    %6144 = vst.msk [vmem:[#allocation11 + $0x50] sm:$0xff] %vm192, %v5963
    %6145 = vst.msk [vmem:[#allocation11 + $0x58] sm:$0xff] %vm192, %v5965
    %6146 = vst.msk [vmem:[#allocation11 + $0x60] sm:$0xff] %vm192, %v5967
    %6147 = vst.msk [vmem:[#allocation11 + $0x68] sm:$0xff] %vm192, %v5969
    %6148 = vst.msk [vmem:[#allocation11 + $0x70] sm:$0xff] %vm192, %v5971
    %6149 = vst.msk [vmem:[#allocation11 + $0x78] sm:$0xff] %vm192, %v5973
    %6150 = vst.msk [vmem:[#allocation11 + $0x80] sm:$0xff] %vm192, %v5975
    %6151 = vst.msk [vmem:[#allocation11 + $0x88] sm:$0xff] %vm192, %v5977
    %6152 = vst.msk [vmem:[#allocation11 + $0x90] sm:$0xff] %vm192, %v5979
    %6153 = vst.msk [vmem:[#allocation11 + $0x98] sm:$0xff] %vm192, %v5981
    %6154 = vst.msk [vmem:[#allocation11 + $0xa0] sm:$0xff] %vm192, %v5983
    %6155 = vst.msk [vmem:[#allocation11 + $0xa8] sm:$0xff] %vm192, %v5985
    %6156 = vst.msk [vmem:[#allocation11 + $0xb0] sm:$0xff] %vm192, %v5987
    %6157 = vst.msk [vmem:[#allocation11 + $0xb8] sm:$0xff] %vm192, %v5989
    %6158 = vst.msk [vmem:[#allocation11 + $0xc0] sm:$0xff] %vm192, %v5991
    %6159 = vst.msk [vmem:[#allocation11 + $0xc8] sm:$0xff] %vm192, %v5993
    %6160 = vst.msk [vmem:[#allocation11 + $0xd0] sm:$0xff] %vm192, %v5995
    %6161 = vst.msk [vmem:[#allocation11 + $0xd8] sm:$0xff] %vm192, %v5997
    %6162 = vst.msk [vmem:[#allocation11 + $0xe0] sm:$0xff] %vm192, %v5999
    %6163 = vst.msk [vmem:[#allocation11 + $0xe8] sm:$0xff] %vm192, %v6001
    %6164 = vst.msk [vmem:[#allocation11 + $0xf0] sm:$0xff] %vm192, %v6003
    %6165 = vst.msk [vmem:[#allocation11 + $0xf8] sm:$0xff] %vm192, %v6005
    %6166 = vst.msk [vmem:[#allocation11 + $0x100] sm:$0xff] %vm192, %v6007
    %6167 = vst.msk [vmem:[#allocation11 + $0x108] sm:$0xff] %vm192, %v6009
    %6168 = vst.msk [vmem:[#allocation11 + $0x110] sm:$0xff] %vm192, %v6011
    %6169 = vst.msk [vmem:[#allocation11 + $0x118] sm:$0xff] %vm192, %v6013
    %6170 = vst.msk [vmem:[#allocation11 + $0x120] sm:$0xff] %vm192, %v6015
    %6171 = vst.msk [vmem:[#allocation11 + $0x128] sm:$0xff] %vm192, %v6017
    %6172 = vst.msk [vmem:[#allocation11 + $0x130] sm:$0xff] %vm192, %v6019
    %6173 = vst.msk [vmem:[#allocation11 + $0x138] sm:$0xff] %vm192, %v6021
    %6174 = vst.msk [vmem:[#allocation11 + $0x140] sm:$0xff] %vm192, %v6023
    %6175 = vst.msk [vmem:[#allocation11 + $0x148] sm:$0xff] %vm192, %v6025
    %6176 = vst.msk [vmem:[#allocation11 + $0x150] sm:$0xff] %vm192, %v6027
    %6177 = vst.msk [vmem:[#allocation11 + $0x158] sm:$0xff] %vm192, %v6029
    %6178 = vst.msk [vmem:[#allocation11 + $0x160] sm:$0xff] %vm192, %v6031
    %6179 = vst.msk [vmem:[#allocation11 + $0x168] sm:$0xff] %vm192, %v6033
    %6180 = vst.msk [vmem:[#allocation11 + $0x170] sm:$0xff] %vm192, %v6035
    %6181 = vst.msk [vmem:[#allocation11 + $0x178] sm:$0xff] %vm192, %v6037
    %6182 = vst.msk [vmem:[#allocation11 + $0x180] sm:$0xff] %vm192, %v6039
    %6183 = vst.msk [vmem:[#allocation11 + $0x188] sm:$0xff] %vm192, %v6041
    %6184 = vst.msk [vmem:[#allocation11 + $0x190] sm:$0xff] %vm192, %v6043
    %6185 = vst.msk [vmem:[#allocation11 + $0x198] sm:$0xff] %vm192, %v6045
    %6186 = vst.msk [vmem:[#allocation11 + $0x1a0] sm:$0xff] %vm192, %v6047
    %6187 = vst.msk [vmem:[#allocation11 + $0x1a8] sm:$0xff] %vm192, %v6049
    %6188 = vst.msk [vmem:[#allocation11 + $0x1b0] sm:$0xff] %vm192, %v6051
    %6189 = vst.msk [vmem:[#allocation11 + $0x1b8] sm:$0xff] %vm192, %v6053
    %6190 = vst.msk [vmem:[#allocation11 + $0x1c0] sm:$0xff] %vm192, %v6055
    %6191 = vst.msk [vmem:[#allocation11 + $0x1c8] sm:$0xff] %vm192, %v6057
    %6192 = vst.msk [vmem:[#allocation11 + $0x1d0] sm:$0xff] %vm192, %v6059
    %6193 = vst.msk [vmem:[#allocation11 + $0x1d8] sm:$0xff] %vm192, %v6061
    %6194 = vst.msk [vmem:[#allocation11 + $0x1e0] sm:$0xff] %vm192, %v6063
    %6195 = vst.msk [vmem:[#allocation11 + $0x1e8] sm:$0xff] %vm192, %v6065
    %6196 = vst.msk [vmem:[#allocation11 + $0x1f0] sm:$0xff] %vm192, %v6067
    %6197 = vst.msk [vmem:[#allocation11 + $0x1f8] sm:$0xff] %vm192, %v6069
    // Predicated region
    $region42: #{tpu_custom_call.1} parent=1 // pred_check
      _
    $region43: #{tpu_custom_call.1} parent=1 // pred_check_branch
      %6199 = sbr.rel (0) target = $region45
    $region44: #{tpu_custom_call.1} parent=1 // pred_region
      %s6201 = ssub.s32 8192, 8192
      %6202 = vsyncadd [#allocation5], %s6201
      %s6203 = sshll.u32 [#allocation11], 4
      %s6204 = int_to_ptr.vmem [resolvable:$true] %s6203
      %6209 = dma.vmem_to_hbm [thread:$0]  %s6204, 8192, %s6, [#allocation5], 128, 128, 8
    $region45: #{tpu_custom_call.1} parent=1 // pred_fallthru
      _
    // Predicated region
    $region46: #{tpu_custom_call.1} parent=1 // pred_check
      _
    $region47: #{tpu_custom_call.1} parent=1 // pred_check_branch
      %6211 = sbr.rel (0) target = $region49
    $region48: #{tpu_custom_call.1} parent=1 // pred_region
      %6212 = dma.done [#allocation5], 8192
    $region49: #{tpu_custom_call.1} parent=1 // pred_fallthru
      _
    %6213 = vsyncpa [#allocation4], 1
    %6214 = vsyncpa [#allocation7], 1
    %6215 = vsyncpa [#allocation10], 1
    %6216 = vsyncpa [#allocation5], 1

</llo_original>
